<compile_context>
chip_gen: v6e
topology: v6e:2x2x1
jax: 0.10.0
libtpu: 0.0.40
codegen_flags: <defaults>
</compile_context>

<pallas_src>
import functools

import jax
import jax.numpy as jnp
from jax.experimental import pallas as pl
from jax.experimental.pallas import tpu as pltpu

MAX_TM = 256      # max row tile for matmul / elementwise kernels
BN_EPS = 1e-5     # nn.BatchNorm2d default eps


def _row_tiling(m):
    """Pick the largest row tile: whole M if it fits, else MAX_TM tiles."""
    if m <= MAX_TM:
        return m, m, 1                      # padded_m, tile, num_tiles
    mp = ((m + MAX_TM - 1) // MAX_TM) * MAX_TM
    return mp, MAX_TM, mp // MAX_TM


# ----------------------------- Pallas kernels -----------------------------

def _matmul_kernel(a_ref, b_ref, y_ref):
    # bf16 x bf16 -> f32 accumulation on the MXU
    y_ref[...] = jnp.dot(a_ref[...], b_ref[...], preferred_element_type=jnp.float32)


def _matmul_stats_kernel(a_ref, b_ref, y_ref, s_ref, ss_ref):
    # Matmul + fused BN-statistics epilogue (per-tile column sum / sum-of-squares).
    y = jnp.dot(a_ref[...], b_ref[...], preferred_element_type=jnp.float32)
    y_ref[...] = y
    s_ref[0] = jnp.sum(y, axis=0, keepdims=True)
    ss_ref[0] = jnp.sum(y * y, axis=0, keepdims=True)


def _affine_kernel(x_ref, s_ref, t_ref, o_ref, *, relu):
    y = x_ref[...] * s_ref[...] + t_ref[...]
    if relu:
        y = jnp.maximum(y, 0.0)
    o_ref[...] = y


def _affine_res_kernel(x_ref, s_ref, t_ref, r_ref, o_ref, *, relu):
    y = x_ref[...] * s_ref[...] + t_ref[...] + r_ref[...]
    if relu:
        y = jnp.maximum(y, 0.0)
    o_ref[...] = y


def _avgpool_kernel(x_ref, o_ref):
    # x_ref: (N, H*W, C) -> o_ref: (N, C)
    o_ref[...] = jnp.mean(x_ref[...], axis=1)


# ----------------------------- kernel wrappers -----------------------------

def _matmul_call(a, b, with_stats):
    """(M, K) @ (K, N). bf16 operands, f32 accumulation. Optionally also returns
    per-row-tile column sum / sum-of-squares (for fused BatchNorm stats)."""
    m, k = a.shape
    n = b.shape[1]
    mp, tm, nt = _row_tiling(m)
    a_bf = a.astype(jnp.bfloat16)
    b_bf = b.astype(jnp.bfloat16)
    if mp != m:
        a_bf = jnp.pad(a_bf, ((0, mp - m), (0, 0)))   # zero rows: harmless for stats

    in_specs = [pl.BlockSpec((tm, k), lambda i: (i, 0)),
                pl.BlockSpec((k, n), lambda i: (0, 0))]   # weight resident in VMEM
    cp = pltpu.CompilerParams(dimension_semantics=("parallel",))

    if with_stats:
        return pl.pallas_call(
            _matmul_stats_kernel,
            out_shape=(jax.ShapeDtypeStruct((mp, n), jnp.float32),
                       jax.ShapeDtypeStruct((nt, 1, n), jnp.float32),
                       jax.ShapeDtypeStruct((nt, 1, n), jnp.float32)),
            grid=(nt,),
            in_specs=in_specs,
            out_specs=(pl.BlockSpec((tm, n), lambda i: (i, 0)),
                       pl.BlockSpec((1, 1, n), lambda i: (i, 0, 0)),
                       pl.BlockSpec((1, 1, n), lambda i: (i, 0, 0))),
            compiler_params=cp,
        )(a_bf, b_bf)

    return pl.pallas_call(
        _matmul_kernel,
        out_shape=jax.ShapeDtypeStruct((mp, n), jnp.float32),
        grid=(nt,),
        in_specs=in_specs,
        out_specs=pl.BlockSpec((tm, n), lambda i: (i, 0)),
        compiler_params=cp,
    )(a_bf, b_bf)


def pallas_matmul(a, b):
    """Plain matmul, result sliced to the true row count."""
    y = _matmul_call(a, b, with_stats=False)
    return y[:a.shape[0]]


def pallas_matmul_bn(a, b):
    """Matmul + per-channel sum / sumsq (BN stats fused into the epilogue).
    Returns the padded f32 result plus reduced column sums."""
    y_p, cs, css = _matmul_call(a, b, with_stats=True)
    return y_p, jnp.sum(cs, axis=(0, 1)), jnp.sum(css, axis=(0, 1))


def pallas_affine_act(y, scale, shift, residual=None, *, relu=True):
    """out = act(y * scale + shift [+ residual]); scale/shift per-channel (last dim).
    Runs on a lane-dense flattened (M', 128) view whenever C divides 128."""
    mp, c = y.shape
    y = y.astype(jnp.float32)

    lane_dense = (c <= 128) and (128 % c == 0) and ((mp * c) % 128 == 0)
    if lane_dense:
        reps = 128 // c
        xw = y.reshape(mp * c // 128, 128)
        sw = jnp.tile(scale.astype(jnp.float32), reps).reshape(1, 128)
        tw = jnp.tile(shift.astype(jnp.float32), reps).reshape(1, 128)
        rw = (residual.astype(jnp.float32).reshape(xw.shape)
              if residual is not None else None)
    else:
        xw = y
        sw = scale.reshape(1, c).astype(jnp.float32)
        tw = shift.reshape(1, c).astype(jnp.float32)
        rw = residual.astype(jnp.float32) if residual is not None else None

    mw, cw = xw.shape
    mpad, tm, nt = _row_tiling(mw)
    if mpad != mw:
        xw = jnp.pad(xw, ((0, mpad - mw), (0, 0)))
        if rw is not None:
            rw = jnp.pad(rw, ((0, mpad - mw), (0, 0)))

    in_specs = [pl.BlockSpec((tm, cw), lambda i: (i, 0)),
                pl.BlockSpec((1, cw), lambda i: (0, 0)),
                pl.BlockSpec((1, cw), lambda i: (0, 0))]
    args = [xw, sw, tw]
    if rw is not None:
        in_specs.append(pl.BlockSpec((tm, cw), lambda i: (i, 0)))
        args.append(rw)
        kernel = functools.partial(_affine_res_kernel, relu=relu)
    else:
        kernel = functools.partial(_affine_kernel, relu=relu)

    out = pl.pallas_call(
        kernel,
        out_shape=jax.ShapeDtypeStruct((mpad, cw), jnp.float32),
        grid=(nt,),
        in_specs=in_specs,
        out_specs=pl.BlockSpec((tm, cw), lambda i: (i, 0)),
        compiler_params=pltpu.CompilerParams(dimension_semantics=("parallel",)),
    )(*args)

    out = out[:mw]
    if lane_dense:
        out = out.reshape(mp, c)
    return out


def pallas_global_avgpool(x):
    """AdaptiveAvgPool2d((1,1)) + mean(dim=(2,3)): (N, H, W, C) -> (N, C)."""
    n, h, w, c = x.shape
    xr = x.reshape(n, h * w, c).astype(jnp.float32)
    return pl.pallas_call(
        _avgpool_kernel,
        out_shape=jax.ShapeDtypeStruct((n, c), jnp.float32),
    )(xr)


# ----------------------------- conv / block glue -----------------------------

def _im2col(x, kh, kw, stride, pad):
    """x: (N, H, W, C) -> (N*Ho*Wo, KH*KW*C) patches (pure data movement)."""
    n, h, w, c = x.shape
    xp = jnp.pad(x, ((0, 0), (pad, pad), (pad, pad), (0, 0)))
    ho = (h + 2 * pad - kh) // stride + 1
    wo = (w + 2 * pad - kw) // stride + 1
    cols = []
    for i in range(kh):
        for j in range(kw):
            cols.append(xp[:, i:i + stride * ho:stride, j:j + stride * wo:stride, :])
    patches = jnp.concatenate(cols, axis=-1)   # (N, Ho, Wo, KH*KW*C)
    return patches.reshape(n * ho * wo, kh * kw * c), (n, ho, wo)


def conv_bn_act(x, w_hwio, gamma, beta, *, stride, relu, residual=None):
    """Conv2d(bias=False) -> BatchNorm2d (batch stats) -> [+residual] -> [ReLU]."""
    kh, kw, cin, cout = w_hwio.shape
    pad = 1 if kh == 3 else 0
    patches, (n, ho, wo) = _im2col(x, kh, kw, stride, pad)
    m = patches.shape[0]

    # matmul with BN statistics fused into its epilogue (no extra pass over y)
    y_p, col_sum, col_sumsq = pallas_matmul_bn(patches, w_hwio.reshape(kh * kw * cin, cout))

    # training-mode BatchNorm over (N, H, W) per channel (biased variance)
    mu = col_sum / m
    var = jnp.maximum(col_sumsq / m - mu * mu, 0.0)
    scale = gamma / jnp.sqrt(var + BN_EPS)
    shift = beta - mu * scale

    res_p = None
    if residual is not None:
        res_p = residual
        if res_p.shape[0] != y_p.shape[0]:
            res_p = jnp.pad(res_p, ((0, y_p.shape[0] - res_p.shape[0]), (0, 0)))

    out_p = pallas_affine_act(y_p, scale, shift, res_p, relu=relu)
    return out_p[:m].reshape(n, ho, wo, cout)


def resnet_block(x, p):
    subsample = 'w_skip' in p
    stride1 = 2 if subsample else 1
    # z = act(bn1(conv1(x)))
    z = conv_bn_act(x, p['w1'], p['g1'], p['b1'], stride=stride1, relu=True)
    # skip branch
    if subsample:
        xs = x[:, ::2, ::2, :]                         # 1x1 conv, stride 2, no padding
        n, ho, wo, cin = xs.shape
        skip = pallas_matmul(xs.reshape(n * ho * wo, cin), p['w_skip'])
    else:
        n, ho, wo, cin = x.shape                       # cin == cout for identity skip
        skip = x.reshape(n * ho * wo, cin).astype(jnp.float32)
    # out = act(bn2(conv2(z)) + skip)   (add + ReLU fused into the elementwise kernel)
    return conv_bn_act(z, p['w2'], p['g2'], p['b2'], stride=1, relu=True, residual=skip)


# ----------------------------- parameters -----------------------------

def init_resnet_params(key, in_channels, num_classes, num_blocks, c_hidden):
    keys = iter(jax.random.split(key, 256))

    def conv_w(kh, kw, cin, cout):
        std = (2.0 / (kh * kw * cin)) ** 0.5
        return jax.random.normal(next(keys), (kh, kw, cin, cout), jnp.float32) * std

    params = {
        'stem': {'w': conv_w(3, 3, in_channels, c_hidden[0]),
                 'g': jnp.ones((c_hidden[0],), jnp.float32),
                 'b': jnp.zeros((c_hidden[0],), jnp.float32)},
        'stages': [],
    }
    in_planes = c_hidden[0]
    for block_idx, block_count in enumerate(num_blocks):
        stage = []
        for bc in range(block_count):
            subsample = (bc == 0 and block_idx > 0)
            cout = c_hidden[block_idx]
            blk = {'w1': conv_w(3, 3, in_planes, cout),
                   'g1': jnp.ones((cout,), jnp.float32),
                   'b1': jnp.zeros((cout,), jnp.float32),
                   'w2': conv_w(3, 3, cout, cout),
                   'g2': jnp.ones((cout,), jnp.float32),
                   'b2': jnp.zeros((cout,), jnp.float32)}
            if subsample:
                blk['w_skip'] = conv_w(1, 1, in_planes, cout).reshape(in_planes, cout)
            stage.append(blk)
            in_planes = cout
        params['stages'].append(stage)
    fan_in = c_hidden[-1]
    bound = 1.0 / (fan_in ** 0.5)
    params['fc_w'] = jax.random.uniform(next(keys), (fan_in, num_classes),
                                        jnp.float32, -bound, bound)
    params['fc_b'] = jax.random.uniform(next(keys), (num_classes,),
                                        jnp.float32, -bound, bound)
    return params


# ----------------------------- forward -----------------------------

@jax.jit
def resnet_forward(params, x_nchw):
    # PyTorch input is NCHW -> NHWC for the kernels
    x = jnp.transpose(x_nchw, (0, 2, 3, 1)).astype(jnp.float32)
    s = params['stem']
    x = conv_bn_act(x, s['w'], s['g'], s['b'], stride=1, relu=True)   # layer0
    for stage in params['stages']:
        for blk in stage:
            x = resnet_block(x, blk)
    feats = pallas_global_avgpool(x)          # AdaptiveAvgPool2d((1,1)) + mean(2,3)/view
    # final Linear: single un-padded Pallas matmul block, bias added in plain JAX
    logits = pallas_matmul(feats, params['fc_w']) + params['fc_b']
    return logits


if __name__ == "__main__":
    key = jax.random.PRNGKey(0)
    k_param, k_x = jax.random.split(key)

    # small, module-consistent config
    in_channels, num_classes = 4, 10
    num_blocks, c_hidden = (2, 2, 2), (8, 16, 32)

    params = init_resnet_params(k_param, in_channels, num_classes, num_blocks, c_hidden)
    x = jax.random.normal(k_x, (2, in_channels, 16, 16), jnp.float32)  # NCHW, like PyTorch

    logits = resnet_forward(params, x)
    jax.block_until_ready(logits)
    assert logits.shape == (2, num_classes) and logits.dtype == jnp.float32
    print("KERNEL_OK")
</pallas_src>

<mosaic_0001>
module attributes {stable_mosaic.version = 11 : i64} {
  func.func @_matmul_stats_kernel(%arg0: i32, %arg1: memref<256x36xbf16, #tpu.memory_space<vmem>>, %arg2: memref<36x8xbf16, #tpu.memory_space<vmem>>, %arg3: memref<256x8xf32, #tpu.memory_space<vmem>>, %arg4: memref<1x1x8xf32, #tpu.memory_space<vmem>>, %arg5: memref<1x1x8xf32, #tpu.memory_space<vmem>>) attributes {dimension_semantics = [#tpu.dimension_semantics<parallel>], iteration_bounds = array<i64: 2>, scalar_prefetch = 0 : i64, scratch_operands = 0 : i64, tpu.core_type = #tpu.core_type<tc>, window_params = [{transform_indices = @transform_0, window_bounds = array<i64: 256, 36>}, {pipeline_mode = #tpu.pipeline_mode<synchronous>, transform_indices = @transform_1, window_bounds = array<i64: 36, 8>}, {transform_indices = @transform_2, window_bounds = array<i64: 256, 8>}, {transform_indices = @transform_3, window_bounds = array<i64: 1, 1, 8>}, {transform_indices = @transform_4, window_bounds = array<i64: 1, 1, 8>}]} {
    %c0 = arith.constant 0 : index
    %c0_0 = arith.constant 0 : index
    %0 = vector.load %arg1[%c0, %c0_0] : memref<256x36xbf16, #tpu.memory_space<vmem>>, vector<256x36xbf16>
    %c0_1 = arith.constant 0 : index
    %c0_2 = arith.constant 0 : index
    %1 = vector.load %arg2[%c0_1, %c0_2] : memref<36x8xbf16, #tpu.memory_space<vmem>>, vector<36x8xbf16>
    %cst = arith.constant dense<0.000000e+00> : vector<256x8xf32>
    %2 = tpu.matmul %0, %1, %cst {dimension_numbers = #tpu.dot_dimension_numbers<[1], [0], [0], [1], [0, 0, 1, 1], [], []>} : vector<256x36xbf16>, vector<36x8xbf16>, vector<256x8xf32> -> vector<256x8xf32>
    %c0_3 = arith.constant 0 : index
    %c0_4 = arith.constant 0 : index
    %3 = vector.load %arg3[%c0_3, %c0_4] : memref<256x8xf32, #tpu.memory_space<vmem>>, vector<256x8xf32>
    tpu.vector_store %arg3[%c0_3, %c0_4], %2 {strides = array<i32>} : memref<256x8xf32, #tpu.memory_space<vmem>>, vector<256x8xf32>,
    %cst_5 = arith.constant dense<0.000000e+00> : vector<8xf32>
    %4 = vector.multi_reduction <add>, %2, %cst_5 [0] : vector<256x8xf32> to vector<8xf32>
    %5 = vector.shape_cast %4 : vector<8xf32> to vector<1x8xf32>
    %c0_6 = arith.constant 0 : index
    %c0_7 = arith.constant 0 : index
    %c0_8 = arith.constant 0 : index
    %6 = vector.load %arg4[%c0_6, %c0_7, %c0_8] : memref<1x1x8xf32, #tpu.memory_space<vmem>>, vector<1x1x8xf32>
    %7 = vector.shape_cast %6 : vector<1x1x8xf32> to vector<1x8xf32>
    %8 = vector.shape_cast %5 : vector<1x8xf32> to vector<1x1x8xf32>
    tpu.vector_store %arg4[%c0_6, %c0_7, %c0_8], %8 {strides = array<i32>} : memref<1x1x8xf32, #tpu.memory_space<vmem>>, vector<1x1x8xf32>,
    %9 = arith.mulf %2, %2 : vector<256x8xf32>
    %cst_9 = arith.constant dense<0.000000e+00> : vector<8xf32>
    %10 = vector.multi_reduction <add>, %9, %cst_9 [0] : vector<256x8xf32> to vector<8xf32>
    %11 = vector.shape_cast %10 : vector<8xf32> to vector<1x8xf32>
    %c0_10 = arith.constant 0 : index
    %c0_11 = arith.constant 0 : index
    %c0_12 = arith.constant 0 : index
    %12 = vector.load %arg5[%c0_10, %c0_11, %c0_12] : memref<1x1x8xf32, #tpu.memory_space<vmem>>, vector<1x1x8xf32>
    %13 = vector.shape_cast %12 : vector<1x1x8xf32> to vector<1x8xf32>
    %14 = vector.shape_cast %11 : vector<1x8xf32> to vector<1x1x8xf32>
    tpu.vector_store %arg5[%c0_10, %c0_11, %c0_12], %14 {strides = array<i32>} : memref<1x1x8xf32, #tpu.memory_space<vmem>>, vector<1x1x8xf32>,
    return
  }
  func.func @transform_0(%arg0: i32) -> (i32, i32) {
    %c0_i32 = arith.constant 0 : i32
    %c0_i32_0 = arith.constant 0 : i32
    return %arg0, %c0_i32 : i32, i32
  }
  func.func @transform_1(%arg0: i32) -> (i32, i32) {
    %c0_i32 = arith.constant 0 : i32
    %c0_i32_0 = arith.constant 0 : i32
    %c0_i32_1 = arith.constant 0 : i32
    return %c0_i32, %c0_i32_0 : i32, i32
  }
  func.func @transform_2(%arg0: i32) -> (i32, i32) {
    %c0_i32 = arith.constant 0 : i32
    %c0_i32_0 = arith.constant 0 : i32
    return %arg0, %c0_i32 : i32, i32
  }
  func.func @transform_3(%arg0: i32) -> (i32, i32, i32) {
    %c0_i32 = arith.constant 0 : i32
    %c0_i32_0 = arith.constant 0 : i32
    %c0_i32_1 = arith.constant 0 : i32
    return %arg0, %c0_i32, %c0_i32_0 : i32, i32, i32
  }
  func.func @transform_4(%arg0: i32) -> (i32, i32, i32) {
    %c0_i32 = arith.constant 0 : i32
    %c0_i32_0 = arith.constant 0 : i32
    %c0_i32_1 = arith.constant 0 : i32
    return %arg0, %c0_i32, %c0_i32_0 : i32, i32, i32
  }
}

module attributes {stable_mosaic.version = 11 : i64} {
  func.func @_affine_kernel(%arg0: i32, %arg1: memref<32x128xf32, #tpu.memory_space<vmem>>, %arg2: memref<1x128xf32, #tpu.memory_space<vmem>>, %arg3: memref<1x128xf32, #tpu.memory_space<vmem>>, %arg4: memref<32x128xf32, #tpu.memory_space<vmem>>) attributes {dimension_semantics = [#tpu.dimension_semantics<parallel>], iteration_bounds = array<i64: 1>, scalar_prefetch = 0 : i64, scratch_operands = 0 : i64, tpu.core_type = #tpu.core_type<tc>, window_params = [{transform_indices = @transform_0, window_bounds = array<i64: 32, 128>}, {pipeline_mode = #tpu.pipeline_mode<synchronous>, transform_indices = @transform_1, window_bounds = array<i64: 1, 128>}, {pipeline_mode = #tpu.pipeline_mode<synchronous>, transform_indices = @transform_2, window_bounds = array<i64: 1, 128>}, {transform_indices = @transform_3, window_bounds = array<i64: 32, 128>}]} {
    %c0 = arith.constant 0 : index
    %c0_0 = arith.constant 0 : index
    %0 = vector.load %arg1[%c0, %c0_0] : memref<32x128xf32, #tpu.memory_space<vmem>>, vector<32x128xf32>
    %c0_1 = arith.constant 0 : index
    %c0_2 = arith.constant 0 : index
    %1 = vector.load %arg2[%c0_1, %c0_2] : memref<1x128xf32, #tpu.memory_space<vmem>>, vector<1x128xf32>
    %2 = vector.broadcast %1 : vector<1x128xf32> to vector<32x128xf32>
    %3 = arith.mulf %0, %2 : vector<32x128xf32>
    %c0_3 = arith.constant 0 : index
    %c0_4 = arith.constant 0 : index
    %4 = vector.load %arg3[%c0_3, %c0_4] : memref<1x128xf32, #tpu.memory_space<vmem>>, vector<1x128xf32>
    %5 = vector.broadcast %4 : vector<1x128xf32> to vector<32x128xf32>
    %6 = arith.addf %3, %5 : vector<32x128xf32>
    %cst = arith.constant 0.000000e+00 : f32
    %7 = vector.broadcast %cst : f32 to vector<32x128xf32>
    %8 = arith.maximumf %6, %7 : vector<32x128xf32>
    %c0_5 = arith.constant 0 : index
    %c0_6 = arith.constant 0 : index
    %9 = vector.load %arg4[%c0_5, %c0_6] : memref<32x128xf32, #tpu.memory_space<vmem>>, vector<32x128xf32>
    tpu.vector_store %arg4[%c0_5, %c0_6], %8 {strides = array<i32>} : memref<32x128xf32, #tpu.memory_space<vmem>>, vector<32x128xf32>,
    return
  }
  func.func @transform_0(%arg0: i32) -> (i32, i32) {
    %c0_i32 = arith.constant 0 : i32
    %c0_i32_0 = arith.constant 0 : i32
    return %arg0, %c0_i32 : i32, i32
  }
  func.func @transform_1(%arg0: i32) -> (i32, i32) {
    %c0_i32 = arith.constant 0 : i32
    %c0_i32_0 = arith.constant 0 : i32
    %c0_i32_1 = arith.constant 0 : i32
    return %c0_i32, %c0_i32_0 : i32, i32
  }
  func.func @transform_2(%arg0: i32) -> (i32, i32) {
    %c0_i32 = arith.constant 0 : i32
    %c0_i32_0 = arith.constant 0 : i32
    %c0_i32_1 = arith.constant 0 : i32
    return %c0_i32, %c0_i32_0 : i32, i32
  }
  func.func @transform_3(%arg0: i32) -> (i32, i32) {
    %c0_i32 = arith.constant 0 : i32
    %c0_i32_0 = arith.constant 0 : i32
    return %arg0, %c0_i32 : i32, i32
  }
}

module attributes {stable_mosaic.version = 11 : i64} {
  func.func @_matmul_stats_kernel(%arg0: i32, %arg1: memref<256x72xbf16, #tpu.memory_space<vmem>>, %arg2: memref<72x8xbf16, #tpu.memory_space<vmem>>, %arg3: memref<256x8xf32, #tpu.memory_space<vmem>>, %arg4: memref<1x1x8xf32, #tpu.memory_space<vmem>>, %arg5: memref<1x1x8xf32, #tpu.memory_space<vmem>>) attributes {dimension_semantics = [#tpu.dimension_semantics<parallel>], iteration_bounds = array<i64: 2>, scalar_prefetch = 0 : i64, scratch_operands = 0 : i64, tpu.core_type = #tpu.core_type<tc>, window_params = [{transform_indices = @transform_0, window_bounds = array<i64: 256, 72>}, {pipeline_mode = #tpu.pipeline_mode<synchronous>, transform_indices = @transform_1, window_bounds = array<i64: 72, 8>}, {transform_indices = @transform_2, window_bounds = array<i64: 256, 8>}, {transform_indices = @transform_3, window_bounds = array<i64: 1, 1, 8>}, {transform_indices = @transform_4, window_bounds = array<i64: 1, 1, 8>}]} {
    %c0 = arith.constant 0 : index
    %c0_0 = arith.constant 0 : index
    %0 = vector.load %arg1[%c0, %c0_0] : memref<256x72xbf16, #tpu.memory_space<vmem>>, vector<256x72xbf16>
    %c0_1 = arith.constant 0 : index
    %c0_2 = arith.constant 0 : index
    %1 = vector.load %arg2[%c0_1, %c0_2] : memref<72x8xbf16, #tpu.memory_space<vmem>>, vector<72x8xbf16>
    %cst = arith.constant dense<0.000000e+00> : vector<256x8xf32>
    %2 = tpu.matmul %0, %1, %cst {dimension_numbers = #tpu.dot_dimension_numbers<[1], [0], [0], [1], [0, 0, 1, 1], [], []>} : vector<256x72xbf16>, vector<72x8xbf16>, vector<256x8xf32> -> vector<256x8xf32>
    %c0_3 = arith.constant 0 : index
    %c0_4 = arith.constant 0 : index
    %3 = vector.load %arg3[%c0_3, %c0_4] : memref<256x8xf32, #tpu.memory_space<vmem>>, vector<256x8xf32>
    tpu.vector_store %arg3[%c0_3, %c0_4], %2 {strides = array<i32>} : memref<256x8xf32, #tpu.memory_space<vmem>>, vector<256x8xf32>,
    %cst_5 = arith.constant dense<0.000000e+00> : vector<8xf32>
    %4 = vector.multi_reduction <add>, %2, %cst_5 [0] : vector<256x8xf32> to vector<8xf32>
    %5 = vector.shape_cast %4 : vector<8xf32> to vector<1x8xf32>
    %c0_6 = arith.constant 0 : index
    %c0_7 = arith.constant 0 : index
    %c0_8 = arith.constant 0 : index
    %6 = vector.load %arg4[%c0_6, %c0_7, %c0_8] : memref<1x1x8xf32, #tpu.memory_space<vmem>>, vector<1x1x8xf32>
    %7 = vector.shape_cast %6 : vector<1x1x8xf32> to vector<1x8xf32>
    %8 = vector.shape_cast %5 : vector<1x8xf32> to vector<1x1x8xf32>
    tpu.vector_store %arg4[%c0_6, %c0_7, %c0_8], %8 {strides = array<i32>} : memref<1x1x8xf32, #tpu.memory_space<vmem>>, vector<1x1x8xf32>,
    %9 = arith.mulf %2, %2 : vector<256x8xf32>
    %cst_9 = arith.constant dense<0.000000e+00> : vector<8xf32>
    %10 = vector.multi_reduction <add>, %9, %cst_9 [0] : vector<256x8xf32> to vector<8xf32>
    %11 = vector.shape_cast %10 : vector<8xf32> to vector<1x8xf32>
    %c0_10 = arith.constant 0 : index
    %c0_11 = arith.constant 0 : index
    %c0_12 = arith.constant 0 : index
    %12 = vector.load %arg5[%c0_10, %c0_11, %c0_12] : memref<1x1x8xf32, #tpu.memory_space<vmem>>, vector<1x1x8xf32>
    %13 = vector.shape_cast %12 : vector<1x1x8xf32> to vector<1x8xf32>
    %14 = vector.shape_cast %11 : vector<1x8xf32> to vector<1x1x8xf32>
    tpu.vector_store %arg5[%c0_10, %c0_11, %c0_12], %14 {strides = array<i32>} : memref<1x1x8xf32, #tpu.memory_space<vmem>>, vector<1x1x8xf32>,
    return
  }
  func.func @transform_0(%arg0: i32) -> (i32, i32) {
    %c0_i32 = arith.constant 0 : i32
    %c0_i32_0 = arith.constant 0 : i32
    return %arg0, %c0_i32 : i32, i32
  }
  func.func @transform_1(%arg0: i32) -> (i32, i32) {
    %c0_i32 = arith.constant 0 : i32
    %c0_i32_0 = arith.constant 0 : i32
    %c0_i32_1 = arith.constant 0 : i32
    return %c0_i32, %c0_i32_0 : i32, i32
  }
  func.func @transform_2(%arg0: i32) -> (i32, i32) {
    %c0_i32 = arith.constant 0 : i32
    %c0_i32_0 = arith.constant 0 : i32
    return %arg0, %c0_i32 : i32, i32
  }
  func.func @transform_3(%arg0: i32) -> (i32, i32, i32) {
    %c0_i32 = arith.constant 0 : i32
    %c0_i32_0 = arith.constant 0 : i32
    %c0_i32_1 = arith.constant 0 : i32
    return %arg0, %c0_i32, %c0_i32_0 : i32, i32, i32
  }
  func.func @transform_4(%arg0: i32) -> (i32, i32, i32) {
    %c0_i32 = arith.constant 0 : i32
    %c0_i32_0 = arith.constant 0 : i32
    %c0_i32_1 = arith.constant 0 : i32
    return %arg0, %c0_i32, %c0_i32_0 : i32, i32, i32
  }
}

module attributes {stable_mosaic.version = 11 : i64} {
  func.func @_affine_res_kernel(%arg0: i32, %arg1: memref<32x128xf32, #tpu.memory_space<vmem>>, %arg2: memref<1x128xf32, #tpu.memory_space<vmem>>, %arg3: memref<1x128xf32, #tpu.memory_space<vmem>>, %arg4: memref<32x128xf32, #tpu.memory_space<vmem>>, %arg5: memref<32x128xf32, #tpu.memory_space<vmem>>) attributes {dimension_semantics = [#tpu.dimension_semantics<parallel>], iteration_bounds = array<i64: 1>, scalar_prefetch = 0 : i64, scratch_operands = 0 : i64, tpu.core_type = #tpu.core_type<tc>, window_params = [{transform_indices = @transform_0, window_bounds = array<i64: 32, 128>}, {pipeline_mode = #tpu.pipeline_mode<synchronous>, transform_indices = @transform_1, window_bounds = array<i64: 1, 128>}, {pipeline_mode = #tpu.pipeline_mode<synchronous>, transform_indices = @transform_2, window_bounds = array<i64: 1, 128>}, {transform_indices = @transform_3, window_bounds = array<i64: 32, 128>}, {transform_indices = @transform_4, window_bounds = array<i64: 32, 128>}]} {
    %c0 = arith.constant 0 : index
    %c0_0 = arith.constant 0 : index
    %0 = vector.load %arg1[%c0, %c0_0] : memref<32x128xf32, #tpu.memory_space<vmem>>, vector<32x128xf32>
    %c0_1 = arith.constant 0 : index
    %c0_2 = arith.constant 0 : index
    %1 = vector.load %arg2[%c0_1, %c0_2] : memref<1x128xf32, #tpu.memory_space<vmem>>, vector<1x128xf32>
    %2 = vector.broadcast %1 : vector<1x128xf32> to vector<32x128xf32>
    %3 = arith.mulf %0, %2 : vector<32x128xf32>
    %c0_3 = arith.constant 0 : index
    %c0_4 = arith.constant 0 : index
    %4 = vector.load %arg3[%c0_3, %c0_4] : memref<1x128xf32, #tpu.memory_space<vmem>>, vector<1x128xf32>
    %5 = vector.broadcast %4 : vector<1x128xf32> to vector<32x128xf32>
    %6 = arith.addf %3, %5 : vector<32x128xf32>
    %c0_5 = arith.constant 0 : index
    %c0_6 = arith.constant 0 : index
    %7 = vector.load %arg4[%c0_5, %c0_6] : memref<32x128xf32, #tpu.memory_space<vmem>>, vector<32x128xf32>
    %8 = arith.addf %6, %7 : vector<32x128xf32>
    %cst = arith.constant 0.000000e+00 : f32
    %9 = vector.broadcast %cst : f32 to vector<32x128xf32>
    %10 = arith.maximumf %8, %9 : vector<32x128xf32>
    %c0_7 = arith.constant 0 : index
    %c0_8 = arith.constant 0 : index
    %11 = vector.load %arg5[%c0_7, %c0_8] : memref<32x128xf32, #tpu.memory_space<vmem>>, vector<32x128xf32>
    tpu.vector_store %arg5[%c0_7, %c0_8], %10 {strides = array<i32>} : memref<32x128xf32, #tpu.memory_space<vmem>>, vector<32x128xf32>,
    return
  }
  func.func @transform_0(%arg0: i32) -> (i32, i32) {
    %c0_i32 = arith.constant 0 : i32
    %c0_i32_0 = arith.constant 0 : i32
    return %arg0, %c0_i32 : i32, i32
  }
  func.func @transform_1(%arg0: i32) -> (i32, i32) {
    %c0_i32 = arith.constant 0 : i32
    %c0_i32_0 = arith.constant 0 : i32
    %c0_i32_1 = arith.constant 0 : i32
    return %c0_i32, %c0_i32_0 : i32, i32
  }
  func.func @transform_2(%arg0: i32) -> (i32, i32) {
    %c0_i32 = arith.constant 0 : i32
    %c0_i32_0 = arith.constant 0 : i32
    %c0_i32_1 = arith.constant 0 : i32
    return %c0_i32, %c0_i32_0 : i32, i32
  }
  func.func @transform_3(%arg0: i32) -> (i32, i32) {
    %c0_i32 = arith.constant 0 : i32
    %c0_i32_0 = arith.constant 0 : i32
    return %arg0, %c0_i32 : i32, i32
  }
  func.func @transform_4(%arg0: i32) -> (i32, i32) {
    %c0_i32 = arith.constant 0 : i32
    %c0_i32_0 = arith.constant 0 : i32
    return %arg0, %c0_i32 : i32, i32
  }
}

module attributes {stable_mosaic.version = 11 : i64} {
  func.func @_matmul_stats_kernel(%arg0: i32, %arg1: memref<128x72xbf16, #tpu.memory_space<vmem>>, %arg2: memref<72x16xbf16, #tpu.memory_space<vmem>>, %arg3: memref<128x16xf32, #tpu.memory_space<vmem>>, %arg4: memref<1x1x16xf32, #tpu.memory_space<vmem>>, %arg5: memref<1x1x16xf32, #tpu.memory_space<vmem>>) attributes {dimension_semantics = [#tpu.dimension_semantics<parallel>], iteration_bounds = array<i64: 1>, scalar_prefetch = 0 : i64, scratch_operands = 0 : i64, tpu.core_type = #tpu.core_type<tc>, window_params = [{transform_indices = @transform_0, window_bounds = array<i64: 128, 72>}, {pipeline_mode = #tpu.pipeline_mode<synchronous>, transform_indices = @transform_1, window_bounds = array<i64: 72, 16>}, {transform_indices = @transform_2, window_bounds = array<i64: 128, 16>}, {transform_indices = @transform_3, window_bounds = array<i64: 1, 1, 16>}, {transform_indices = @transform_4, window_bounds = array<i64: 1, 1, 16>}]} {
    %c0 = arith.constant 0 : index
    %c0_0 = arith.constant 0 : index
    %0 = vector.load %arg1[%c0, %c0_0] : memref<128x72xbf16, #tpu.memory_space<vmem>>, vector<128x72xbf16>
    %c0_1 = arith.constant 0 : index
    %c0_2 = arith.constant 0 : index
    %1 = vector.load %arg2[%c0_1, %c0_2] : memref<72x16xbf16, #tpu.memory_space<vmem>>, vector<72x16xbf16>
    %cst = arith.constant dense<0.000000e+00> : vector<128x16xf32>
    %2 = tpu.matmul %0, %1, %cst {dimension_numbers = #tpu.dot_dimension_numbers<[1], [0], [0], [1], [0, 0, 1, 1], [], []>} : vector<128x72xbf16>, vector<72x16xbf16>, vector<128x16xf32> -> vector<128x16xf32>
    %c0_3 = arith.constant 0 : index
    %c0_4 = arith.constant 0 : index
    %3 = vector.load %arg3[%c0_3, %c0_4] : memref<128x16xf32, #tpu.memory_space<vmem>>, vector<128x16xf32>
    tpu.vector_store %arg3[%c0_3, %c0_4], %2 {strides = array<i32>} : memref<128x16xf32, #tpu.memory_space<vmem>>, vector<128x16xf32>,
    %cst_5 = arith.constant dense<0.000000e+00> : vector<16xf32>
    %4 = vector.multi_reduction <add>, %2, %cst_5 [0] : vector<128x16xf32> to vector<16xf32>
    %5 = vector.shape_cast %4 : vector<16xf32> to vector<1x16xf32>
    %c0_6 = arith.constant 0 : index
    %c0_7 = arith.constant 0 : index
    %c0_8 = arith.constant 0 : index
    %6 = vector.load %arg4[%c0_6, %c0_7, %c0_8] : memref<1x1x16xf32, #tpu.memory_space<vmem>>, vector<1x1x16xf32>
    %7 = vector.shape_cast %6 : vector<1x1x16xf32> to vector<1x16xf32>
    %8 = vector.shape_cast %5 : vector<1x16xf32> to vector<1x1x16xf32>
    tpu.vector_store %arg4[%c0_6, %c0_7, %c0_8], %8 {strides = array<i32>} : memref<1x1x16xf32, #tpu.memory_space<vmem>>, vector<1x1x16xf32>,
    %9 = arith.mulf %2, %2 : vector<128x16xf32>
    %cst_9 = arith.constant dense<0.000000e+00> : vector<16xf32>
    %10 = vector.multi_reduction <add>, %9, %cst_9 [0] : vector<128x16xf32> to vector<16xf32>
    %11 = vector.shape_cast %10 : vector<16xf32> to vector<1x16xf32>
    %c0_10 = arith.constant 0 : index
    %c0_11 = arith.constant 0 : index
    %c0_12 = arith.constant 0 : index
    %12 = vector.load %arg5[%c0_10, %c0_11, %c0_12] : memref<1x1x16xf32, #tpu.memory_space<vmem>>, vector<1x1x16xf32>
    %13 = vector.shape_cast %12 : vector<1x1x16xf32> to vector<1x16xf32>
    %14 = vector.shape_cast %11 : vector<1x16xf32> to vector<1x1x16xf32>
    tpu.vector_store %arg5[%c0_10, %c0_11, %c0_12], %14 {strides = array<i32>} : memref<1x1x16xf32, #tpu.memory_space<vmem>>, vector<1x1x16xf32>,
    return
  }
  func.func @transform_0(%arg0: i32) -> (i32, i32) {
    %c0_i32 = arith.constant 0 : i32
    %c0_i32_0 = arith.constant 0 : i32
    return %arg0, %c0_i32 : i32, i32
  }
  func.func @transform_1(%arg0: i32) -> (i32, i32) {
    %c0_i32 = arith.constant 0 : i32
    %c0_i32_0 = arith.constant 0 : i32
    %c0_i32_1 = arith.constant 0 : i32
    return %c0_i32, %c0_i32_0 : i32, i32
  }
  func.func @transform_2(%arg0: i32) -> (i32, i32) {
    %c0_i32 = arith.constant 0 : i32
    %c0_i32_0 = arith.constant 0 : i32
    return %arg0, %c0_i32 : i32, i32
  }
  func.func @transform_3(%arg0: i32) -> (i32, i32, i32) {
    %c0_i32 = arith.constant 0 : i32
    %c0_i32_0 = arith.constant 0 : i32
    %c0_i32_1 = arith.constant 0 : i32
    return %arg0, %c0_i32, %c0_i32_0 : i32, i32, i32
  }
  func.func @transform_4(%arg0: i32) -> (i32, i32, i32) {
    %c0_i32 = arith.constant 0 : i32
    %c0_i32_0 = arith.constant 0 : i32
    %c0_i32_1 = arith.constant 0 : i32
    return %arg0, %c0_i32, %c0_i32_0 : i32, i32, i32
  }
}

module attributes {stable_mosaic.version = 11 : i64} {
  func.func @_affine_kernel(%arg0: i32, %arg1: memref<16x128xf32, #tpu.memory_space<vmem>>, %arg2: memref<1x128xf32, #tpu.memory_space<vmem>>, %arg3: memref<1x128xf32, #tpu.memory_space<vmem>>, %arg4: memref<16x128xf32, #tpu.memory_space<vmem>>) attributes {dimension_semantics = [#tpu.dimension_semantics<parallel>], iteration_bounds = array<i64: 1>, scalar_prefetch = 0 : i64, scratch_operands = 0 : i64, tpu.core_type = #tpu.core_type<tc>, window_params = [{transform_indices = @transform_0, window_bounds = array<i64: 16, 128>}, {pipeline_mode = #tpu.pipeline_mode<synchronous>, transform_indices = @transform_1, window_bounds = array<i64: 1, 128>}, {pipeline_mode = #tpu.pipeline_mode<synchronous>, transform_indices = @transform_2, window_bounds = array<i64: 1, 128>}, {transform_indices = @transform_3, window_bounds = array<i64: 16, 128>}]} {
    %c0 = arith.constant 0 : index
    %c0_0 = arith.constant 0 : index
    %0 = vector.load %arg1[%c0, %c0_0] : memref<16x128xf32, #tpu.memory_space<vmem>>, vector<16x128xf32>
    %c0_1 = arith.constant 0 : index
    %c0_2 = arith.constant 0 : index
    %1 = vector.load %arg2[%c0_1, %c0_2] : memref<1x128xf32, #tpu.memory_space<vmem>>, vector<1x128xf32>
    %2 = vector.broadcast %1 : vector<1x128xf32> to vector<16x128xf32>
    %3 = arith.mulf %0, %2 : vector<16x128xf32>
    %c0_3 = arith.constant 0 : index
    %c0_4 = arith.constant 0 : index
    %4 = vector.load %arg3[%c0_3, %c0_4] : memref<1x128xf32, #tpu.memory_space<vmem>>, vector<1x128xf32>
    %5 = vector.broadcast %4 : vector<1x128xf32> to vector<16x128xf32>
    %6 = arith.addf %3, %5 : vector<16x128xf32>
    %cst = arith.constant 0.000000e+00 : f32
    %7 = vector.broadcast %cst : f32 to vector<16x128xf32>
    %8 = arith.maximumf %6, %7 : vector<16x128xf32>
    %c0_5 = arith.constant 0 : index
    %c0_6 = arith.constant 0 : index
    %9 = vector.load %arg4[%c0_5, %c0_6] : memref<16x128xf32, #tpu.memory_space<vmem>>, vector<16x128xf32>
    tpu.vector_store %arg4[%c0_5, %c0_6], %8 {strides = array<i32>} : memref<16x128xf32, #tpu.memory_space<vmem>>, vector<16x128xf32>,
    return
  }
  func.func @transform_0(%arg0: i32) -> (i32, i32) {
    %c0_i32 = arith.constant 0 : i32
    %c0_i32_0 = arith.constant 0 : i32
    return %arg0, %c0_i32 : i32, i32
  }
  func.func @transform_1(%arg0: i32) -> (i32, i32) {
    %c0_i32 = arith.constant 0 : i32
    %c0_i32_0 = arith.constant 0 : i32
    %c0_i32_1 = arith.constant 0 : i32
    return %c0_i32, %c0_i32_0 : i32, i32
  }
  func.func @transform_2(%arg0: i32) -> (i32, i32) {
    %c0_i32 = arith.constant 0 : i32
    %c0_i32_0 = arith.constant 0 : i32
    %c0_i32_1 = arith.constant 0 : i32
    return %c0_i32, %c0_i32_0 : i32, i32
  }
  func.func @transform_3(%arg0: i32) -> (i32, i32) {
    %c0_i32 = arith.constant 0 : i32
    %c0_i32_0 = arith.constant 0 : i32
    return %arg0, %c0_i32 : i32, i32
  }
}

module attributes {stable_mosaic.version = 11 : i64} {
  func.func @_matmul_stats_kernel(%arg0: i32, %arg1: memref<128x144xbf16, #tpu.memory_space<vmem>>, %arg2: memref<144x16xbf16, #tpu.memory_space<vmem>>, %arg3: memref<128x16xf32, #tpu.memory_space<vmem>>, %arg4: memref<1x1x16xf32, #tpu.memory_space<vmem>>, %arg5: memref<1x1x16xf32, #tpu.memory_space<vmem>>) attributes {dimension_semantics = [#tpu.dimension_semantics<parallel>], iteration_bounds = array<i64: 1>, scalar_prefetch = 0 : i64, scratch_operands = 0 : i64, tpu.core_type = #tpu.core_type<tc>, window_params = [{transform_indices = @transform_0, window_bounds = array<i64: 128, 144>}, {pipeline_mode = #tpu.pipeline_mode<synchronous>, transform_indices = @transform_1, window_bounds = array<i64: 144, 16>}, {transform_indices = @transform_2, window_bounds = array<i64: 128, 16>}, {transform_indices = @transform_3, window_bounds = array<i64: 1, 1, 16>}, {transform_indices = @transform_4, window_bounds = array<i64: 1, 1, 16>}]} {
    %c0 = arith.constant 0 : index
    %c0_0 = arith.constant 0 : index
    %0 = vector.load %arg1[%c0, %c0_0] : memref<128x144xbf16, #tpu.memory_space<vmem>>, vector<128x144xbf16>
    %c0_1 = arith.constant 0 : index
    %c0_2 = arith.constant 0 : index
    %1 = vector.load %arg2[%c0_1, %c0_2] : memref<144x16xbf16, #tpu.memory_space<vmem>>, vector<144x16xbf16>
    %cst = arith.constant dense<0.000000e+00> : vector<128x16xf32>
    %2 = tpu.matmul %0, %1, %cst {dimension_numbers = #tpu.dot_dimension_numbers<[1], [0], [0], [1], [0, 0, 1, 1], [], []>} : vector<128x144xbf16>, vector<144x16xbf16>, vector<128x16xf32> -> vector<128x16xf32>
    %c0_3 = arith.constant 0 : index
    %c0_4 = arith.constant 0 : index
    %3 = vector.load %arg3[%c0_3, %c0_4] : memref<128x16xf32, #tpu.memory_space<vmem>>, vector<128x16xf32>
    tpu.vector_store %arg3[%c0_3, %c0_4], %2 {strides = array<i32>} : memref<128x16xf32, #tpu.memory_space<vmem>>, vector<128x16xf32>,
    %cst_5 = arith.constant dense<0.000000e+00> : vector<16xf32>
    %4 = vector.multi_reduction <add>, %2, %cst_5 [0] : vector<128x16xf32> to vector<16xf32>
    %5 = vector.shape_cast %4 : vector<16xf32> to vector<1x16xf32>
    %c0_6 = arith.constant 0 : index
    %c0_7 = arith.constant 0 : index
    %c0_8 = arith.constant 0 : index
    %6 = vector.load %arg4[%c0_6, %c0_7, %c0_8] : memref<1x1x16xf32, #tpu.memory_space<vmem>>, vector<1x1x16xf32>
    %7 = vector.shape_cast %6 : vector<1x1x16xf32> to vector<1x16xf32>
    %8 = vector.shape_cast %5 : vector<1x16xf32> to vector<1x1x16xf32>
    tpu.vector_store %arg4[%c0_6, %c0_7, %c0_8], %8 {strides = array<i32>} : memref<1x1x16xf32, #tpu.memory_space<vmem>>, vector<1x1x16xf32>,
    %9 = arith.mulf %2, %2 : vector<128x16xf32>
    %cst_9 = arith.constant dense<0.000000e+00> : vector<16xf32>
    %10 = vector.multi_reduction <add>, %9, %cst_9 [0] : vector<128x16xf32> to vector<16xf32>
    %11 = vector.shape_cast %10 : vector<16xf32> to vector<1x16xf32>
    %c0_10 = arith.constant 0 : index
    %c0_11 = arith.constant 0 : index
    %c0_12 = arith.constant 0 : index
    %12 = vector.load %arg5[%c0_10, %c0_11, %c0_12] : memref<1x1x16xf32, #tpu.memory_space<vmem>>, vector<1x1x16xf32>
    %13 = vector.shape_cast %12 : vector<1x1x16xf32> to vector<1x16xf32>
    %14 = vector.shape_cast %11 : vector<1x16xf32> to vector<1x1x16xf32>
    tpu.vector_store %arg5[%c0_10, %c0_11, %c0_12], %14 {strides = array<i32>} : memref<1x1x16xf32, #tpu.memory_space<vmem>>, vector<1x1x16xf32>,
    return
  }
  func.func @transform_0(%arg0: i32) -> (i32, i32) {
    %c0_i32 = arith.constant 0 : i32
    %c0_i32_0 = arith.constant 0 : i32
    return %arg0, %c0_i32 : i32, i32
  }
  func.func @transform_1(%arg0: i32) -> (i32, i32) {
    %c0_i32 = arith.constant 0 : i32
    %c0_i32_0 = arith.constant 0 : i32
    %c0_i32_1 = arith.constant 0 : i32
    return %c0_i32, %c0_i32_0 : i32, i32
  }
  func.func @transform_2(%arg0: i32) -> (i32, i32) {
    %c0_i32 = arith.constant 0 : i32
    %c0_i32_0 = arith.constant 0 : i32
    return %arg0, %c0_i32 : i32, i32
  }
  func.func @transform_3(%arg0: i32) -> (i32, i32, i32) {
    %c0_i32 = arith.constant 0 : i32
    %c0_i32_0 = arith.constant 0 : i32
    %c0_i32_1 = arith.constant 0 : i32
    return %arg0, %c0_i32, %c0_i32_0 : i32, i32, i32
  }
  func.func @transform_4(%arg0: i32) -> (i32, i32, i32) {
    %c0_i32 = arith.constant 0 : i32
    %c0_i32_0 = arith.constant 0 : i32
    %c0_i32_1 = arith.constant 0 : i32
    return %arg0, %c0_i32, %c0_i32_0 : i32, i32, i32
  }
}

module attributes {stable_mosaic.version = 11 : i64} {
  func.func @_matmul_kernel(%arg0: i32, %arg1: memref<128x8xbf16, #tpu.memory_space<vmem>>, %arg2: memref<8x16xbf16, #tpu.memory_space<vmem>>, %arg3: memref<128x16xf32, #tpu.memory_space<vmem>>) attributes {dimension_semantics = [#tpu.dimension_semantics<parallel>], iteration_bounds = array<i64: 1>, scalar_prefetch = 0 : i64, scratch_operands = 0 : i64, tpu.core_type = #tpu.core_type<tc>, window_params = [{transform_indices = @transform_0, window_bounds = array<i64: 128, 8>}, {pipeline_mode = #tpu.pipeline_mode<synchronous>, transform_indices = @transform_1, window_bounds = array<i64: 8, 16>}, {transform_indices = @transform_2, window_bounds = array<i64: 128, 16>}]} {
    %c0 = arith.constant 0 : index
    %c0_0 = arith.constant 0 : index
    %0 = vector.load %arg1[%c0, %c0_0] : memref<128x8xbf16, #tpu.memory_space<vmem>>, vector<128x8xbf16>
    %c0_1 = arith.constant 0 : index
    %c0_2 = arith.constant 0 : index
    %1 = vector.load %arg2[%c0_1, %c0_2] : memref<8x16xbf16, #tpu.memory_space<vmem>>, vector<8x16xbf16>
    %cst = arith.constant dense<0.000000e+00> : vector<128x16xf32>
    %2 = tpu.matmul %0, %1, %cst {dimension_numbers = #tpu.dot_dimension_numbers<[1], [0], [0], [1], [0, 0, 1, 1], [], []>} : vector<128x8xbf16>, vector<8x16xbf16>, vector<128x16xf32> -> vector<128x16xf32>
    %c0_3 = arith.constant 0 : index
    %c0_4 = arith.constant 0 : index
    %3 = vector.load %arg3[%c0_3, %c0_4] : memref<128x16xf32, #tpu.memory_space<vmem>>, vector<128x16xf32>
    tpu.vector_store %arg3[%c0_3, %c0_4], %2 {strides = array<i32>} : memref<128x16xf32, #tpu.memory_space<vmem>>, vector<128x16xf32>,
    return
  }
  func.func @transform_0(%arg0: i32) -> (i32, i32) {
    %c0_i32 = arith.constant 0 : i32
    %c0_i32_0 = arith.constant 0 : i32
    return %arg0, %c0_i32 : i32, i32
  }
  func.func @transform_1(%arg0: i32) -> (i32, i32) {
    %c0_i32 = arith.constant 0 : i32
    %c0_i32_0 = arith.constant 0 : i32
    %c0_i32_1 = arith.constant 0 : i32
    return %c0_i32, %c0_i32_0 : i32, i32
  }
  func.func @transform_2(%arg0: i32) -> (i32, i32) {
    %c0_i32 = arith.constant 0 : i32
    %c0_i32_0 = arith.constant 0 : i32
    return %arg0, %c0_i32 : i32, i32
  }
}

module attributes {stable_mosaic.version = 11 : i64} {
  func.func @_affine_res_kernel(%arg0: i32, %arg1: memref<16x128xf32, #tpu.memory_space<vmem>>, %arg2: memref<1x128xf32, #tpu.memory_space<vmem>>, %arg3: memref<1x128xf32, #tpu.memory_space<vmem>>, %arg4: memref<16x128xf32, #tpu.memory_space<vmem>>, %arg5: memref<16x128xf32, #tpu.memory_space<vmem>>) attributes {dimension_semantics = [#tpu.dimension_semantics<parallel>], iteration_bounds = array<i64: 1>, scalar_prefetch = 0 : i64, scratch_operands = 0 : i64, tpu.core_type = #tpu.core_type<tc>, window_params = [{transform_indices = @transform_0, window_bounds = array<i64: 16, 128>}, {pipeline_mode = #tpu.pipeline_mode<synchronous>, transform_indices = @transform_1, window_bounds = array<i64: 1, 128>}, {pipeline_mode = #tpu.pipeline_mode<synchronous>, transform_indices = @transform_2, window_bounds = array<i64: 1, 128>}, {transform_indices = @transform_3, window_bounds = array<i64: 16, 128>}, {transform_indices = @transform_4, window_bounds = array<i64: 16, 128>}]} {
    %c0 = arith.constant 0 : index
    %c0_0 = arith.constant 0 : index
    %0 = vector.load %arg1[%c0, %c0_0] : memref<16x128xf32, #tpu.memory_space<vmem>>, vector<16x128xf32>
    %c0_1 = arith.constant 0 : index
    %c0_2 = arith.constant 0 : index
    %1 = vector.load %arg2[%c0_1, %c0_2] : memref<1x128xf32, #tpu.memory_space<vmem>>, vector<1x128xf32>
    %2 = vector.broadcast %1 : vector<1x128xf32> to vector<16x128xf32>
    %3 = arith.mulf %0, %2 : vector<16x128xf32>
    %c0_3 = arith.constant 0 : index
    %c0_4 = arith.constant 0 : index
    %4 = vector.load %arg3[%c0_3, %c0_4] : memref<1x128xf32, #tpu.memory_space<vmem>>, vector<1x128xf32>
    %5 = vector.broadcast %4 : vector<1x128xf32> to vector<16x128xf32>
    %6 = arith.addf %3, %5 : vector<16x128xf32>
    %c0_5 = arith.constant 0 : index
    %c0_6 = arith.constant 0 : index
    %7 = vector.load %arg4[%c0_5, %c0_6] : memref<16x128xf32, #tpu.memory_space<vmem>>, vector<16x128xf32>
    %8 = arith.addf %6, %7 : vector<16x128xf32>
    %cst = arith.constant 0.000000e+00 : f32
    %9 = vector.broadcast %cst : f32 to vector<16x128xf32>
    %10 = arith.maximumf %8, %9 : vector<16x128xf32>
    %c0_7 = arith.constant 0 : index
    %c0_8 = arith.constant 0 : index
    %11 = vector.load %arg5[%c0_7, %c0_8] : memref<16x128xf32, #tpu.memory_space<vmem>>, vector<16x128xf32>
    tpu.vector_store %arg5[%c0_7, %c0_8], %10 {strides = array<i32>} : memref<16x128xf32, #tpu.memory_space<vmem>>, vector<16x128xf32>,
    return
  }
  func.func @transform_0(%arg0: i32) -> (i32, i32) {
    %c0_i32 = arith.constant 0 : i32
    %c0_i32_0 = arith.constant 0 : i32
    return %arg0, %c0_i32 : i32, i32
  }
  func.func @transform_1(%arg0: i32) -> (i32, i32) {
    %c0_i32 = arith.constant 0 : i32
    %c0_i32_0 = arith.constant 0 : i32
    %c0_i32_1 = arith.constant 0 : i32
    return %c0_i32, %c0_i32_0 : i32, i32
  }
  func.func @transform_2(%arg0: i32) -> (i32, i32) {
    %c0_i32 = arith.constant 0 : i32
    %c0_i32_0 = arith.constant 0 : i32
    %c0_i32_1 = arith.constant 0 : i32
    return %c0_i32, %c0_i32_0 : i32, i32
  }
  func.func @transform_3(%arg0: i32) -> (i32, i32) {
    %c0_i32 = arith.constant 0 : i32
    %c0_i32_0 = arith.constant 0 : i32
    return %arg0, %c0_i32 : i32, i32
  }
  func.func @transform_4(%arg0: i32) -> (i32, i32) {
    %c0_i32 = arith.constant 0 : i32
    %c0_i32_0 = arith.constant 0 : i32
    return %arg0, %c0_i32 : i32, i32
  }
}

module attributes {stable_mosaic.version = 11 : i64} {
  func.func @_matmul_stats_kernel(%arg0: i32, %arg1: memref<32x144xbf16, #tpu.memory_space<vmem>>, %arg2: memref<144x32xbf16, #tpu.memory_space<vmem>>, %arg3: memref<32x32xf32, #tpu.memory_space<vmem>>, %arg4: memref<1x1x32xf32, #tpu.memory_space<vmem>>, %arg5: memref<1x1x32xf32, #tpu.memory_space<vmem>>) attributes {dimension_semantics = [#tpu.dimension_semantics<parallel>], iteration_bounds = array<i64: 1>, scalar_prefetch = 0 : i64, scratch_operands = 0 : i64, tpu.core_type = #tpu.core_type<tc>, window_params = [{transform_indices = @transform_0, window_bounds = array<i64: 32, 144>}, {pipeline_mode = #tpu.pipeline_mode<synchronous>, transform_indices = @transform_1, window_bounds = array<i64: 144, 32>}, {transform_indices = @transform_2, window_bounds = array<i64: 32, 32>}, {transform_indices = @transform_3, window_bounds = array<i64: 1, 1, 32>}, {transform_indices = @transform_4, window_bounds = array<i64: 1, 1, 32>}]} {
    %c0 = arith.constant 0 : index
    %c0_0 = arith.constant 0 : index
    %0 = vector.load %arg1[%c0, %c0_0] : memref<32x144xbf16, #tpu.memory_space<vmem>>, vector<32x144xbf16>
    %c0_1 = arith.constant 0 : index
    %c0_2 = arith.constant 0 : index
    %1 = vector.load %arg2[%c0_1, %c0_2] : memref<144x32xbf16, #tpu.memory_space<vmem>>, vector<144x32xbf16>
    %cst = arith.constant dense<0.000000e+00> : vector<32x32xf32>
    %2 = tpu.matmul %0, %1, %cst {dimension_numbers = #tpu.dot_dimension_numbers<[1], [0], [0], [1], [0, 0, 1, 1], [], []>} : vector<32x144xbf16>, vector<144x32xbf16>, vector<32x32xf32> -> vector<32x32xf32>
    %c0_3 = arith.constant 0 : index
    %c0_4 = arith.constant 0 : index
    %3 = vector.load %arg3[%c0_3, %c0_4] : memref<32x32xf32, #tpu.memory_space<vmem>>, vector<32x32xf32>
    tpu.vector_store %arg3[%c0_3, %c0_4], %2 {strides = array<i32>} : memref<32x32xf32, #tpu.memory_space<vmem>>, vector<32x32xf32>,
    %cst_5 = arith.constant dense<0.000000e+00> : vector<32xf32>
    %4 = vector.multi_reduction <add>, %2, %cst_5 [0] : vector<32x32xf32> to vector<32xf32>
    %5 = vector.shape_cast %4 : vector<32xf32> to vector<1x32xf32>
    %c0_6 = arith.constant 0 : index
    %c0_7 = arith.constant 0 : index
    %c0_8 = arith.constant 0 : index
    %6 = vector.load %arg4[%c0_6, %c0_7, %c0_8] : memref<1x1x32xf32, #tpu.memory_space<vmem>>, vector<1x1x32xf32>
    %7 = vector.shape_cast %6 : vector<1x1x32xf32> to vector<1x32xf32>
    %8 = vector.shape_cast %5 : vector<1x32xf32> to vector<1x1x32xf32>
    tpu.vector_store %arg4[%c0_6, %c0_7, %c0_8], %8 {strides = array<i32>} : memref<1x1x32xf32, #tpu.memory_space<vmem>>, vector<1x1x32xf32>,
    %9 = arith.mulf %2, %2 : vector<32x32xf32>
    %cst_9 = arith.constant dense<0.000000e+00> : vector<32xf32>
    %10 = vector.multi_reduction <add>, %9, %cst_9 [0] : vector<32x32xf32> to vector<32xf32>
    %11 = vector.shape_cast %10 : vector<32xf32> to vector<1x32xf32>
    %c0_10 = arith.constant 0 : index
    %c0_11 = arith.constant 0 : index
    %c0_12 = arith.constant 0 : index
    %12 = vector.load %arg5[%c0_10, %c0_11, %c0_12] : memref<1x1x32xf32, #tpu.memory_space<vmem>>, vector<1x1x32xf32>
    %13 = vector.shape_cast %12 : vector<1x1x32xf32> to vector<1x32xf32>
    %14 = vector.shape_cast %11 : vector<1x32xf32> to vector<1x1x32xf32>
    tpu.vector_store %arg5[%c0_10, %c0_11, %c0_12], %14 {strides = array<i32>} : memref<1x1x32xf32, #tpu.memory_space<vmem>>, vector<1x1x32xf32>,
    return
  }
  func.func @transform_0(%arg0: i32) -> (i32, i32) {
    %c0_i32 = arith.constant 0 : i32
    %c0_i32_0 = arith.constant 0 : i32
    return %arg0, %c0_i32 : i32, i32
  }
  func.func @transform_1(%arg0: i32) -> (i32, i32) {
    %c0_i32 = arith.constant 0 : i32
    %c0_i32_0 = arith.constant 0 : i32
    %c0_i32_1 = arith.constant 0 : i32
    return %c0_i32, %c0_i32_0 : i32, i32
  }
  func.func @transform_2(%arg0: i32) -> (i32, i32) {
    %c0_i32 = arith.constant 0 : i32
    %c0_i32_0 = arith.constant 0 : i32
    return %arg0, %c0_i32 : i32, i32
  }
  func.func @transform_3(%arg0: i32) -> (i32, i32, i32) {
    %c0_i32 = arith.constant 0 : i32
    %c0_i32_0 = arith.constant 0 : i32
    %c0_i32_1 = arith.constant 0 : i32
    return %arg0, %c0_i32, %c0_i32_0 : i32, i32, i32
  }
  func.func @transform_4(%arg0: i32) -> (i32, i32, i32) {
    %c0_i32 = arith.constant 0 : i32
    %c0_i32_0 = arith.constant 0 : i32
    %c0_i32_1 = arith.constant 0 : i32
    return %arg0, %c0_i32, %c0_i32_0 : i32, i32, i32
  }
}

module attributes {stable_mosaic.version = 11 : i64} {
  func.func @_affine_kernel(%arg0: i32, %arg1: memref<8x128xf32, #tpu.memory_space<vmem>>, %arg2: memref<1x128xf32, #tpu.memory_space<vmem>>, %arg3: memref<1x128xf32, #tpu.memory_space<vmem>>, %arg4: memref<8x128xf32, #tpu.memory_space<vmem>>) attributes {dimension_semantics = [#tpu.dimension_semantics<parallel>], iteration_bounds = array<i64: 1>, scalar_prefetch = 0 : i64, scratch_operands = 0 : i64, tpu.core_type = #tpu.core_type<tc>, window_params = [{transform_indices = @transform_0, window_bounds = array<i64: 8, 128>}, {pipeline_mode = #tpu.pipeline_mode<synchronous>, transform_indices = @transform_1, window_bounds = array<i64: 1, 128>}, {pipeline_mode = #tpu.pipeline_mode<synchronous>, transform_indices = @transform_2, window_bounds = array<i64: 1, 128>}, {transform_indices = @transform_3, window_bounds = array<i64: 8, 128>}]} {
    %c0 = arith.constant 0 : index
    %c0_0 = arith.constant 0 : index
    %0 = vector.load %arg1[%c0, %c0_0] : memref<8x128xf32, #tpu.memory_space<vmem>>, vector<8x128xf32>
    %c0_1 = arith.constant 0 : index
    %c0_2 = arith.constant 0 : index
    %1 = vector.load %arg2[%c0_1, %c0_2] : memref<1x128xf32, #tpu.memory_space<vmem>>, vector<1x128xf32>
    %2 = vector.broadcast %1 : vector<1x128xf32> to vector<8x128xf32>
    %3 = arith.mulf %0, %2 : vector<8x128xf32>
    %c0_3 = arith.constant 0 : index
    %c0_4 = arith.constant 0 : index
    %4 = vector.load %arg3[%c0_3, %c0_4] : memref<1x128xf32, #tpu.memory_space<vmem>>, vector<1x128xf32>
    %5 = vector.broadcast %4 : vector<1x128xf32> to vector<8x128xf32>
    %6 = arith.addf %3, %5 : vector<8x128xf32>
    %cst = arith.constant 0.000000e+00 : f32
    %7 = vector.broadcast %cst : f32 to vector<8x128xf32>
    %8 = arith.maximumf %6, %7 : vector<8x128xf32>
    %c0_5 = arith.constant 0 : index
    %c0_6 = arith.constant 0 : index
    %9 = vector.load %arg4[%c0_5, %c0_6] : memref<8x128xf32, #tpu.memory_space<vmem>>, vector<8x128xf32>
    tpu.vector_store %arg4[%c0_5, %c0_6], %8 {strides = array<i32>} : memref<8x128xf32, #tpu.memory_space<vmem>>, vector<8x128xf32>,
    return
  }
  func.func @transform_0(%arg0: i32) -> (i32, i32) {
    %c0_i32 = arith.constant 0 : i32
    %c0_i32_0 = arith.constant 0 : i32
    return %arg0, %c0_i32 : i32, i32
  }
  func.func @transform_1(%arg0: i32) -> (i32, i32) {
    %c0_i32 = arith.constant 0 : i32
    %c0_i32_0 = arith.constant 0 : i32
    %c0_i32_1 = arith.constant 0 : i32
    return %c0_i32, %c0_i32_0 : i32, i32
  }
  func.func @transform_2(%arg0: i32) -> (i32, i32) {
    %c0_i32 = arith.constant 0 : i32
    %c0_i32_0 = arith.constant 0 : i32
    %c0_i32_1 = arith.constant 0 : i32
    return %c0_i32, %c0_i32_0 : i32, i32
  }
  func.func @transform_3(%arg0: i32) -> (i32, i32) {
    %c0_i32 = arith.constant 0 : i32
    %c0_i32_0 = arith.constant 0 : i32
    return %arg0, %c0_i32 : i32, i32
  }
}

module attributes {stable_mosaic.version = 11 : i64} {
  func.func @_matmul_stats_kernel(%arg0: i32, %arg1: memref<32x288xbf16, #tpu.memory_space<vmem>>, %arg2: memref<288x32xbf16, #tpu.memory_space<vmem>>, %arg3: memref<32x32xf32, #tpu.memory_space<vmem>>, %arg4: memref<1x1x32xf32, #tpu.memory_space<vmem>>, %arg5: memref<1x1x32xf32, #tpu.memory_space<vmem>>) attributes {dimension_semantics = [#tpu.dimension_semantics<parallel>], iteration_bounds = array<i64: 1>, scalar_prefetch = 0 : i64, scratch_operands = 0 : i64, tpu.core_type = #tpu.core_type<tc>, window_params = [{transform_indices = @transform_0, window_bounds = array<i64: 32, 288>}, {pipeline_mode = #tpu.pipeline_mode<synchronous>, transform_indices = @transform_1, window_bounds = array<i64: 288, 32>}, {transform_indices = @transform_2, window_bounds = array<i64: 32, 32>}, {transform_indices = @transform_3, window_bounds = array<i64: 1, 1, 32>}, {transform_indices = @transform_4, window_bounds = array<i64: 1, 1, 32>}]} {
    %c0 = arith.constant 0 : index
    %c0_0 = arith.constant 0 : index
    %0 = vector.load %arg1[%c0, %c0_0] : memref<32x288xbf16, #tpu.memory_space<vmem>>, vector<32x288xbf16>
    %c0_1 = arith.constant 0 : index
    %c0_2 = arith.constant 0 : index
    %1 = vector.load %arg2[%c0_1, %c0_2] : memref<288x32xbf16, #tpu.memory_space<vmem>>, vector<288x32xbf16>
    %cst = arith.constant dense<0.000000e+00> : vector<32x32xf32>
    %2 = tpu.matmul %0, %1, %cst {dimension_numbers = #tpu.dot_dimension_numbers<[1], [0], [0], [1], [0, 0, 1, 1], [], []>} : vector<32x288xbf16>, vector<288x32xbf16>, vector<32x32xf32> -> vector<32x32xf32>
    %c0_3 = arith.constant 0 : index
    %c0_4 = arith.constant 0 : index
    %3 = vector.load %arg3[%c0_3, %c0_4] : memref<32x32xf32, #tpu.memory_space<vmem>>, vector<32x32xf32>
    tpu.vector_store %arg3[%c0_3, %c0_4], %2 {strides = array<i32>} : memref<32x32xf32, #tpu.memory_space<vmem>>, vector<32x32xf32>,
    %cst_5 = arith.constant dense<0.000000e+00> : vector<32xf32>
    %4 = vector.multi_reduction <add>, %2, %cst_5 [0] : vector<32x32xf32> to vector<32xf32>
    %5 = vector.shape_cast %4 : vector<32xf32> to vector<1x32xf32>
    %c0_6 = arith.constant 0 : index
    %c0_7 = arith.constant 0 : index
    %c0_8 = arith.constant 0 : index
    %6 = vector.load %arg4[%c0_6, %c0_7, %c0_8] : memref<1x1x32xf32, #tpu.memory_space<vmem>>, vector<1x1x32xf32>
    %7 = vector.shape_cast %6 : vector<1x1x32xf32> to vector<1x32xf32>
    %8 = vector.shape_cast %5 : vector<1x32xf32> to vector<1x1x32xf32>
    tpu.vector_store %arg4[%c0_6, %c0_7, %c0_8], %8 {strides = array<i32>} : memref<1x1x32xf32, #tpu.memory_space<vmem>>, vector<1x1x32xf32>,
    %9 = arith.mulf %2, %2 : vector<32x32xf32>
    %cst_9 = arith.constant dense<0.000000e+00> : vector<32xf32>
    %10 = vector.multi_reduction <add>, %9, %cst_9 [0] : vector<32x32xf32> to vector<32xf32>
    %11 = vector.shape_cast %10 : vector<32xf32> to vector<1x32xf32>
    %c0_10 = arith.constant 0 : index
    %c0_11 = arith.constant 0 : index
    %c0_12 = arith.constant 0 : index
    %12 = vector.load %arg5[%c0_10, %c0_11, %c0_12] : memref<1x1x32xf32, #tpu.memory_space<vmem>>, vector<1x1x32xf32>
    %13 = vector.shape_cast %12 : vector<1x1x32xf32> to vector<1x32xf32>
    %14 = vector.shape_cast %11 : vector<1x32xf32> to vector<1x1x32xf32>
    tpu.vector_store %arg5[%c0_10, %c0_11, %c0_12], %14 {strides = array<i32>} : memref<1x1x32xf32, #tpu.memory_space<vmem>>, vector<1x1x32xf32>,
    return
  }
  func.func @transform_0(%arg0: i32) -> (i32, i32) {
    %c0_i32 = arith.constant 0 : i32
    %c0_i32_0 = arith.constant 0 : i32
    return %arg0, %c0_i32 : i32, i32
  }
  func.func @transform_1(%arg0: i32) -> (i32, i32) {
    %c0_i32 = arith.constant 0 : i32
    %c0_i32_0 = arith.constant 0 : i32
    %c0_i32_1 = arith.constant 0 : i32
    return %c0_i32, %c0_i32_0 : i32, i32
  }
  func.func @transform_2(%arg0: i32) -> (i32, i32) {
    %c0_i32 = arith.constant 0 : i32
    %c0_i32_0 = arith.constant 0 : i32
    return %arg0, %c0_i32 : i32, i32
  }
  func.func @transform_3(%arg0: i32) -> (i32, i32, i32) {
    %c0_i32 = arith.constant 0 : i32
    %c0_i32_0 = arith.constant 0 : i32
    %c0_i32_1 = arith.constant 0 : i32
    return %arg0, %c0_i32, %c0_i32_0 : i32, i32, i32
  }
  func.func @transform_4(%arg0: i32) -> (i32, i32, i32) {
    %c0_i32 = arith.constant 0 : i32
    %c0_i32_0 = arith.constant 0 : i32
    %c0_i32_1 = arith.constant 0 : i32
    return %arg0, %c0_i32, %c0_i32_0 : i32, i32, i32
  }
}

module attributes {stable_mosaic.version = 11 : i64} {
  func.func @_affine_res_kernel(%arg0: i32, %arg1: memref<8x128xf32, #tpu.memory_space<vmem>>, %arg2: memref<1x128xf32, #tpu.memory_space<vmem>>, %arg3: memref<1x128xf32, #tpu.memory_space<vmem>>, %arg4: memref<8x128xf32, #tpu.memory_space<vmem>>, %arg5: memref<8x128xf32, #tpu.memory_space<vmem>>) attributes {dimension_semantics = [#tpu.dimension_semantics<parallel>], iteration_bounds = array<i64: 1>, scalar_prefetch = 0 : i64, scratch_operands = 0 : i64, tpu.core_type = #tpu.core_type<tc>, window_params = [{transform_indices = @transform_0, window_bounds = array<i64: 8, 128>}, {pipeline_mode = #tpu.pipeline_mode<synchronous>, transform_indices = @transform_1, window_bounds = array<i64: 1, 128>}, {pipeline_mode = #tpu.pipeline_mode<synchronous>, transform_indices = @transform_2, window_bounds = array<i64: 1, 128>}, {transform_indices = @transform_3, window_bounds = array<i64: 8, 128>}, {transform_indices = @transform_4, window_bounds = array<i64: 8, 128>}]} {
    %c0 = arith.constant 0 : index
    %c0_0 = arith.constant 0 : index
    %0 = vector.load %arg1[%c0, %c0_0] : memref<8x128xf32, #tpu.memory_space<vmem>>, vector<8x128xf32>
    %c0_1 = arith.constant 0 : index
    %c0_2 = arith.constant 0 : index
    %1 = vector.load %arg2[%c0_1, %c0_2] : memref<1x128xf32, #tpu.memory_space<vmem>>, vector<1x128xf32>
    %2 = vector.broadcast %1 : vector<1x128xf32> to vector<8x128xf32>
    %3 = arith.mulf %0, %2 : vector<8x128xf32>
    %c0_3 = arith.constant 0 : index
    %c0_4 = arith.constant 0 : index
    %4 = vector.load %arg3[%c0_3, %c0_4] : memref<1x128xf32, #tpu.memory_space<vmem>>, vector<1x128xf32>
    %5 = vector.broadcast %4 : vector<1x128xf32> to vector<8x128xf32>
    %6 = arith.addf %3, %5 : vector<8x128xf32>
    %c0_5 = arith.constant 0 : index
    %c0_6 = arith.constant 0 : index
    %7 = vector.load %arg4[%c0_5, %c0_6] : memref<8x128xf32, #tpu.memory_space<vmem>>, vector<8x128xf32>
    %8 = arith.addf %6, %7 : vector<8x128xf32>
    %cst = arith.constant 0.000000e+00 : f32
    %9 = vector.broadcast %cst : f32 to vector<8x128xf32>
    %10 = arith.maximumf %8, %9 : vector<8x128xf32>
    %c0_7 = arith.constant 0 : index
    %c0_8 = arith.constant 0 : index
    %11 = vector.load %arg5[%c0_7, %c0_8] : memref<8x128xf32, #tpu.memory_space<vmem>>, vector<8x128xf32>
    tpu.vector_store %arg5[%c0_7, %c0_8], %10 {strides = array<i32>} : memref<8x128xf32, #tpu.memory_space<vmem>>, vector<8x128xf32>,
    return
  }
  func.func @transform_0(%arg0: i32) -> (i32, i32) {
    %c0_i32 = arith.constant 0 : i32
    %c0_i32_0 = arith.constant 0 : i32
    return %arg0, %c0_i32 : i32, i32
  }
  func.func @transform_1(%arg0: i32) -> (i32, i32) {
    %c0_i32 = arith.constant 0 : i32
    %c0_i32_0 = arith.constant 0 : i32
    %c0_i32_1 = arith.constant 0 : i32
    return %c0_i32, %c0_i32_0 : i32, i32
  }
  func.func @transform_2(%arg0: i32) -> (i32, i32) {
    %c0_i32 = arith.constant 0 : i32
    %c0_i32_0 = arith.constant 0 : i32
    %c0_i32_1 = arith.constant 0 : i32
    return %c0_i32, %c0_i32_0 : i32, i32
  }
  func.func @transform_3(%arg0: i32) -> (i32, i32) {
    %c0_i32 = arith.constant 0 : i32
    %c0_i32_0 = arith.constant 0 : i32
    return %arg0, %c0_i32 : i32, i32
  }
  func.func @transform_4(%arg0: i32) -> (i32, i32) {
    %c0_i32 = arith.constant 0 : i32
    %c0_i32_0 = arith.constant 0 : i32
    return %arg0, %c0_i32 : i32, i32
  }
}

module attributes {stable_mosaic.version = 11 : i64} {
  func.func @_avgpool_kernel(%arg0: memref<2x16x32xf32, #tpu.memory_space<vmem>>, %arg1: memref<2x32xf32, #tpu.memory_space<vmem>>) attributes {dimension_semantics = [], scalar_prefetch = 0 : i64, scratch_operands = 0 : i64, tpu.core_type = #tpu.core_type<tc>} {
    %c0 = arith.constant 0 : index
    %c0_0 = arith.constant 0 : index
    %c0_1 = arith.constant 0 : index
    %0 = vector.load %arg0[%c0, %c0_0, %c0_1] : memref<2x16x32xf32, #tpu.memory_space<vmem>>, vector<2x16x32xf32>
    %cst = arith.constant dense<0.000000e+00> : vector<2x32xf32>
    %1 = vector.multi_reduction <add>, %0, %cst [1] : vector<2x16x32xf32> to vector<2x32xf32>
    %cst_2 = arith.constant 1.600000e+01 : f32
    %2 = vector.broadcast %cst_2 : f32 to vector<2x32xf32>
    %3 = arith.divf %1, %2 : vector<2x32xf32>
    %c0_3 = arith.constant 0 : index
    %c0_4 = arith.constant 0 : index
    %4 = vector.load %arg1[%c0_3, %c0_4] : memref<2x32xf32, #tpu.memory_space<vmem>>, vector<2x32xf32>
    tpu.vector_store %arg1[%c0_3, %c0_4], %3 {strides = array<i32>} : memref<2x32xf32, #tpu.memory_space<vmem>>, vector<2x32xf32>,
    return
  }
}

module attributes {stable_mosaic.version = 11 : i64} {
  func.func @_matmul_kernel(%arg0: i32, %arg1: memref<32x16xbf16, #tpu.memory_space<vmem>>, %arg2: memref<16x32xbf16, #tpu.memory_space<vmem>>, %arg3: memref<32x32xf32, #tpu.memory_space<vmem>>) attributes {dimension_semantics = [#tpu.dimension_semantics<parallel>], iteration_bounds = array<i64: 1>, scalar_prefetch = 0 : i64, scratch_operands = 0 : i64, tpu.core_type = #tpu.core_type<tc>, window_params = [{transform_indices = @transform_0, window_bounds = array<i64: 32, 16>}, {pipeline_mode = #tpu.pipeline_mode<synchronous>, transform_indices = @transform_1, window_bounds = array<i64: 16, 32>}, {transform_indices = @transform_2, window_bounds = array<i64: 32, 32>}]} {
    %c0 = arith.constant 0 : index
    %c0_0 = arith.constant 0 : index
    %0 = vector.load %arg1[%c0, %c0_0] : memref<32x16xbf16, #tpu.memory_space<vmem>>, vector<32x16xbf16>
    %c0_1 = arith.constant 0 : index
    %c0_2 = arith.constant 0 : index
    %1 = vector.load %arg2[%c0_1, %c0_2] : memref<16x32xbf16, #tpu.memory_space<vmem>>, vector<16x32xbf16>
    %cst = arith.constant dense<0.000000e+00> : vector<32x32xf32>
    %2 = tpu.matmul %0, %1, %cst {dimension_numbers = #tpu.dot_dimension_numbers<[1], [0], [0], [1], [0, 0, 1, 1], [], []>} : vector<32x16xbf16>, vector<16x32xbf16>, vector<32x32xf32> -> vector<32x32xf32>
    %c0_3 = arith.constant 0 : index
    %c0_4 = arith.constant 0 : index
    %3 = vector.load %arg3[%c0_3, %c0_4] : memref<32x32xf32, #tpu.memory_space<vmem>>, vector<32x32xf32>
    tpu.vector_store %arg3[%c0_3, %c0_4], %2 {strides = array<i32>} : memref<32x32xf32, #tpu.memory_space<vmem>>, vector<32x32xf32>,
    return
  }
  func.func @transform_0(%arg0: i32) -> (i32, i32) {
    %c0_i32 = arith.constant 0 : i32
    %c0_i32_0 = arith.constant 0 : i32
    return %arg0, %c0_i32 : i32, i32
  }
  func.func @transform_1(%arg0: i32) -> (i32, i32) {
    %c0_i32 = arith.constant 0 : i32
    %c0_i32_0 = arith.constant 0 : i32
    %c0_i32_1 = arith.constant 0 : i32
    return %c0_i32, %c0_i32_0 : i32, i32
  }
  func.func @transform_2(%arg0: i32) -> (i32, i32) {
    %c0_i32 = arith.constant 0 : i32
    %c0_i32_0 = arith.constant 0 : i32
    return %arg0, %c0_i32 : i32, i32
  }
}

module attributes {stable_mosaic.version = 11 : i64} {
  func.func @_matmul_kernel(%arg0: i32, %arg1: memref<2x32xbf16, #tpu.memory_space<vmem>>, %arg2: memref<32x10xbf16, #tpu.memory_space<vmem>>, %arg3: memref<2x10xf32, #tpu.memory_space<vmem>>) attributes {dimension_semantics = [#tpu.dimension_semantics<parallel>], iteration_bounds = array<i64: 1>, scalar_prefetch = 0 : i64, scratch_operands = 0 : i64, tpu.core_type = #tpu.core_type<tc>, window_params = [{transform_indices = @transform_0, window_bounds = array<i64: 2, 32>}, {pipeline_mode = #tpu.pipeline_mode<synchronous>, transform_indices = @transform_1, window_bounds = array<i64: 32, 10>}, {transform_indices = @transform_2, window_bounds = array<i64: 2, 10>}]} {
    %c0 = arith.constant 0 : index
    %c0_0 = arith.constant 0 : index
    %0 = vector.load %arg1[%c0, %c0_0] : memref<2x32xbf16, #tpu.memory_space<vmem>>, vector<2x32xbf16>
    %c0_1 = arith.constant 0 : index
    %c0_2 = arith.constant 0 : index
    %1 = vector.load %arg2[%c0_1, %c0_2] : memref<32x10xbf16, #tpu.memory_space<vmem>>, vector<32x10xbf16>
    %cst = arith.constant dense<0.000000e+00> : vector<2x10xf32>
    %2 = tpu.matmul %0, %1, %cst {dimension_numbers = #tpu.dot_dimension_numbers<[1], [0], [0], [1], [0, 0, 1, 1], [], []>} : vector<2x32xbf16>, vector<32x10xbf16>, vector<2x10xf32> -> vector<2x10xf32>
    %c0_3 = arith.constant 0 : index
    %c0_4 = arith.constant 0 : index
    %3 = vector.load %arg3[%c0_3, %c0_4] : memref<2x10xf32, #tpu.memory_space<vmem>>, vector<2x10xf32>
    tpu.vector_store %arg3[%c0_3, %c0_4], %2 {strides = array<i32>} : memref<2x10xf32, #tpu.memory_space<vmem>>, vector<2x10xf32>,
    return
  }
  func.func @transform_0(%arg0: i32) -> (i32, i32) {
    %c0_i32 = arith.constant 0 : i32
    %c0_i32_0 = arith.constant 0 : i32
    return %arg0, %c0_i32 : i32, i32
  }
  func.func @transform_1(%arg0: i32) -> (i32, i32) {
    %c0_i32 = arith.constant 0 : i32
    %c0_i32_0 = arith.constant 0 : i32
    %c0_i32_1 = arith.constant 0 : i32
    return %c0_i32, %c0_i32_0 : i32, i32
  }
  func.func @transform_2(%arg0: i32) -> (i32, i32) {
    %c0_i32 = arith.constant 0 : i32
    %c0_i32_0 = arith.constant 0 : i32
    return %arg0, %c0_i32 : i32, i32
  }
}

</mosaic_0001>

<llo_original>
// kernel: tile.133
$region0: #{tile.133}
  #allocation0 [shape = 's32[1]{0}', space=sflag, size = 0x4, scoped, tag = 'scoped memory for tile.133']
  %s0 = inlined_call_operand.vmem [shape: f32[8], index: 0, kind: input, shape index: {}]
  %s1 = inlined_call_operand.vmem [shape: f32[16,8], index: 1, kind: output, shape index: {}]
  // Predicated region
  $region2: #{tile.133} parent=0 // pred_check
    _
  $region3: #{tile.133} parent=0 // pred_check_branch
    %3 = sbr.rel (0) target = $region5
  $region4: #{tile.133} parent=0 // pred_region
    _
  $region5: #{tile.133} parent=0 // pred_fallthru
    _
  %v4 = vld [vmem:[%s0] ss:$0 sm:$0xff]
  %5 = vst [vmem:[%s1] sm:$0xff] %v4
  %s6 = scalar_lea.vmem %s1, 8
  %7 = vst [vmem:[%s6] sm:$0xff] %v4

// kernel: tile.134
$region0: #{tile.134}
  %s0 = inlined_call_operand.vmem [shape: f32[16,8], index: 0, kind: input, shape index: {}]
  %s1 = inlined_call_operand.vmem [shape: f32[1,128], index: 1, kind: output, shape index: {}]
  $region1: #{tile.134} parent=0
    #allocation0 [shape = 'u8[4096]{0}', space=vmem, size = 0x1000, scoped, tag = 'scoped mem for output reshape']
    %v2 = vld [vmem:[%s0] sm:$0x1]
    %vm3 = vcmask 64512
    %4 = vst.msk [vmem:[#allocation0] sm:$0x1] %vm3, %v2
    %s5 = scalar_lea.vmem %s0, 15
    %v6 = vld [vmem:[%s5] sm:$0x1]
    %7 = vrot.lane.b32.xlu0 %v6, 120
    %v8 = vpop.permute.xlu0 %7
    %vm9 = vcmask 1048512
    %10 = vst.msk [vmem:[#allocation0] sm:$0x1] %vm9, %v8
    %s11 = scalar_lea.vmem %s0, 14
    %v12 = vld [vmem:[%s11] sm:$0x1]
    %13 = vrot.lane.b32.xlu0 %v12, 112
    %v14 = vpop.permute.xlu0 %13
    %vm15 = vcmask 982912
    %16 = vst.msk [vmem:[#allocation0] sm:$0x1] %vm15, %v14
    %s17 = scalar_lea.vmem %s0, 13
    %v18 = vld [vmem:[%s17] sm:$0x1]
    %19 = vrot.lane.b32.xlu0 %v18, 104
    %v20 = vpop.permute.xlu0 %19
    %vm21 = vcmask 917312
    %22 = vst.msk [vmem:[#allocation0] sm:$0x1] %vm21, %v20
    %s23 = scalar_lea.vmem %s0, 12
    %v24 = vld [vmem:[%s23] sm:$0x1]
    %25 = vrot.lane.b32.xlu0 %v24, 96
    %v26 = vpop.permute.xlu0 %25
    %vm27 = vcmask 851712
    %28 = vst.msk [vmem:[#allocation0] sm:$0x1] %vm27, %v26
    %s29 = scalar_lea.vmem %s0, 11
    %v30 = vld [vmem:[%s29] sm:$0x1]
    %31 = vrot.lane.b32.xlu0 %v30, 88
    %v32 = vpop.permute.xlu0 %31
    %vm33 = vcmask 786112
    %34 = vst.msk [vmem:[#allocation0] sm:$0x1] %vm33, %v32
    %s35 = scalar_lea.vmem %s0, 10
    %v36 = vld [vmem:[%s35] sm:$0x1]
    %37 = vrot.lane.b32.xlu0 %v36, 80
    %v38 = vpop.permute.xlu0 %37
    %vm39 = vcmask 720512
    %40 = vst.msk [vmem:[#allocation0] sm:$0x1] %vm39, %v38
    %s41 = scalar_lea.vmem %s0, 9
    %v42 = vld [vmem:[%s41] sm:$0x1]
    %43 = vrot.lane.b32.xlu0 %v42, 72
    %v44 = vpop.permute.xlu0 %43
    %vm45 = vcmask 654912
    %46 = vst.msk [vmem:[#allocation0] sm:$0x1] %vm45, %v44
    %s47 = scalar_lea.vmem %s0, 8
    %v48 = vld [vmem:[%s47] sm:$0x1]
    %49 = vrot.lane.b32.xlu0 %v48, 64
    %v50 = vpop.permute.xlu0 %49
    %vm51 = vcmask 589312
    %52 = vst.msk [vmem:[#allocation0] sm:$0x1] %vm51, %v50
    %s53 = scalar_lea.vmem %s0, 7
    %v54 = vld [vmem:[%s53] sm:$0x1]
    %55 = vrot.lane.b32.xlu0 %v54, 56
    %v56 = vpop.permute.xlu0 %55
    %vm57 = vcmask 523712
    %58 = vst.msk [vmem:[#allocation0] sm:$0x1] %vm57, %v56
    %s59 = scalar_lea.vmem %s0, 6
    %v60 = vld [vmem:[%s59] sm:$0x1]
    %61 = vrot.lane.b32.xlu0 %v60, 48
    %v62 = vpop.permute.xlu0 %61
    %vm63 = vcmask 458112
    %64 = vst.msk [vmem:[#allocation0] sm:$0x1] %vm63, %v62
    %s65 = scalar_lea.vmem %s0, 5
    %v66 = vld [vmem:[%s65] sm:$0x1]
    %67 = vrot.lane.b32.xlu0 %v66, 40
    %v68 = vpop.permute.xlu0 %67
    %vm69 = vcmask 392512
    %70 = vst.msk [vmem:[#allocation0] sm:$0x1] %vm69, %v68
    %s71 = scalar_lea.vmem %s0, 4
    %v72 = vld [vmem:[%s71] sm:$0x1]
    %73 = vrot.lane.b32.xlu0 %v72, 32
    %v74 = vpop.permute.xlu0 %73
    %vm75 = vcmask 326912
    %76 = vst.msk [vmem:[#allocation0] sm:$0x1] %vm75, %v74
    %s77 = scalar_lea.vmem %s0, 3
    %v78 = vld [vmem:[%s77] sm:$0x1]
    %79 = vrot.lane.b32.xlu0 %v78, 24
    %v80 = vpop.permute.xlu0 %79
    %vm81 = vcmask 261312
    %82 = vst.msk [vmem:[#allocation0] sm:$0x1] %vm81, %v80
    %s83 = scalar_lea.vmem %s0, 2
    %v84 = vld [vmem:[%s83] sm:$0x1]
    %85 = vrot.lane.b32.xlu0 %v84, 16
    %v86 = vpop.permute.xlu0 %85
    %vm87 = vcmask 195712
    %88 = vst.msk [vmem:[#allocation0] sm:$0x1] %vm87, %v86
    %s89 = scalar_lea.vmem %s0, 1
    %v90 = vld [vmem:[%s89] sm:$0x1]
    %91 = vrot.lane.b32.xlu0 %v90, 8
    %v92 = vpop.permute.xlu0 %91
    %vm93 = vcmask 130112
    %94 = vst.msk [vmem:[#allocation0] sm:$0x1] %vm93, %v92
    %s96 = sshll.u32 1, 1
    %s97 = ssub.s32 %s96, 1
    %v99 = vld [vmem:[#allocation0] sm:%s97]
    %s100 = sshll.u32 1, 1
    %s101 = ssub.s32 %s100, 1
    %102 = vst [vmem:[%s1] sm:%s101] %v99

// kernel: resnet_forward.31
$region0: #{resnet_forward.31}
  #allocation0 [shape = 'u32[]', space=smem, size = 0x4, offset = 0x4, fixed_abs, tag = 'smem constant byte address 0x4 - core index']
  #allocation1 [shape = 'u32[144,128]{1,0:T(1,128)}', space=vmem, size = 0x12000, scoped, tag = 'internal scratch']
  %s0 = inlined_call_operand.vmem [shape: f32[32,128], index: 0, kind: input, shape index: {}]
  %s1 = inlined_call_operand.vmem [shape: f32[1,128], index: 1, kind: input, shape index: {}]
  %s2 = inlined_call_operand.vmem [shape: f32[1,128], index: 2, kind: input, shape index: {}]
  %s3 = inlined_call_operand.vmem [shape: f32[32,128], index: 3, kind: output, shape index: {}]
  %s4 = sld [smem:[#allocation0]]
  $region22: #{resnet_forward.31} parent=0
    _
  %s6 = ssub.s32 1, %s4
  %s7 = scalar_select 0, %s6, %s4
  // Predicated region
  $region2: #{resnet_forward.31} parent=0 // pred_check
    _
  $region3: #{resnet_forward.31} parent=0 // pred_check_branch
    %9 = sbr.rel (0) target = $region5
  $region4: #{resnet_forward.31} parent=0 // pred_region
    _
  $region5: #{resnet_forward.31} parent=0 // pred_fallthru
    _
  // Predicated region
  $region6: #{resnet_forward.31} parent=0 // pred_check
    _
  $region7: #{resnet_forward.31} parent=0 // pred_check_branch
    %11 = sbr.rel (0) target = $region9
  $region8: #{resnet_forward.31} parent=0 // pred_region
    _
  $region9: #{resnet_forward.31} parent=0 // pred_fallthru
    _
  // Predicated region
  $region10: #{resnet_forward.31} parent=0 // pred_check
    _
  $region11: #{resnet_forward.31} parent=0 // pred_check_branch
    %13 = sbr.rel (0) target = $region13
  $region12: #{resnet_forward.31} parent=0 // pred_region
    _
  $region13: #{resnet_forward.31} parent=0 // pred_fallthru
    _
  %v14 = vld [vmem:[%s0] sm:$0xff]
  %v15 = vld [vmem:[%s0 + $0x8] sm:$0xff]
  %v16 = vld [vmem:[%s0 + $0x10] sm:$0xff]
  %v17 = vld [vmem:[%s0 + $0x18] sm:$0xff]
  %v18 = vld [vmem:[%s1] sm:$0x1]
  %v20 = vlaneseq
  %v21 = vshrl.u32 %v20, 7
  %v22 = vsub.s32 0, %v21
  %v23 = vrot.slane %v18, %v22
  %v25 = vmul.f32 %v14, %v23
  %v26 = vmul.f32 %v15, %v23
  %v27 = vmul.f32 %v16, %v23
  %v28 = vmul.f32 %v17, %v23
  %v29 = vld [vmem:[%s2] sm:$0x1]
  %v31 = vlaneseq
  %v32 = vshrl.u32 %v31, 7
  %v33 = vsub.s32 0, %v32
  %v34 = vrot.slane %v29, %v33
  %v36 = vadd.f32 %v25, %v34
  %v37 = vadd.f32 %v26, %v34
  %v38 = vadd.f32 %v27, %v34
  %v39 = vadd.f32 %v28, %v34
  %v40 = vmax.f32 %v36, 0.0
  %v41 = vmax.f32 %v37, 0.0
  %v42 = vmax.f32 %v38, 0.0
  %v43 = vmax.f32 %v39, 0.0
  %44 = vst [vmem:[%s3] sm:$0xff] %v40
  %45 = vst [vmem:[%s3 + $0x8] sm:$0xff] %v41
  %46 = vst [vmem:[%s3 + $0x10] sm:$0xff] %v42
  %47 = vst [vmem:[%s3 + $0x18] sm:$0xff] %v43
  // Predicated region
  $region14: #{resnet_forward.31} parent=0 // pred_check
    _
  $region15: #{resnet_forward.31} parent=0 // pred_check_branch
    %49 = sbr.rel (0) target = $region17
  $region16: #{resnet_forward.31} parent=0 // pred_region
    _
  $region17: #{resnet_forward.31} parent=0 // pred_fallthru
    _
  // Predicated region
  $region18: #{resnet_forward.31} parent=0 // pred_check
    _
  $region19: #{resnet_forward.31} parent=0 // pred_check_branch
    %51 = sbr.rel (0) target = $region21
  $region20: #{resnet_forward.31} parent=0 // pred_region
    _
  $region21: #{resnet_forward.31} parent=0 // pred_fallthru
    _

// kernel: resnet_forward.30
$region0: #{resnet_forward.30}
  #allocation0 [shape = 'u32[]', space=smem, size = 0x4, offset = 0x4, fixed_abs, tag = 'smem constant byte address 0x4 - core index']
  #allocation1 [shape = 'u32[144,128]{1,0:T(1,128)}', space=vmem, size = 0x12000, scoped, tag = 'internal scratch']
  %s0 = inlined_call_operand.vmem [shape: bf16[512,36], index: 0, kind: input, shape index: {}]
  %s1 = inlined_call_operand.vmem [shape: bf16[36,8], index: 1, kind: input, shape index: {}]
  %s2 = inlined_call_operand.vmem [shape: f32[512,8], index: 2, kind: output, shape index: {0}]
  %s3 = inlined_call_operand.vmem [shape: f32[2,1,8], index: 3, kind: output, shape index: {1}]
  %s4 = inlined_call_operand.vmem [shape: f32[2,1,8], index: 4, kind: output, shape index: {2}]
  %5 = xla_tuple %s2, %s3, %s4
  %s6 = sld [smem:[#allocation0]]
  $region57: #{resnet_forward.30} parent=0
    _
  %s8 = ssub.s32 1, %s6
  %s9 = scalar_select 0, %s8, %s6
  loop: start=0, step=1, limit=4
  $region2: #{resnet_forward.30} parent=0 // loop_pre_header
    _
  $region3: #{resnet_forward.30} parent=0 // loop_header
    %s11 = sphi 0, %s15
    %p12 = scmp.ge.s32.totalorder %s11, 4
    %s21 = sphi 0, %s23
    %s24 = sphi 0, %s21
    %s25 = sphi 0, %s24
    %s41 = sphi 0, %s25
    %s45 = sphi 0, %s45
    %s47 = sphi 0, %s45
    %s48 = sphi 0, %s47
    %s62 = sphi 0, %s48
    %s68 = sphi 0, %s70
    %s71 = sphi 0, %s68
    %s72 = sphi 0, %s71
    %s88 = sphi 0, %s72
    %s94 = sphi 0, %s96
    %s97 = sphi 0, %s94
    %s98 = sphi 0, %s97
    %s114 = sphi 0, %s98
    %s120 = sphi 0, %s122
    %s123 = sphi 0, %s120
    %s124 = sphi 0, %s123
    %s140 = sphi 0, %s124
  $region4: #{resnet_forward.30} parent=0 // loop_header_branch
    %14 = sbr.rel (%p12) target = $region8
  $region5: #{resnet_forward.30} parent=0 // loop_body
    %s16 = ssub.s32 %s11, 1
    %s17 = ssub.s32 %s11, 2
    %s18 = sadd.s32 %s11, 1
    %s19 = ssub.s32 %s11, %s18
    %p20 = scmp.eq.s32.totalorder %s19, 0
    %s22 = sadd.s32 %s21, 1
    %s23 = scalar_select %p20, %s21, %s22
    %p26 = pneg %p20
    %p27 = scmp.eq.s32.totalorder %s11, 1
    %p28 = por %p26, %p27
    %p29 = scmp.ne.s32.totalorder %s21, %s24
    %p30 = scmp.eq.s32.totalorder %s11, 0
    %p31 = por %p29, %p30
    %p32 = scmp.ne.s32.totalorder %s21, %s24
    %p33 = scmp.eq.s32.totalorder %s16, 1
    %p34 = por %p32, %p33
    %p35 = scmp.ne.s32.totalorder %s24, %s25
    %p36 = scmp.eq.s32.totalorder %s16, 0
    %p37 = por %p35, %p36
    %p38 = scmp.ne.s32.totalorder %s24, %s25
    %p39 = scmp.eq.s32.totalorder %s17, 1
    %p40 = por %p38, %p39
    %p42 = scmp.ne.s32.totalorder %s25, %s41
    %p43 = scmp.eq.s32.totalorder %s17, 0
    %p44 = por %p42, %p43
    %s46 = sadd.s32 %s45, 1
    %p49 = scmp.eq.s32.totalorder %s11, 1
    %p50 = scmp.ne.s32.totalorder %s45, %s47
    %p51 = scmp.eq.s32.totalorder %s11, 0
    %p52 = por %p50, %p51
    %p53 = scmp.ne.s32.totalorder %s45, %s47
    %p54 = scmp.eq.s32.totalorder %s16, 1
    %p55 = por %p53, %p54
    %p56 = scmp.ne.s32.totalorder %s47, %s48
    %p57 = scmp.eq.s32.totalorder %s16, 0
    %p58 = por %p56, %p57
    %p59 = scmp.ne.s32.totalorder %s47, %s48
    %p60 = scmp.eq.s32.totalorder %s17, 1
    %p61 = por %p59, %p60
    %p63 = scmp.ne.s32.totalorder %s48, %s62
    %p64 = scmp.eq.s32.totalorder %s17, 0
    %p65 = por %p63, %p64
    %s66 = ssub.s32 %s11, %s18
    %p67 = scmp.eq.s32.totalorder %s66, 0
    %s69 = sadd.s32 %s68, 1
    %s70 = scalar_select %p67, %s68, %s69
    %p73 = pneg %p67
    %p74 = scmp.eq.s32.totalorder %s11, 1
    %p75 = por %p73, %p74
    %p76 = scmp.ne.s32.totalorder %s68, %s71
    %p77 = scmp.eq.s32.totalorder %s11, 0
    %p78 = por %p76, %p77
    %p79 = scmp.ne.s32.totalorder %s68, %s71
    %p80 = scmp.eq.s32.totalorder %s16, 1
    %p81 = por %p79, %p80
    %p82 = scmp.ne.s32.totalorder %s71, %s72
    %p83 = scmp.eq.s32.totalorder %s16, 0
    %p84 = por %p82, %p83
    %p85 = scmp.ne.s32.totalorder %s71, %s72
    %p86 = scmp.eq.s32.totalorder %s17, 1
    %p87 = por %p85, %p86
    %p89 = scmp.ne.s32.totalorder %s72, %s88
    %p90 = scmp.eq.s32.totalorder %s17, 0
    %p91 = por %p89, %p90
    %s92 = ssub.s32 %s11, %s18
    %p93 = scmp.eq.s32.totalorder %s92, 0
    %s95 = sadd.s32 %s94, 1
    %s96 = scalar_select %p93, %s94, %s95
    %p99 = pneg %p93
    %p100 = scmp.eq.s32.totalorder %s11, 1
    %p101 = por %p99, %p100
    %p102 = scmp.ne.s32.totalorder %s94, %s97
    %p103 = scmp.eq.s32.totalorder %s11, 0
    %p104 = por %p102, %p103
    %p105 = scmp.ne.s32.totalorder %s94, %s97
    %p106 = scmp.eq.s32.totalorder %s16, 1
    %p107 = por %p105, %p106
    %p108 = scmp.ne.s32.totalorder %s97, %s98
    %p109 = scmp.eq.s32.totalorder %s16, 0
    %p110 = por %p108, %p109
    %p111 = scmp.ne.s32.totalorder %s97, %s98
    %p112 = scmp.eq.s32.totalorder %s17, 1
    %p113 = por %p111, %p112
    %p115 = scmp.ne.s32.totalorder %s98, %s114
    %p116 = scmp.eq.s32.totalorder %s17, 0
    %p117 = por %p115, %p116
    %s118 = ssub.s32 %s11, %s18
    %p119 = scmp.eq.s32.totalorder %s118, 0
    %s121 = sadd.s32 %s120, 1
    %s122 = scalar_select %p119, %s120, %s121
    %p125 = pneg %p119
    %p126 = scmp.eq.s32.totalorder %s11, 1
    %p127 = por %p125, %p126
    %p128 = scmp.ne.s32.totalorder %s120, %s123
    %p129 = scmp.eq.s32.totalorder %s11, 0
    %p130 = por %p128, %p129
    %p131 = scmp.ne.s32.totalorder %s120, %s123
    %p132 = scmp.eq.s32.totalorder %s16, 1
    %p133 = por %p131, %p132
    %p134 = scmp.ne.s32.totalorder %s123, %s124
    %p135 = scmp.eq.s32.totalorder %s16, 0
    %p136 = por %p134, %p135
    %p137 = scmp.ne.s32.totalorder %s123, %s124
    %p138 = scmp.eq.s32.totalorder %s17, 1
    %p139 = por %p137, %p138
    %p141 = scmp.ne.s32.totalorder %s124, %s140
    %p142 = scmp.eq.s32.totalorder %s17, 0
    %p143 = por %p141, %p142
    %p144 = scmp.le.s32.totalorder 1, %s11
    %p145 = scmp.lt.s32.totalorder %s11, 3
    %p146 = pnand %p144, %p145
    %p147 = pneg %p146
    // Predicated region
    $region9: #{resnet_forward.30} parent=5 // pred_check
      _
    $region10: #{resnet_forward.30} parent=5 // pred_check_branch
      %149 = sbr.rel (%p146) target = $region12
    $region11: #{resnet_forward.30} parent=5 // pred_region
      %s150 = ssub.s32 %s11, 1
      // Predicated region
      $region13: #{resnet_forward.30} parent=11 // pred_check
        %p151 = pneg %p58
      $region14: #{resnet_forward.30} parent=11 // pred_check_branch
        %153 = sbr.rel (%p151) target = $region16
      $region15: #{resnet_forward.30} parent=11 // pred_region
        _
      $region16: #{resnet_forward.30} parent=11 // pred_fallthru
        _
    $region12: #{resnet_forward.30} parent=5 // pred_fallthru
      _
    %p154 = scmp.lt.s32.totalorder %s11, 2
    // Predicated region
    $region17: #{resnet_forward.30} parent=5 // pred_check
      %p155 = pneg %p154
    $region18: #{resnet_forward.30} parent=5 // pred_check_branch
      %157 = sbr.rel (%p155) target = $region20
    $region19: #{resnet_forward.30} parent=5 // pred_region
      // Predicated region
      $region21: #{resnet_forward.30} parent=19 // pred_check
        %p158 = pneg %p31
      $region22: #{resnet_forward.30} parent=19 // pred_check_branch
        %160 = sbr.rel (%p158) target = $region24
      $region23: #{resnet_forward.30} parent=19 // pred_region
        %s161 = smul.u32 32, %s11
        %p162 = scmp.lt.s32.totalorder %s161, 63
        %s163 = scalar_select %p162, %s161, 63
        %s164 = smul.addr %s163, 4
        %s165 = scalar_lea.vmem %s0, %s164
        %s166 = smul.u32 32, %s11
      $region24: #{resnet_forward.30} parent=19 // pred_fallthru
        _
    $region20: #{resnet_forward.30} parent=5 // pred_fallthru
      _
    %p167 = scmp.le.s32.totalorder 1, %s11
    %p168 = scmp.lt.s32.totalorder %s11, 3
    %p169 = pnand %p167, %p168
    %p170 = pneg %p169
    // Predicated region
    $region25: #{resnet_forward.30} parent=5 // pred_check
      _
    $region26: #{resnet_forward.30} parent=5 // pred_check_branch
      %172 = sbr.rel (%p169) target = $region28
    $region27: #{resnet_forward.30} parent=5 // pred_region
      %s173 = ssub.s32 %s11, 1
      %s174 = smul.u32 32, %s16
      %p175 = scmp.lt.s32.totalorder %s174, 63
      %s176 = scalar_select %p175, %s174, 63
      %s177 = smul.addr %s176, 4
      %s178 = scalar_lea.vmem %s0, %s177
      %p179 = pneg %p37
      %p180 = pneg %p34
      %p181 = pneg %p58
      %p182 = pneg %p55
      %p183 = pneg %p84
      %p184 = pneg %p81
      %s185 = smul.u32 32, %s16
      %p186 = scmp.lt.s32.totalorder %s185, 63
      %s187 = scalar_select %p186, %s185, 63
      %s188 = smul.addr %s187, 8
      %s189 = scalar_lea.vmem %s2, %s188
      %p190 = pneg %p110
      %p191 = pneg %p107
      %p192 = scmp.lt.s32.totalorder %s16, 1
      %s193 = scalar_select %p192, %s16, 1
      %s194 = scalar_lea.vmem %s3, %s193
      %p195 = pneg %p136
      %p196 = pneg %p133
      %p197 = scmp.lt.s32.totalorder %s16, 1
      %s198 = scalar_select %p197, %s16, 1
      %s199 = scalar_lea.vmem %s4, %s198
      %s200 = smul.u32 32, %s16
      %p201 = scmp.lt.s32.totalorder %s200, 63
      %s202 = scalar_select %p201, %s200, 63
      %s203 = smul.addr %s202, 4
      %s204 = scalar_lea.vmem %s0, %s203
      %s205 = smul.u32 32, %s16
      %s206 = smul.u32 32, %s16
      %p207 = scmp.lt.s32.totalorder %s206, 63
      %s208 = scalar_select %p207, %s206, 63
      %s209 = smul.addr %s208, 8
      %s210 = scalar_lea.vmem %s2, %s209
      %s211 = smul.u32 32, %s16
      %p212 = scmp.lt.s32.totalorder %s16, 1
      %s213 = scalar_select %p212, %s16, 1
      %s214 = scalar_lea.vmem %s3, %s213
      %p215 = scmp.lt.s32.totalorder %s16, 1
      %s216 = scalar_select %p215, %s16, 1
      %s217 = scalar_lea.vmem %s4, %s216
      %v219 = vld [vmem:[%s204] sm:$0xf]
      %v220 = vld [vmem:[%s204 + $0x4] sm:$0xf]
      %v221 = vld [vmem:[%s204 + $0x8] sm:$0xf]
      %v222 = vld [vmem:[%s204 + $0xc] sm:$0xf]
      %v223 = vld [vmem:[%s204 + $0x10] sm:$0xf]
      %v224 = vld [vmem:[%s204 + $0x14] sm:$0xf]
      %v225 = vld [vmem:[%s204 + $0x18] sm:$0xf]
      %v226 = vld [vmem:[%s204 + $0x1c] sm:$0xf]
      %v227 = vld [vmem:[%s204 + $0x20] sm:$0xf]
      %v228 = vld [vmem:[%s204 + $0x24] sm:$0xf]
      %v229 = vld [vmem:[%s204 + $0x28] sm:$0xf]
      %v230 = vld [vmem:[%s204 + $0x2c] sm:$0xf]
      %v231 = vld [vmem:[%s204 + $0x30] sm:$0xf]
      %v232 = vld [vmem:[%s204 + $0x34] sm:$0xf]
      %v233 = vld [vmem:[%s204 + $0x38] sm:$0xf]
      %v234 = vld [vmem:[%s204 + $0x3c] sm:$0xf]
      %v235 = vld [vmem:[%s204 + $0x40] sm:$0xf]
      %v236 = vld [vmem:[%s204 + $0x44] sm:$0xf]
      %v237 = vld [vmem:[%s204 + $0x48] sm:$0xf]
      %v238 = vld [vmem:[%s204 + $0x4c] sm:$0xf]
      %v239 = vld [vmem:[%s204 + $0x50] sm:$0xf]
      %v240 = vld [vmem:[%s204 + $0x54] sm:$0xf]
      %v241 = vld [vmem:[%s204 + $0x58] sm:$0xf]
      %v242 = vld [vmem:[%s204 + $0x5c] sm:$0xf]
      %v243 = vld [vmem:[%s204 + $0x60] sm:$0xf]
      %v244 = vld [vmem:[%s204 + $0x64] sm:$0xf]
      %v245 = vld [vmem:[%s204 + $0x68] sm:$0xf]
      %v246 = vld [vmem:[%s204 + $0x6c] sm:$0xf]
      %v247 = vld [vmem:[%s204 + $0x70] sm:$0xf]
      %v248 = vld [vmem:[%s204 + $0x74] sm:$0xf]
      %v249 = vld [vmem:[%s204 + $0x78] sm:$0xf]
      %v250 = vld [vmem:[%s204 + $0x7c] sm:$0xf]
      %v251 = vld [vmem:[%s1] sm:$0xf]
      %v252 = vld [vmem:[%s1 + $0x4] sm:$0xf]
      %v253 = vld [vmem:[%s1 + $0x8] sm:$0xf]
      %v254 = vld [vmem:[%s1 + $0xc] sm:$0xf]
      %v255 = vld [vmem:[%s1 + $0x10] sm:$0x3]
      %v288 = vunpack.c.l.b16 %v219
      %v289 = vunpack.c.l.b16 %v220
      %v290 = vunpack.c.l.b16 %v221
      %v291 = vunpack.c.l.b16 %v222
      %v292 = vunpack.c.l.b16 %v223
      %v293 = vunpack.c.l.b16 %v224
      %v294 = vunpack.c.l.b16 %v225
      %v295 = vunpack.c.l.b16 %v226
      %v296 = vunpack.c.l.b16 %v227
      %v297 = vunpack.c.l.b16 %v228
      %v298 = vunpack.c.l.b16 %v229
      %v299 = vunpack.c.l.b16 %v230
      %v300 = vunpack.c.l.b16 %v231
      %v301 = vunpack.c.l.b16 %v232
      %v302 = vunpack.c.l.b16 %v233
      %v303 = vunpack.c.l.b16 %v234
      %v304 = vunpack.c.l.b16 %v235
      %v305 = vunpack.c.l.b16 %v236
      %v306 = vunpack.c.l.b16 %v237
      %v307 = vunpack.c.l.b16 %v238
      %v308 = vunpack.c.l.b16 %v239
      %v309 = vunpack.c.l.b16 %v240
      %v310 = vunpack.c.l.b16 %v241
      %v311 = vunpack.c.l.b16 %v242
      %v312 = vunpack.c.l.b16 %v243
      %v313 = vunpack.c.l.b16 %v244
      %v314 = vunpack.c.l.b16 %v245
      %v315 = vunpack.c.l.b16 %v246
      %v316 = vunpack.c.l.b16 %v247
      %v317 = vunpack.c.l.b16 %v248
      %v318 = vunpack.c.l.b16 %v249
      %v319 = vunpack.c.l.b16 %v250
      %v320 = vpack.c.b16 %v289, %v288
      %v321 = vpack.c.b16 %v291, %v290
      %v322 = vpack.c.b16 %v293, %v292
      %v323 = vpack.c.b16 %v295, %v294
      %v324 = vpack.c.b16 %v297, %v296
      %v325 = vpack.c.b16 %v299, %v298
      %v326 = vpack.c.b16 %v301, %v300
      %v327 = vpack.c.b16 %v303, %v302
      %v328 = vpack.c.b16 %v305, %v304
      %v329 = vpack.c.b16 %v307, %v306
      %v330 = vpack.c.b16 %v309, %v308
      %v331 = vpack.c.b16 %v311, %v310
      %v332 = vpack.c.b16 %v313, %v312
      %v333 = vpack.c.b16 %v315, %v314
      %v334 = vpack.c.b16 %v317, %v316
      %v335 = vpack.c.b16 %v319, %v318
      %v341 = vunpack.c.l.b16 %v251
      %v342 = vunpack.c.l.b16 %v252
      %v343 = vunpack.c.l.b16 %v253
      %v344 = vunpack.c.l.b16 %v254
      %v345 = vunpack.c.l.b16 %v255
      %v346 = vpack.c.b16 %v342, %v341
      %v347 = vpack.c.b16 %v344, %v343
      %v348 = vpack.c.b16 %v345, %v345
      %vm351 = vcmask 293888
      %v353 = vsel %vm351, %v320, 0
      %v356 = vsel %vm351, %v321, 0
      %v359 = vsel %vm351, %v322, 0
      %v362 = vsel %vm351, %v323, 0
      %v365 = vsel %vm351, %v324, 0
      %v368 = vsel %vm351, %v325, 0
      %v371 = vsel %vm351, %v326, 0
      %v374 = vsel %vm351, %v327, 0
      %v377 = vsel %vm351, %v328, 0
      %v380 = vsel %vm351, %v329, 0
      %v383 = vsel %vm351, %v330, 0
      %v386 = vsel %vm351, %v331, 0
      %v389 = vsel %vm351, %v332, 0
      %v392 = vsel %vm351, %v333, 0
      %v395 = vsel %vm351, %v334, 0
      %v398 = vsel %vm351, %v335, 0
      %vm400 = vcmask 1041408
      %v402 = vsel %vm400, %v348, 0
      %404 = vmatprep.subr.bf16.mxu0 0
      %405 = vmatpush1.bf16.msra.mxu0 0
      %406 = vmatprep.subr.bf16.mxu0 0
      %407 = vmatpush1.bf16.msra.mxu0 0
      %408 = vmatprep.subr.bf16.mxu0 0
      %409 = vmatpush1.bf16.msra.mxu0 0
      %410 = vmatprep.subr.bf16.mxu0 0
      %411 = vmatpush1.bf16.msra.mxu0 0
      %412 = vmatprep.subr.bf16.mxu0 0
      %413 = vmatpush1.bf16.msra.mxu0 0
      %414 = vmatprep.subr.bf16.mxu0 0
      %415 = vmatpush1.bf16.msra.mxu0 %v402
      %416 = vmatprep.subr.bf16.mxu0 0
      %417 = vmatpush1.bf16.msra.mxu0 %v347
      %418 = vmatprep.subr.bf16.mxu0 0
      %419 = vmatpush1.bf16.msra.mxu0 %v346
      %420 = vmatprep.subr.bf16.mxu0 0
      %421 = vmatpush2.bf16.msra.mxu0 0
      %422 = vmatprep.subr.bf16.mxu0 0
      %423 = vmatpush2.bf16.msra.mxu0 0
      %424 = vmatprep.subr.bf16.mxu0 0
      %425 = vmatpush2.bf16.msra.mxu0 0
      %426 = vmatprep.subr.bf16.mxu0 0
      %427 = vmatpush2.bf16.msra.mxu0 0
      %428 = vmatprep.subr.bf16.mxu0 0
      %429 = vmatpush2.bf16.msra.mxu0 0
      %430 = vmatprep.subr.bf16.mxu0 0
      %431 = vmatpush2.bf16.msra.mxu0 0
      %432 = vmatprep.subr.bf16.mxu0 0
      %433 = vmatpush2.bf16.msra.mxu0 0
      %434 = vmatprep.subr.bf16.mxu0 0
      %435 = vmatpush2.bf16.msra.mxu0 0
      %436 = vmatprep.mubr.bf16.mxu0 0
      %437 = vmatmul.mubr.bf16.gmra.mxu0 %v353
      %v438 = vpop.f32.mrf.mxu0
      %v439 = vadd.f32 0.0, %v438
      %v440 = vpop.f32.mrf.mxu0
      %v441 = vpop.f32.mrf.mxu0
      %v442 = vadd.f32 0.0, %v441
      %v443 = vpop.f32.mrf.mxu0
      %444 = vmatprep.mubr.bf16.mxu0 0
      %445 = vmatmul.mubr.bf16.gmra.mxu0 %v356
      %v446 = vpop.f32.mrf.mxu0
      %v447 = vadd.f32 0.0, %v446
      %v448 = vpop.f32.mrf.mxu0
      %v449 = vpop.f32.mrf.mxu0
      %v450 = vadd.f32 0.0, %v449
      %v451 = vpop.f32.mrf.mxu0
      %452 = vmatprep.mubr.bf16.mxu0 0
      %453 = vmatmul.mubr.bf16.gmra.mxu0 %v359
      %v454 = vpop.f32.mrf.mxu0
      %v455 = vadd.f32 0.0, %v454
      %v456 = vpop.f32.mrf.mxu0
      %v457 = vpop.f32.mrf.mxu0
      %v458 = vadd.f32 0.0, %v457
      %v459 = vpop.f32.mrf.mxu0
      %460 = vmatprep.mubr.bf16.mxu0 0
      %461 = vmatmul.mubr.bf16.gmra.mxu0 %v362
      %v462 = vpop.f32.mrf.mxu0
      %v463 = vadd.f32 0.0, %v462
      %v464 = vpop.f32.mrf.mxu0
      %v465 = vpop.f32.mrf.mxu0
      %v466 = vadd.f32 0.0, %v465
      %v467 = vpop.f32.mrf.mxu0
      %468 = vmatprep.mubr.bf16.mxu0 0
      %469 = vmatmul.mubr.bf16.gmra.mxu0 %v365
      %v470 = vpop.f32.mrf.mxu0
      %v471 = vadd.f32 0.0, %v470
      %v472 = vpop.f32.mrf.mxu0
      %v473 = vpop.f32.mrf.mxu0
      %v474 = vadd.f32 0.0, %v473
      %v475 = vpop.f32.mrf.mxu0
      %476 = vmatprep.mubr.bf16.mxu0 0
      %477 = vmatmul.mubr.bf16.gmra.mxu0 %v368
      %v478 = vpop.f32.mrf.mxu0
      %v479 = vadd.f32 0.0, %v478
      %v480 = vpop.f32.mrf.mxu0
      %v481 = vpop.f32.mrf.mxu0
      %v482 = vadd.f32 0.0, %v481
      %v483 = vpop.f32.mrf.mxu0
      %484 = vmatprep.mubr.bf16.mxu0 0
      %485 = vmatmul.mubr.bf16.gmra.mxu0 %v371
      %v486 = vpop.f32.mrf.mxu0
      %v487 = vadd.f32 0.0, %v486
      %v488 = vpop.f32.mrf.mxu0
      %v489 = vpop.f32.mrf.mxu0
      %v490 = vadd.f32 0.0, %v489
      %v491 = vpop.f32.mrf.mxu0
      %492 = vmatprep.mubr.bf16.mxu0 0
      %493 = vmatmul.mubr.bf16.gmra.mxu0 %v374
      %v494 = vpop.f32.mrf.mxu0
      %v495 = vadd.f32 0.0, %v494
      %v496 = vpop.f32.mrf.mxu0
      %v497 = vpop.f32.mrf.mxu0
      %v498 = vadd.f32 0.0, %v497
      %v499 = vpop.f32.mrf.mxu0
      %500 = vmatprep.mubr.bf16.mxu0 0
      %501 = vmatmul.mubr.bf16.gmra.mxu0 %v377
      %v502 = vpop.f32.mrf.mxu0
      %v503 = vadd.f32 0.0, %v502
      %v504 = vpop.f32.mrf.mxu0
      %v505 = vpop.f32.mrf.mxu0
      %v506 = vadd.f32 0.0, %v505
      %v507 = vpop.f32.mrf.mxu0
      %508 = vmatprep.mubr.bf16.mxu0 0
      %509 = vmatmul.mubr.bf16.gmra.mxu0 %v380
      %v510 = vpop.f32.mrf.mxu0
      %v511 = vadd.f32 0.0, %v510
      %v512 = vpop.f32.mrf.mxu0
      %v513 = vpop.f32.mrf.mxu0
      %v514 = vadd.f32 0.0, %v513
      %v515 = vpop.f32.mrf.mxu0
      %516 = vmatprep.mubr.bf16.mxu0 0
      %517 = vmatmul.mubr.bf16.gmra.mxu0 %v383
      %v518 = vpop.f32.mrf.mxu0
      %v519 = vadd.f32 0.0, %v518
      %v520 = vpop.f32.mrf.mxu0
      %v521 = vpop.f32.mrf.mxu0
      %v522 = vadd.f32 0.0, %v521
      %v523 = vpop.f32.mrf.mxu0
      %524 = vmatprep.mubr.bf16.mxu0 0
      %525 = vmatmul.mubr.bf16.gmra.mxu0 %v386
      %v526 = vpop.f32.mrf.mxu0
      %v527 = vadd.f32 0.0, %v526
      %v528 = vpop.f32.mrf.mxu0
      %v529 = vpop.f32.mrf.mxu0
      %v530 = vadd.f32 0.0, %v529
      %v531 = vpop.f32.mrf.mxu0
      %532 = vmatprep.mubr.bf16.mxu0 0
      %533 = vmatmul.mubr.bf16.gmra.mxu0 %v389
      %v534 = vpop.f32.mrf.mxu0
      %v535 = vadd.f32 0.0, %v534
      %v536 = vpop.f32.mrf.mxu0
      %v537 = vpop.f32.mrf.mxu0
      %v538 = vadd.f32 0.0, %v537
      %v539 = vpop.f32.mrf.mxu0
      %540 = vmatprep.mubr.bf16.mxu0 0
      %541 = vmatmul.mubr.bf16.gmra.mxu0 %v392
      %v542 = vpop.f32.mrf.mxu0
      %v543 = vadd.f32 0.0, %v542
      %v544 = vpop.f32.mrf.mxu0
      %v545 = vpop.f32.mrf.mxu0
      %v546 = vadd.f32 0.0, %v545
      %v547 = vpop.f32.mrf.mxu0
      %548 = vmatprep.mubr.bf16.mxu0 0
      %549 = vmatmul.mubr.bf16.gmra.mxu0 %v395
      %v550 = vpop.f32.mrf.mxu0
      %v551 = vadd.f32 0.0, %v550
      %v552 = vpop.f32.mrf.mxu0
      %v553 = vpop.f32.mrf.mxu0
      %v554 = vadd.f32 0.0, %v553
      %v555 = vpop.f32.mrf.mxu0
      %556 = vmatprep.mubr.bf16.mxu0 0
      %557 = vmatmul.mubr.bf16.gmra.mxu0 %v398
      %v558 = vpop.f32.mrf.mxu0
      %v559 = vadd.f32 0.0, %v558
      %v560 = vpop.f32.mrf.mxu0
      %v561 = vpop.f32.mrf.mxu0
      %v562 = vadd.f32 0.0, %v561
      %v563 = vpop.f32.mrf.mxu0
      %564 = vdwg.mxu0
      %vm565 = vcmask 64512
      %566 = vst.msk [vmem:[%s210] sm:$0xff] %vm565, %v439
      %567 = vst.msk [vmem:[%s210 + $0x8] sm:$0xff] %vm565, %v442
      %568 = vst.msk [vmem:[%s210 + $0x10] sm:$0xff] %vm565, %v447
      %569 = vst.msk [vmem:[%s210 + $0x18] sm:$0xff] %vm565, %v450
      %570 = vst.msk [vmem:[%s210 + $0x20] sm:$0xff] %vm565, %v455
      %571 = vst.msk [vmem:[%s210 + $0x28] sm:$0xff] %vm565, %v458
      %572 = vst.msk [vmem:[%s210 + $0x30] sm:$0xff] %vm565, %v463
      %573 = vst.msk [vmem:[%s210 + $0x38] sm:$0xff] %vm565, %v466
      %574 = vst.msk [vmem:[%s210 + $0x40] sm:$0xff] %vm565, %v471
      %575 = vst.msk [vmem:[%s210 + $0x48] sm:$0xff] %vm565, %v474
      %576 = vst.msk [vmem:[%s210 + $0x50] sm:$0xff] %vm565, %v479
      %577 = vst.msk [vmem:[%s210 + $0x58] sm:$0xff] %vm565, %v482
      %578 = vst.msk [vmem:[%s210 + $0x60] sm:$0xff] %vm565, %v487
      %579 = vst.msk [vmem:[%s210 + $0x68] sm:$0xff] %vm565, %v490
      %580 = vst.msk [vmem:[%s210 + $0x70] sm:$0xff] %vm565, %v495
      %581 = vst.msk [vmem:[%s210 + $0x78] sm:$0xff] %vm565, %v498
      %582 = vst.msk [vmem:[%s210 + $0x80] sm:$0xff] %vm565, %v503
      %583 = vst.msk [vmem:[%s210 + $0x88] sm:$0xff] %vm565, %v506
      %584 = vst.msk [vmem:[%s210 + $0x90] sm:$0xff] %vm565, %v511
      %585 = vst.msk [vmem:[%s210 + $0x98] sm:$0xff] %vm565, %v514
      %586 = vst.msk [vmem:[%s210 + $0xa0] sm:$0xff] %vm565, %v519
      %587 = vst.msk [vmem:[%s210 + $0xa8] sm:$0xff] %vm565, %v522
      %588 = vst.msk [vmem:[%s210 + $0xb0] sm:$0xff] %vm565, %v527
      %589 = vst.msk [vmem:[%s210 + $0xb8] sm:$0xff] %vm565, %v530
      %590 = vst.msk [vmem:[%s210 + $0xc0] sm:$0xff] %vm565, %v535
      %591 = vst.msk [vmem:[%s210 + $0xc8] sm:$0xff] %vm565, %v538
      %592 = vst.msk [vmem:[%s210 + $0xd0] sm:$0xff] %vm565, %v543
      %593 = vst.msk [vmem:[%s210 + $0xd8] sm:$0xff] %vm565, %v546
      %594 = vst.msk [vmem:[%s210 + $0xe0] sm:$0xff] %vm565, %v551
      %595 = vst.msk [vmem:[%s210 + $0xe8] sm:$0xff] %vm565, %v554
      %596 = vst.msk [vmem:[%s210 + $0xf0] sm:$0xff] %vm565, %v559
      %597 = vst.msk [vmem:[%s210 + $0xf8] sm:$0xff] %vm565, %v562
      %v598 = vsel %vm565, %v439, 0.0
      %v599 = vsel %vm565, %v442, 0.0
      %v600 = vadd.f32 %v598, %v599
      %v601 = vsel %vm565, %v447, 0.0
      %v602 = vadd.f32 %v600, %v601
      %v603 = vsel %vm565, %v450, 0.0
      %v604 = vadd.f32 %v602, %v603
      %v605 = vsel %vm565, %v455, 0.0
      %v606 = vadd.f32 %v604, %v605
      %v607 = vsel %vm565, %v458, 0.0
      %v608 = vadd.f32 %v606, %v607
      %v609 = vsel %vm565, %v463, 0.0
      %v610 = vadd.f32 %v608, %v609
      %v611 = vsel %vm565, %v466, 0.0
      %v612 = vadd.f32 %v610, %v611
      %v613 = vsel %vm565, %v471, 0.0
      %v614 = vadd.f32 %v612, %v613
      %v615 = vsel %vm565, %v474, 0.0
      %v616 = vadd.f32 %v614, %v615
      %v617 = vsel %vm565, %v479, 0.0
      %v618 = vadd.f32 %v616, %v617
      %v619 = vsel %vm565, %v482, 0.0
      %v620 = vadd.f32 %v618, %v619
      %v621 = vsel %vm565, %v487, 0.0
      %v622 = vadd.f32 %v620, %v621
      %v623 = vsel %vm565, %v490, 0.0
      %v624 = vadd.f32 %v622, %v623
      %v625 = vsel %vm565, %v495, 0.0
      %v626 = vadd.f32 %v624, %v625
      %v627 = vsel %vm565, %v498, 0.0
      %v628 = vadd.f32 %v626, %v627
      %v629 = vsel %vm565, %v503, 0.0
      %v630 = vadd.f32 %v628, %v629
      %v631 = vsel %vm565, %v506, 0.0
      %v632 = vadd.f32 %v630, %v631
      %v633 = vsel %vm565, %v511, 0.0
      %v634 = vadd.f32 %v632, %v633
      %v635 = vsel %vm565, %v514, 0.0
      %v636 = vadd.f32 %v634, %v635
      %v637 = vsel %vm565, %v519, 0.0
      %v638 = vadd.f32 %v636, %v637
      %v639 = vsel %vm565, %v522, 0.0
      %v640 = vadd.f32 %v638, %v639
      %v641 = vsel %vm565, %v527, 0.0
      %v642 = vadd.f32 %v640, %v641
      %v643 = vsel %vm565, %v530, 0.0
      %v644 = vadd.f32 %v642, %v643
      %v645 = vsel %vm565, %v535, 0.0
      %v646 = vadd.f32 %v644, %v645
      %v647 = vsel %vm565, %v538, 0.0
      %v648 = vadd.f32 %v646, %v647
      %v649 = vsel %vm565, %v543, 0.0
      %v650 = vadd.f32 %v648, %v649
      %v651 = vsel %vm565, %v546, 0.0
      %v652 = vadd.f32 %v650, %v651
      %v653 = vsel %vm565, %v551, 0.0
      %v654 = vadd.f32 %v652, %v653
      %v655 = vsel %vm565, %v554, 0.0
      %v656 = vadd.f32 %v654, %v655
      %v657 = vsel %vm565, %v559, 0.0
      %v658 = vadd.f32 %v656, %v657
      %v659 = vsel %vm565, %v562, 0.0
      %v660 = vadd.f32 %v658, %v659
      %v661 = vrot.slane %v660, 4
      %v662 = vadd.f32 %v660, %v661
      %v663 = vrot.slane %v662, 2
      %v664 = vadd.f32 %v662, %v663
      %v665 = vrot.slane %v664, 1
      %v666 = vadd.f32 %v664, %v665
      %vm667 = vcmask 57344
      %668 = vst.msk [vmem:[%s214] sm:$0x1] %vm667, %v666
      %v669 = vmul.f32 %v439, %v439
      %v670 = vmul.f32 %v442, %v442
      %v671 = vmul.f32 %v447, %v447
      %v672 = vmul.f32 %v450, %v450
      %v673 = vmul.f32 %v455, %v455
      %v674 = vmul.f32 %v458, %v458
      %v675 = vmul.f32 %v463, %v463
      %v676 = vmul.f32 %v466, %v466
      %v677 = vmul.f32 %v471, %v471
      %v678 = vmul.f32 %v474, %v474
      %v679 = vmul.f32 %v479, %v479
      %v680 = vmul.f32 %v482, %v482
      %v681 = vmul.f32 %v487, %v487
      %v682 = vmul.f32 %v490, %v490
      %v683 = vmul.f32 %v495, %v495
      %v684 = vmul.f32 %v498, %v498
      %v685 = vmul.f32 %v503, %v503
      %v686 = vmul.f32 %v506, %v506
      %v687 = vmul.f32 %v511, %v511
      %v688 = vmul.f32 %v514, %v514
      %v689 = vmul.f32 %v519, %v519
      %v690 = vmul.f32 %v522, %v522
      %v691 = vmul.f32 %v527, %v527
      %v692 = vmul.f32 %v530, %v530
      %v693 = vmul.f32 %v535, %v535
      %v694 = vmul.f32 %v538, %v538
      %v695 = vmul.f32 %v543, %v543
      %v696 = vmul.f32 %v546, %v546
      %v697 = vmul.f32 %v551, %v551
      %v698 = vmul.f32 %v554, %v554
      %v699 = vmul.f32 %v559, %v559
      %v700 = vmul.f32 %v562, %v562
      %v701 = vsel %vm565, %v669, 0.0
      %v702 = vsel %vm565, %v670, 0.0
      %v703 = vadd.f32 %v701, %v702
      %v704 = vsel %vm565, %v671, 0.0
      %v705 = vadd.f32 %v703, %v704
      %v706 = vsel %vm565, %v672, 0.0
      %v707 = vadd.f32 %v705, %v706
      %v708 = vsel %vm565, %v673, 0.0
      %v709 = vadd.f32 %v707, %v708
      %v710 = vsel %vm565, %v674, 0.0
      %v711 = vadd.f32 %v709, %v710
      %v712 = vsel %vm565, %v675, 0.0
      %v713 = vadd.f32 %v711, %v712
      %v714 = vsel %vm565, %v676, 0.0
      %v715 = vadd.f32 %v713, %v714
      %v716 = vsel %vm565, %v677, 0.0
      %v717 = vadd.f32 %v715, %v716
      %v718 = vsel %vm565, %v678, 0.0
      %v719 = vadd.f32 %v717, %v718
      %v720 = vsel %vm565, %v679, 0.0
      %v721 = vadd.f32 %v719, %v720
      %v722 = vsel %vm565, %v680, 0.0
      %v723 = vadd.f32 %v721, %v722
      %v724 = vsel %vm565, %v681, 0.0
      %v725 = vadd.f32 %v723, %v724
      %v726 = vsel %vm565, %v682, 0.0
      %v727 = vadd.f32 %v725, %v726
      %v728 = vsel %vm565, %v683, 0.0
      %v729 = vadd.f32 %v727, %v728
      %v730 = vsel %vm565, %v684, 0.0
      %v731 = vadd.f32 %v729, %v730
      %v732 = vsel %vm565, %v685, 0.0
      %v733 = vadd.f32 %v731, %v732
      %v734 = vsel %vm565, %v686, 0.0
      %v735 = vadd.f32 %v733, %v734
      %v736 = vsel %vm565, %v687, 0.0
      %v737 = vadd.f32 %v735, %v736
      %v738 = vsel %vm565, %v688, 0.0
      %v739 = vadd.f32 %v737, %v738
      %v740 = vsel %vm565, %v689, 0.0
      %v741 = vadd.f32 %v739, %v740
      %v742 = vsel %vm565, %v690, 0.0
      %v743 = vadd.f32 %v741, %v742
      %v744 = vsel %vm565, %v691, 0.0
      %v745 = vadd.f32 %v743, %v744
      %v746 = vsel %vm565, %v692, 0.0
      %v747 = vadd.f32 %v745, %v746
      %v748 = vsel %vm565, %v693, 0.0
      %v749 = vadd.f32 %v747, %v748
      %v750 = vsel %vm565, %v694, 0.0
      %v751 = vadd.f32 %v749, %v750
      %v752 = vsel %vm565, %v695, 0.0
      %v753 = vadd.f32 %v751, %v752
      %v754 = vsel %vm565, %v696, 0.0
      %v755 = vadd.f32 %v753, %v754
      %v756 = vsel %vm565, %v697, 0.0
      %v757 = vadd.f32 %v755, %v756
      %v758 = vsel %vm565, %v698, 0.0
      %v759 = vadd.f32 %v757, %v758
      %v760 = vsel %vm565, %v699, 0.0
      %v761 = vadd.f32 %v759, %v760
      %v762 = vsel %vm565, %v700, 0.0
      %v763 = vadd.f32 %v761, %v762
      %v764 = vrot.slane %v763, 4
      %v765 = vadd.f32 %v763, %v764
      %v766 = vrot.slane %v765, 2
      %v767 = vadd.f32 %v765, %v766
      %v768 = vrot.slane %v767, 1
      %v769 = vadd.f32 %v767, %v768
      %770 = vst.msk [vmem:[%s217] sm:$0x1] %vm667, %v769
      %s771 = smul.u32 32, %s16
      %p772 = scmp.lt.s32.totalorder %s771, 63
      %s773 = scalar_select %p772, %s771, 63
      %s774 = smul.addr %s773, 8
      %s775 = scalar_lea.vmem %s2, %s774
      %p776 = scmp.lt.s32.totalorder %s16, 1
      %s777 = scalar_select %p776, %s16, 1
      %s778 = scalar_lea.vmem %s3, %s777
      %p779 = scmp.lt.s32.totalorder %s16, 1
      %s780 = scalar_select %p779, %s16, 1
      %s781 = scalar_lea.vmem %s4, %s780
      // Predicated region
      $region29: #{resnet_forward.30} parent=27 // pred_check
        %p782 = pneg %p81
      $region30: #{resnet_forward.30} parent=27 // pred_check_branch
        %784 = sbr.rel (%p782) target = $region32
      $region31: #{resnet_forward.30} parent=27 // pred_region
        %s785 = smul.u32 32, %s16
      $region32: #{resnet_forward.30} parent=27 // pred_fallthru
        _
      // Predicated region
      $region33: #{resnet_forward.30} parent=27 // pred_check
        %p786 = pneg %p107
      $region34: #{resnet_forward.30} parent=27 // pred_check_branch
        %788 = sbr.rel (%p786) target = $region36
      $region35: #{resnet_forward.30} parent=27 // pred_region
        _
      $region36: #{resnet_forward.30} parent=27 // pred_fallthru
        _
      // Predicated region
      $region37: #{resnet_forward.30} parent=27 // pred_check
        %p789 = pneg %p133
      $region38: #{resnet_forward.30} parent=27 // pred_check_branch
        %791 = sbr.rel (%p789) target = $region40
      $region39: #{resnet_forward.30} parent=27 // pred_region
        _
      $region40: #{resnet_forward.30} parent=27 // pred_fallthru
        _
    $region28: #{resnet_forward.30} parent=5 // pred_fallthru
      _
    %p792 = scmp.le.s32.totalorder 2, %s11
    // Predicated region
    $region41: #{resnet_forward.30} parent=5 // pred_check
      %p793 = pneg %p792
    $region42: #{resnet_forward.30} parent=5 // pred_check_branch
      %795 = sbr.rel (%p793) target = $region44
    $region43: #{resnet_forward.30} parent=5 // pred_region
      %s796 = ssub.s32 %s11, 2
      // Predicated region
      $region45: #{resnet_forward.30} parent=43 // pred_check
        %p797 = pneg %p87
      $region46: #{resnet_forward.30} parent=43 // pred_check_branch
        %799 = sbr.rel (%p797) target = $region48
      $region47: #{resnet_forward.30} parent=43 // pred_region
        %s800 = smul.u32 32, %s17
        %p801 = scmp.lt.s32.totalorder %s800, 63
        %s802 = scalar_select %p801, %s800, 63
        %s803 = smul.addr %s802, 8
        %s804 = scalar_lea.vmem %s2, %s803
      $region48: #{resnet_forward.30} parent=43 // pred_fallthru
        _
      // Predicated region
      $region49: #{resnet_forward.30} parent=43 // pred_check
        %p805 = pneg %p113
      $region50: #{resnet_forward.30} parent=43 // pred_check_branch
        %807 = sbr.rel (%p805) target = $region52
      $region51: #{resnet_forward.30} parent=43 // pred_region
        %p808 = scmp.lt.s32.totalorder %s17, 1
        %s809 = scalar_select %p808, %s17, 1
        %s810 = scalar_lea.vmem %s3, %s809
      $region52: #{resnet_forward.30} parent=43 // pred_fallthru
        _
      // Predicated region
      $region53: #{resnet_forward.30} parent=43 // pred_check
        %p811 = pneg %p139
      $region54: #{resnet_forward.30} parent=43 // pred_check_branch
        %813 = sbr.rel (%p811) target = $region56
      $region55: #{resnet_forward.30} parent=43 // pred_region
        %p814 = scmp.lt.s32.totalorder %s17, 1
        %s815 = scalar_select %p814, %s17, 1
        %s816 = scalar_lea.vmem %s4, %s815
      $region56: #{resnet_forward.30} parent=43 // pred_fallthru
        _
    $region44: #{resnet_forward.30} parent=5 // pred_fallthru
      _
  $region6: #{resnet_forward.30} parent=0 // loop_footer
    %s15 = sadd.s32 1, %s11
  $region7: #{resnet_forward.30} parent=0 // loop_footer_branch
    %10 = sbr.rel target = $region3
  $region8: #{resnet_forward.30} parent=0 // loop_exit
    _

// kernel: resnet_forward.32
$region0: #{resnet_forward.32}
  #allocation0 [shape = 'u32[]', space=smem, size = 0x4, offset = 0x4, fixed_abs, tag = 'smem constant byte address 0x4 - core index']
  #allocation1 [shape = 'u32[144,128]{1,0:T(1,128)}', space=vmem, size = 0x12000, scoped, tag = 'internal scratch']
  %s0 = inlined_call_operand.vmem [shape: bf16[512,72], index: 0, kind: input, shape index: {}]
  %s1 = inlined_call_operand.vmem [shape: bf16[72,8], index: 1, kind: input, shape index: {}]
  %s2 = inlined_call_operand.vmem [shape: f32[512,8], index: 2, kind: output, shape index: {0}]
  %s3 = inlined_call_operand.vmem [shape: f32[2,1,8], index: 3, kind: output, shape index: {1}]
  %s4 = inlined_call_operand.vmem [shape: f32[2,1,8], index: 4, kind: output, shape index: {2}]
  %5 = xla_tuple %s2, %s3, %s4
  %s6 = sld [smem:[#allocation0]]
  $region57: #{resnet_forward.32} parent=0
    _
  %s8 = ssub.s32 1, %s6
  %s9 = scalar_select 0, %s8, %s6
  loop: start=0, step=1, limit=4
  $region2: #{resnet_forward.32} parent=0 // loop_pre_header
    _
  $region3: #{resnet_forward.32} parent=0 // loop_header
    %s11 = sphi 0, %s15
    %p12 = scmp.ge.s32.totalorder %s11, 4
    %s21 = sphi 0, %s23
    %s24 = sphi 0, %s21
    %s25 = sphi 0, %s24
    %s41 = sphi 0, %s25
    %s45 = sphi 0, %s45
    %s47 = sphi 0, %s45
    %s48 = sphi 0, %s47
    %s62 = sphi 0, %s48
    %s68 = sphi 0, %s70
    %s71 = sphi 0, %s68
    %s72 = sphi 0, %s71
    %s88 = sphi 0, %s72
    %s94 = sphi 0, %s96
    %s97 = sphi 0, %s94
    %s98 = sphi 0, %s97
    %s114 = sphi 0, %s98
    %s120 = sphi 0, %s122
    %s123 = sphi 0, %s120
    %s124 = sphi 0, %s123
    %s140 = sphi 0, %s124
  $region4: #{resnet_forward.32} parent=0 // loop_header_branch
    %14 = sbr.rel (%p12) target = $region8
  $region5: #{resnet_forward.32} parent=0 // loop_body
    %s16 = ssub.s32 %s11, 1
    %s17 = ssub.s32 %s11, 2
    %s18 = sadd.s32 %s11, 1
    %s19 = ssub.s32 %s11, %s18
    %p20 = scmp.eq.s32.totalorder %s19, 0
    %s22 = sadd.s32 %s21, 1
    %s23 = scalar_select %p20, %s21, %s22
    %p26 = pneg %p20
    %p27 = scmp.eq.s32.totalorder %s11, 1
    %p28 = por %p26, %p27
    %p29 = scmp.ne.s32.totalorder %s21, %s24
    %p30 = scmp.eq.s32.totalorder %s11, 0
    %p31 = por %p29, %p30
    %p32 = scmp.ne.s32.totalorder %s21, %s24
    %p33 = scmp.eq.s32.totalorder %s16, 1
    %p34 = por %p32, %p33
    %p35 = scmp.ne.s32.totalorder %s24, %s25
    %p36 = scmp.eq.s32.totalorder %s16, 0
    %p37 = por %p35, %p36
    %p38 = scmp.ne.s32.totalorder %s24, %s25
    %p39 = scmp.eq.s32.totalorder %s17, 1
    %p40 = por %p38, %p39
    %p42 = scmp.ne.s32.totalorder %s25, %s41
    %p43 = scmp.eq.s32.totalorder %s17, 0
    %p44 = por %p42, %p43
    %s46 = sadd.s32 %s45, 1
    %p49 = scmp.eq.s32.totalorder %s11, 1
    %p50 = scmp.ne.s32.totalorder %s45, %s47
    %p51 = scmp.eq.s32.totalorder %s11, 0
    %p52 = por %p50, %p51
    %p53 = scmp.ne.s32.totalorder %s45, %s47
    %p54 = scmp.eq.s32.totalorder %s16, 1
    %p55 = por %p53, %p54
    %p56 = scmp.ne.s32.totalorder %s47, %s48
    %p57 = scmp.eq.s32.totalorder %s16, 0
    %p58 = por %p56, %p57
    %p59 = scmp.ne.s32.totalorder %s47, %s48
    %p60 = scmp.eq.s32.totalorder %s17, 1
    %p61 = por %p59, %p60
    %p63 = scmp.ne.s32.totalorder %s48, %s62
    %p64 = scmp.eq.s32.totalorder %s17, 0
    %p65 = por %p63, %p64
    %s66 = ssub.s32 %s11, %s18
    %p67 = scmp.eq.s32.totalorder %s66, 0
    %s69 = sadd.s32 %s68, 1
    %s70 = scalar_select %p67, %s68, %s69
    %p73 = pneg %p67
    %p74 = scmp.eq.s32.totalorder %s11, 1
    %p75 = por %p73, %p74
    %p76 = scmp.ne.s32.totalorder %s68, %s71
    %p77 = scmp.eq.s32.totalorder %s11, 0
    %p78 = por %p76, %p77
    %p79 = scmp.ne.s32.totalorder %s68, %s71
    %p80 = scmp.eq.s32.totalorder %s16, 1
    %p81 = por %p79, %p80
    %p82 = scmp.ne.s32.totalorder %s71, %s72
    %p83 = scmp.eq.s32.totalorder %s16, 0
    %p84 = por %p82, %p83
    %p85 = scmp.ne.s32.totalorder %s71, %s72
    %p86 = scmp.eq.s32.totalorder %s17, 1
    %p87 = por %p85, %p86
    %p89 = scmp.ne.s32.totalorder %s72, %s88
    %p90 = scmp.eq.s32.totalorder %s17, 0
    %p91 = por %p89, %p90
    %s92 = ssub.s32 %s11, %s18
    %p93 = scmp.eq.s32.totalorder %s92, 0
    %s95 = sadd.s32 %s94, 1
    %s96 = scalar_select %p93, %s94, %s95
    %p99 = pneg %p93
    %p100 = scmp.eq.s32.totalorder %s11, 1
    %p101 = por %p99, %p100
    %p102 = scmp.ne.s32.totalorder %s94, %s97
    %p103 = scmp.eq.s32.totalorder %s11, 0
    %p104 = por %p102, %p103
    %p105 = scmp.ne.s32.totalorder %s94, %s97
    %p106 = scmp.eq.s32.totalorder %s16, 1
    %p107 = por %p105, %p106
    %p108 = scmp.ne.s32.totalorder %s97, %s98
    %p109 = scmp.eq.s32.totalorder %s16, 0
    %p110 = por %p108, %p109
    %p111 = scmp.ne.s32.totalorder %s97, %s98
    %p112 = scmp.eq.s32.totalorder %s17, 1
    %p113 = por %p111, %p112
    %p115 = scmp.ne.s32.totalorder %s98, %s114
    %p116 = scmp.eq.s32.totalorder %s17, 0
    %p117 = por %p115, %p116
    %s118 = ssub.s32 %s11, %s18
    %p119 = scmp.eq.s32.totalorder %s118, 0
    %s121 = sadd.s32 %s120, 1
    %s122 = scalar_select %p119, %s120, %s121
    %p125 = pneg %p119
    %p126 = scmp.eq.s32.totalorder %s11, 1
    %p127 = por %p125, %p126
    %p128 = scmp.ne.s32.totalorder %s120, %s123
    %p129 = scmp.eq.s32.totalorder %s11, 0
    %p130 = por %p128, %p129
    %p131 = scmp.ne.s32.totalorder %s120, %s123
    %p132 = scmp.eq.s32.totalorder %s16, 1
    %p133 = por %p131, %p132
    %p134 = scmp.ne.s32.totalorder %s123, %s124
    %p135 = scmp.eq.s32.totalorder %s16, 0
    %p136 = por %p134, %p135
    %p137 = scmp.ne.s32.totalorder %s123, %s124
    %p138 = scmp.eq.s32.totalorder %s17, 1
    %p139 = por %p137, %p138
    %p141 = scmp.ne.s32.totalorder %s124, %s140
    %p142 = scmp.eq.s32.totalorder %s17, 0
    %p143 = por %p141, %p142
    %p144 = scmp.le.s32.totalorder 1, %s11
    %p145 = scmp.lt.s32.totalorder %s11, 3
    %p146 = pnand %p144, %p145
    %p147 = pneg %p146
    // Predicated region
    $region9: #{resnet_forward.32} parent=5 // pred_check
      _
    $region10: #{resnet_forward.32} parent=5 // pred_check_branch
      %149 = sbr.rel (%p146) target = $region12
    $region11: #{resnet_forward.32} parent=5 // pred_region
      %s150 = ssub.s32 %s11, 1
      // Predicated region
      $region13: #{resnet_forward.32} parent=11 // pred_check
        %p151 = pneg %p58
      $region14: #{resnet_forward.32} parent=11 // pred_check_branch
        %153 = sbr.rel (%p151) target = $region16
      $region15: #{resnet_forward.32} parent=11 // pred_region
        _
      $region16: #{resnet_forward.32} parent=11 // pred_fallthru
        _
    $region12: #{resnet_forward.32} parent=5 // pred_fallthru
      _
    %p154 = scmp.lt.s32.totalorder %s11, 2
    // Predicated region
    $region17: #{resnet_forward.32} parent=5 // pred_check
      %p155 = pneg %p154
    $region18: #{resnet_forward.32} parent=5 // pred_check_branch
      %157 = sbr.rel (%p155) target = $region20
    $region19: #{resnet_forward.32} parent=5 // pred_region
      // Predicated region
      $region21: #{resnet_forward.32} parent=19 // pred_check
        %p158 = pneg %p31
      $region22: #{resnet_forward.32} parent=19 // pred_check_branch
        %160 = sbr.rel (%p158) target = $region24
      $region23: #{resnet_forward.32} parent=19 // pred_region
        %s161 = smul.u32 32, %s11
        %p162 = scmp.lt.s32.totalorder %s161, 63
        %s163 = scalar_select %p162, %s161, 63
        %s164 = smul.addr %s163, 4
        %s165 = scalar_lea.vmem %s0, %s164
        %s166 = smul.u32 32, %s11
      $region24: #{resnet_forward.32} parent=19 // pred_fallthru
        _
    $region20: #{resnet_forward.32} parent=5 // pred_fallthru
      _
    %p167 = scmp.le.s32.totalorder 1, %s11
    %p168 = scmp.lt.s32.totalorder %s11, 3
    %p169 = pnand %p167, %p168
    %p170 = pneg %p169
    // Predicated region
    $region25: #{resnet_forward.32} parent=5 // pred_check
      _
    $region26: #{resnet_forward.32} parent=5 // pred_check_branch
      %172 = sbr.rel (%p169) target = $region28
    $region27: #{resnet_forward.32} parent=5 // pred_region
      %s173 = ssub.s32 %s11, 1
      %s174 = smul.u32 32, %s16
      %p175 = scmp.lt.s32.totalorder %s174, 63
      %s176 = scalar_select %p175, %s174, 63
      %s177 = smul.addr %s176, 4
      %s178 = scalar_lea.vmem %s0, %s177
      %p179 = pneg %p37
      %p180 = pneg %p34
      %p181 = pneg %p58
      %p182 = pneg %p55
      %p183 = pneg %p84
      %p184 = pneg %p81
      %s185 = smul.u32 32, %s16
      %p186 = scmp.lt.s32.totalorder %s185, 63
      %s187 = scalar_select %p186, %s185, 63
      %s188 = smul.addr %s187, 8
      %s189 = scalar_lea.vmem %s2, %s188
      %p190 = pneg %p110
      %p191 = pneg %p107
      %p192 = scmp.lt.s32.totalorder %s16, 1
      %s193 = scalar_select %p192, %s16, 1
      %s194 = scalar_lea.vmem %s3, %s193
      %p195 = pneg %p136
      %p196 = pneg %p133
      %p197 = scmp.lt.s32.totalorder %s16, 1
      %s198 = scalar_select %p197, %s16, 1
      %s199 = scalar_lea.vmem %s4, %s198
      %s200 = smul.u32 32, %s16
      %p201 = scmp.lt.s32.totalorder %s200, 63
      %s202 = scalar_select %p201, %s200, 63
      %s203 = smul.addr %s202, 4
      %s204 = scalar_lea.vmem %s0, %s203
      %s205 = smul.u32 32, %s16
      %s206 = smul.u32 32, %s16
      %p207 = scmp.lt.s32.totalorder %s206, 63
      %s208 = scalar_select %p207, %s206, 63
      %s209 = smul.addr %s208, 8
      %s210 = scalar_lea.vmem %s2, %s209
      %s211 = smul.u32 32, %s16
      %p212 = scmp.lt.s32.totalorder %s16, 1
      %s213 = scalar_select %p212, %s16, 1
      %s214 = scalar_lea.vmem %s3, %s213
      %p215 = scmp.lt.s32.totalorder %s16, 1
      %s216 = scalar_select %p215, %s16, 1
      %s217 = scalar_lea.vmem %s4, %s216
      %v219 = vld [vmem:[%s204] sm:$0xf]
      %v220 = vld [vmem:[%s204 + $0x4] sm:$0xf]
      %v221 = vld [vmem:[%s204 + $0x8] sm:$0xf]
      %v222 = vld [vmem:[%s204 + $0xc] sm:$0xf]
      %v223 = vld [vmem:[%s204 + $0x10] sm:$0xf]
      %v224 = vld [vmem:[%s204 + $0x14] sm:$0xf]
      %v225 = vld [vmem:[%s204 + $0x18] sm:$0xf]
      %v226 = vld [vmem:[%s204 + $0x1c] sm:$0xf]
      %v227 = vld [vmem:[%s204 + $0x20] sm:$0xf]
      %v228 = vld [vmem:[%s204 + $0x24] sm:$0xf]
      %v229 = vld [vmem:[%s204 + $0x28] sm:$0xf]
      %v230 = vld [vmem:[%s204 + $0x2c] sm:$0xf]
      %v231 = vld [vmem:[%s204 + $0x30] sm:$0xf]
      %v232 = vld [vmem:[%s204 + $0x34] sm:$0xf]
      %v233 = vld [vmem:[%s204 + $0x38] sm:$0xf]
      %v234 = vld [vmem:[%s204 + $0x3c] sm:$0xf]
      %v235 = vld [vmem:[%s204 + $0x40] sm:$0xf]
      %v236 = vld [vmem:[%s204 + $0x44] sm:$0xf]
      %v237 = vld [vmem:[%s204 + $0x48] sm:$0xf]
      %v238 = vld [vmem:[%s204 + $0x4c] sm:$0xf]
      %v239 = vld [vmem:[%s204 + $0x50] sm:$0xf]
      %v240 = vld [vmem:[%s204 + $0x54] sm:$0xf]
      %v241 = vld [vmem:[%s204 + $0x58] sm:$0xf]
      %v242 = vld [vmem:[%s204 + $0x5c] sm:$0xf]
      %v243 = vld [vmem:[%s204 + $0x60] sm:$0xf]
      %v244 = vld [vmem:[%s204 + $0x64] sm:$0xf]
      %v245 = vld [vmem:[%s204 + $0x68] sm:$0xf]
      %v246 = vld [vmem:[%s204 + $0x6c] sm:$0xf]
      %v247 = vld [vmem:[%s204 + $0x70] sm:$0xf]
      %v248 = vld [vmem:[%s204 + $0x74] sm:$0xf]
      %v249 = vld [vmem:[%s204 + $0x78] sm:$0xf]
      %v250 = vld [vmem:[%s204 + $0x7c] sm:$0xf]
      %v251 = vld [vmem:[%s1] sm:$0xf]
      %v252 = vld [vmem:[%s1 + $0x4] sm:$0xf]
      %v253 = vld [vmem:[%s1 + $0x8] sm:$0xf]
      %v254 = vld [vmem:[%s1 + $0xc] sm:$0xf]
      %v255 = vld [vmem:[%s1 + $0x10] sm:$0xf]
      %v256 = vld [vmem:[%s1 + $0x14] sm:$0xf]
      %v257 = vld [vmem:[%s1 + $0x18] sm:$0xf]
      %v258 = vld [vmem:[%s1 + $0x1c] sm:$0xf]
      %v259 = vld [vmem:[%s1 + $0x20] sm:$0xf]
      %v292 = vunpack.c.l.b16 %v219
      %v293 = vunpack.c.l.b16 %v220
      %v294 = vunpack.c.l.b16 %v221
      %v295 = vunpack.c.l.b16 %v222
      %v296 = vunpack.c.l.b16 %v223
      %v297 = vunpack.c.l.b16 %v224
      %v298 = vunpack.c.l.b16 %v225
      %v299 = vunpack.c.l.b16 %v226
      %v300 = vunpack.c.l.b16 %v227
      %v301 = vunpack.c.l.b16 %v228
      %v302 = vunpack.c.l.b16 %v229
      %v303 = vunpack.c.l.b16 %v230
      %v304 = vunpack.c.l.b16 %v231
      %v305 = vunpack.c.l.b16 %v232
      %v306 = vunpack.c.l.b16 %v233
      %v307 = vunpack.c.l.b16 %v234
      %v308 = vunpack.c.l.b16 %v235
      %v309 = vunpack.c.l.b16 %v236
      %v310 = vunpack.c.l.b16 %v237
      %v311 = vunpack.c.l.b16 %v238
      %v312 = vunpack.c.l.b16 %v239
      %v313 = vunpack.c.l.b16 %v240
      %v314 = vunpack.c.l.b16 %v241
      %v315 = vunpack.c.l.b16 %v242
      %v316 = vunpack.c.l.b16 %v243
      %v317 = vunpack.c.l.b16 %v244
      %v318 = vunpack.c.l.b16 %v245
      %v319 = vunpack.c.l.b16 %v246
      %v320 = vunpack.c.l.b16 %v247
      %v321 = vunpack.c.l.b16 %v248
      %v322 = vunpack.c.l.b16 %v249
      %v323 = vunpack.c.l.b16 %v250
      %v324 = vpack.c.b16 %v293, %v292
      %v325 = vpack.c.b16 %v295, %v294
      %v326 = vpack.c.b16 %v297, %v296
      %v327 = vpack.c.b16 %v299, %v298
      %v328 = vpack.c.b16 %v301, %v300
      %v329 = vpack.c.b16 %v303, %v302
      %v330 = vpack.c.b16 %v305, %v304
      %v331 = vpack.c.b16 %v307, %v306
      %v332 = vpack.c.b16 %v309, %v308
      %v333 = vpack.c.b16 %v311, %v310
      %v334 = vpack.c.b16 %v313, %v312
      %v335 = vpack.c.b16 %v315, %v314
      %v336 = vpack.c.b16 %v317, %v316
      %v337 = vpack.c.b16 %v319, %v318
      %v338 = vpack.c.b16 %v321, %v320
      %v339 = vpack.c.b16 %v323, %v322
      %v349 = vunpack.c.l.b16 %v251
      %v350 = vunpack.c.l.b16 %v252
      %v351 = vunpack.c.l.b16 %v253
      %v352 = vunpack.c.l.b16 %v254
      %v353 = vunpack.c.l.b16 %v255
      %v354 = vunpack.c.l.b16 %v256
      %v355 = vunpack.c.l.b16 %v257
      %v356 = vunpack.c.l.b16 %v258
      %v357 = vunpack.c.l.b16 %v259
      %v358 = vpack.c.b16 %v350, %v349
      %v359 = vpack.c.b16 %v352, %v351
      %v360 = vpack.c.b16 %v354, %v353
      %v361 = vpack.c.b16 %v356, %v355
      %v362 = vpack.c.b16 %v357, %v357
      %vm367 = vcmask 588800
      %v369 = vsel %vm367, %v324, 0
      %v372 = vsel %vm367, %v325, 0
      %v375 = vsel %vm367, %v326, 0
      %v378 = vsel %vm367, %v327, 0
      %v381 = vsel %vm367, %v328, 0
      %v384 = vsel %vm367, %v329, 0
      %v387 = vsel %vm367, %v330, 0
      %v390 = vsel %vm367, %v331, 0
      %v393 = vsel %vm367, %v332, 0
      %v396 = vsel %vm367, %v333, 0
      %v399 = vsel %vm367, %v334, 0
      %v402 = vsel %vm367, %v335, 0
      %v405 = vsel %vm367, %v336, 0
      %v408 = vsel %vm367, %v337, 0
      %v411 = vsel %vm367, %v338, 0
      %v414 = vsel %vm367, %v339, 0
      %vm416 = vcmask 1043456
      %v418 = vsel %vm416, %v362, 0
      %420 = vmatprep.subr.bf16.mxu0 0
      %421 = vmatpush1.bf16.msra.mxu0 0
      %422 = vmatprep.subr.bf16.mxu0 0
      %423 = vmatpush1.bf16.msra.mxu0 0
      %424 = vmatprep.subr.bf16.mxu0 0
      %425 = vmatpush1.bf16.msra.mxu0 0
      %426 = vmatprep.subr.bf16.mxu0 0
      %427 = vmatpush1.bf16.msra.mxu0 %v418
      %428 = vmatprep.subr.bf16.mxu0 0
      %429 = vmatpush1.bf16.msra.mxu0 %v361
      %430 = vmatprep.subr.bf16.mxu0 0
      %431 = vmatpush1.bf16.msra.mxu0 %v360
      %432 = vmatprep.subr.bf16.mxu0 0
      %433 = vmatpush1.bf16.msra.mxu0 %v359
      %434 = vmatprep.subr.bf16.mxu0 0
      %435 = vmatpush1.bf16.msra.mxu0 %v358
      %436 = vmatprep.subr.bf16.mxu0 0
      %437 = vmatpush2.bf16.msra.mxu0 0
      %438 = vmatprep.subr.bf16.mxu0 0
      %439 = vmatpush2.bf16.msra.mxu0 0
      %440 = vmatprep.subr.bf16.mxu0 0
      %441 = vmatpush2.bf16.msra.mxu0 0
      %442 = vmatprep.subr.bf16.mxu0 0
      %443 = vmatpush2.bf16.msra.mxu0 0
      %444 = vmatprep.subr.bf16.mxu0 0
      %445 = vmatpush2.bf16.msra.mxu0 0
      %446 = vmatprep.subr.bf16.mxu0 0
      %447 = vmatpush2.bf16.msra.mxu0 0
      %448 = vmatprep.subr.bf16.mxu0 0
      %449 = vmatpush2.bf16.msra.mxu0 0
      %450 = vmatprep.subr.bf16.mxu0 0
      %451 = vmatpush2.bf16.msra.mxu0 0
      %452 = vmatprep.mubr.bf16.mxu0 0
      %453 = vmatmul.mubr.bf16.gmra.mxu0 %v369
      %v454 = vpop.f32.mrf.mxu0
      %v455 = vadd.f32 0.0, %v454
      %v456 = vpop.f32.mrf.mxu0
      %v457 = vpop.f32.mrf.mxu0
      %v458 = vadd.f32 0.0, %v457
      %v459 = vpop.f32.mrf.mxu0
      %460 = vmatprep.mubr.bf16.mxu0 0
      %461 = vmatmul.mubr.bf16.gmra.mxu0 %v372
      %v462 = vpop.f32.mrf.mxu0
      %v463 = vadd.f32 0.0, %v462
      %v464 = vpop.f32.mrf.mxu0
      %v465 = vpop.f32.mrf.mxu0
      %v466 = vadd.f32 0.0, %v465
      %v467 = vpop.f32.mrf.mxu0
      %468 = vmatprep.mubr.bf16.mxu0 0
      %469 = vmatmul.mubr.bf16.gmra.mxu0 %v375
      %v470 = vpop.f32.mrf.mxu0
      %v471 = vadd.f32 0.0, %v470
      %v472 = vpop.f32.mrf.mxu0
      %v473 = vpop.f32.mrf.mxu0
      %v474 = vadd.f32 0.0, %v473
      %v475 = vpop.f32.mrf.mxu0
      %476 = vmatprep.mubr.bf16.mxu0 0
      %477 = vmatmul.mubr.bf16.gmra.mxu0 %v378
      %v478 = vpop.f32.mrf.mxu0
      %v479 = vadd.f32 0.0, %v478
      %v480 = vpop.f32.mrf.mxu0
      %v481 = vpop.f32.mrf.mxu0
      %v482 = vadd.f32 0.0, %v481
      %v483 = vpop.f32.mrf.mxu0
      %484 = vmatprep.mubr.bf16.mxu0 0
      %485 = vmatmul.mubr.bf16.gmra.mxu0 %v381
      %v486 = vpop.f32.mrf.mxu0
      %v487 = vadd.f32 0.0, %v486
      %v488 = vpop.f32.mrf.mxu0
      %v489 = vpop.f32.mrf.mxu0
      %v490 = vadd.f32 0.0, %v489
      %v491 = vpop.f32.mrf.mxu0
      %492 = vmatprep.mubr.bf16.mxu0 0
      %493 = vmatmul.mubr.bf16.gmra.mxu0 %v384
      %v494 = vpop.f32.mrf.mxu0
      %v495 = vadd.f32 0.0, %v494
      %v496 = vpop.f32.mrf.mxu0
      %v497 = vpop.f32.mrf.mxu0
      %v498 = vadd.f32 0.0, %v497
      %v499 = vpop.f32.mrf.mxu0
      %500 = vmatprep.mubr.bf16.mxu0 0
      %501 = vmatmul.mubr.bf16.gmra.mxu0 %v387
      %v502 = vpop.f32.mrf.mxu0
      %v503 = vadd.f32 0.0, %v502
      %v504 = vpop.f32.mrf.mxu0
      %v505 = vpop.f32.mrf.mxu0
      %v506 = vadd.f32 0.0, %v505
      %v507 = vpop.f32.mrf.mxu0
      %508 = vmatprep.mubr.bf16.mxu0 0
      %509 = vmatmul.mubr.bf16.gmra.mxu0 %v390
      %v510 = vpop.f32.mrf.mxu0
      %v511 = vadd.f32 0.0, %v510
      %v512 = vpop.f32.mrf.mxu0
      %v513 = vpop.f32.mrf.mxu0
      %v514 = vadd.f32 0.0, %v513
      %v515 = vpop.f32.mrf.mxu0
      %516 = vmatprep.mubr.bf16.mxu0 0
      %517 = vmatmul.mubr.bf16.gmra.mxu0 %v393
      %v518 = vpop.f32.mrf.mxu0
      %v519 = vadd.f32 0.0, %v518
      %v520 = vpop.f32.mrf.mxu0
      %v521 = vpop.f32.mrf.mxu0
      %v522 = vadd.f32 0.0, %v521
      %v523 = vpop.f32.mrf.mxu0
      %524 = vmatprep.mubr.bf16.mxu0 0
      %525 = vmatmul.mubr.bf16.gmra.mxu0 %v396
      %v526 = vpop.f32.mrf.mxu0
      %v527 = vadd.f32 0.0, %v526
      %v528 = vpop.f32.mrf.mxu0
      %v529 = vpop.f32.mrf.mxu0
      %v530 = vadd.f32 0.0, %v529
      %v531 = vpop.f32.mrf.mxu0
      %532 = vmatprep.mubr.bf16.mxu0 0
      %533 = vmatmul.mubr.bf16.gmra.mxu0 %v399
      %v534 = vpop.f32.mrf.mxu0
      %v535 = vadd.f32 0.0, %v534
      %v536 = vpop.f32.mrf.mxu0
      %v537 = vpop.f32.mrf.mxu0
      %v538 = vadd.f32 0.0, %v537
      %v539 = vpop.f32.mrf.mxu0
      %540 = vmatprep.mubr.bf16.mxu0 0
      %541 = vmatmul.mubr.bf16.gmra.mxu0 %v402
      %v542 = vpop.f32.mrf.mxu0
      %v543 = vadd.f32 0.0, %v542
      %v544 = vpop.f32.mrf.mxu0
      %v545 = vpop.f32.mrf.mxu0
      %v546 = vadd.f32 0.0, %v545
      %v547 = vpop.f32.mrf.mxu0
      %548 = vmatprep.mubr.bf16.mxu0 0
      %549 = vmatmul.mubr.bf16.gmra.mxu0 %v405
      %v550 = vpop.f32.mrf.mxu0
      %v551 = vadd.f32 0.0, %v550
      %v552 = vpop.f32.mrf.mxu0
      %v553 = vpop.f32.mrf.mxu0
      %v554 = vadd.f32 0.0, %v553
      %v555 = vpop.f32.mrf.mxu0
      %556 = vmatprep.mubr.bf16.mxu0 0
      %557 = vmatmul.mubr.bf16.gmra.mxu0 %v408
      %v558 = vpop.f32.mrf.mxu0
      %v559 = vadd.f32 0.0, %v558
      %v560 = vpop.f32.mrf.mxu0
      %v561 = vpop.f32.mrf.mxu0
      %v562 = vadd.f32 0.0, %v561
      %v563 = vpop.f32.mrf.mxu0
      %564 = vmatprep.mubr.bf16.mxu0 0
      %565 = vmatmul.mubr.bf16.gmra.mxu0 %v411
      %v566 = vpop.f32.mrf.mxu0
      %v567 = vadd.f32 0.0, %v566
      %v568 = vpop.f32.mrf.mxu0
      %v569 = vpop.f32.mrf.mxu0
      %v570 = vadd.f32 0.0, %v569
      %v571 = vpop.f32.mrf.mxu0
      %572 = vmatprep.mubr.bf16.mxu0 0
      %573 = vmatmul.mubr.bf16.gmra.mxu0 %v414
      %v574 = vpop.f32.mrf.mxu0
      %v575 = vadd.f32 0.0, %v574
      %v576 = vpop.f32.mrf.mxu0
      %v577 = vpop.f32.mrf.mxu0
      %v578 = vadd.f32 0.0, %v577
      %v579 = vpop.f32.mrf.mxu0
      %580 = vdwg.mxu0
      %vm581 = vcmask 64512
      %582 = vst.msk [vmem:[%s210] sm:$0xff] %vm581, %v455
      %583 = vst.msk [vmem:[%s210 + $0x8] sm:$0xff] %vm581, %v458
      %584 = vst.msk [vmem:[%s210 + $0x10] sm:$0xff] %vm581, %v463
      %585 = vst.msk [vmem:[%s210 + $0x18] sm:$0xff] %vm581, %v466
      %586 = vst.msk [vmem:[%s210 + $0x20] sm:$0xff] %vm581, %v471
      %587 = vst.msk [vmem:[%s210 + $0x28] sm:$0xff] %vm581, %v474
      %588 = vst.msk [vmem:[%s210 + $0x30] sm:$0xff] %vm581, %v479
      %589 = vst.msk [vmem:[%s210 + $0x38] sm:$0xff] %vm581, %v482
      %590 = vst.msk [vmem:[%s210 + $0x40] sm:$0xff] %vm581, %v487
      %591 = vst.msk [vmem:[%s210 + $0x48] sm:$0xff] %vm581, %v490
      %592 = vst.msk [vmem:[%s210 + $0x50] sm:$0xff] %vm581, %v495
      %593 = vst.msk [vmem:[%s210 + $0x58] sm:$0xff] %vm581, %v498
      %594 = vst.msk [vmem:[%s210 + $0x60] sm:$0xff] %vm581, %v503
      %595 = vst.msk [vmem:[%s210 + $0x68] sm:$0xff] %vm581, %v506
      %596 = vst.msk [vmem:[%s210 + $0x70] sm:$0xff] %vm581, %v511
      %597 = vst.msk [vmem:[%s210 + $0x78] sm:$0xff] %vm581, %v514
      %598 = vst.msk [vmem:[%s210 + $0x80] sm:$0xff] %vm581, %v519
      %599 = vst.msk [vmem:[%s210 + $0x88] sm:$0xff] %vm581, %v522
      %600 = vst.msk [vmem:[%s210 + $0x90] sm:$0xff] %vm581, %v527
      %601 = vst.msk [vmem:[%s210 + $0x98] sm:$0xff] %vm581, %v530
      %602 = vst.msk [vmem:[%s210 + $0xa0] sm:$0xff] %vm581, %v535
      %603 = vst.msk [vmem:[%s210 + $0xa8] sm:$0xff] %vm581, %v538
      %604 = vst.msk [vmem:[%s210 + $0xb0] sm:$0xff] %vm581, %v543
      %605 = vst.msk [vmem:[%s210 + $0xb8] sm:$0xff] %vm581, %v546
      %606 = vst.msk [vmem:[%s210 + $0xc0] sm:$0xff] %vm581, %v551
      %607 = vst.msk [vmem:[%s210 + $0xc8] sm:$0xff] %vm581, %v554
      %608 = vst.msk [vmem:[%s210 + $0xd0] sm:$0xff] %vm581, %v559
      %609 = vst.msk [vmem:[%s210 + $0xd8] sm:$0xff] %vm581, %v562
      %610 = vst.msk [vmem:[%s210 + $0xe0] sm:$0xff] %vm581, %v567
      %611 = vst.msk [vmem:[%s210 + $0xe8] sm:$0xff] %vm581, %v570
      %612 = vst.msk [vmem:[%s210 + $0xf0] sm:$0xff] %vm581, %v575
      %613 = vst.msk [vmem:[%s210 + $0xf8] sm:$0xff] %vm581, %v578
      %v614 = vsel %vm581, %v455, 0.0
      %v615 = vsel %vm581, %v458, 0.0
      %v616 = vadd.f32 %v614, %v615
      %v617 = vsel %vm581, %v463, 0.0
      %v618 = vadd.f32 %v616, %v617
      %v619 = vsel %vm581, %v466, 0.0
      %v620 = vadd.f32 %v618, %v619
      %v621 = vsel %vm581, %v471, 0.0
      %v622 = vadd.f32 %v620, %v621
      %v623 = vsel %vm581, %v474, 0.0
      %v624 = vadd.f32 %v622, %v623
      %v625 = vsel %vm581, %v479, 0.0
      %v626 = vadd.f32 %v624, %v625
      %v627 = vsel %vm581, %v482, 0.0
      %v628 = vadd.f32 %v626, %v627
      %v629 = vsel %vm581, %v487, 0.0
      %v630 = vadd.f32 %v628, %v629
      %v631 = vsel %vm581, %v490, 0.0
      %v632 = vadd.f32 %v630, %v631
      %v633 = vsel %vm581, %v495, 0.0
      %v634 = vadd.f32 %v632, %v633
      %v635 = vsel %vm581, %v498, 0.0
      %v636 = vadd.f32 %v634, %v635
      %v637 = vsel %vm581, %v503, 0.0
      %v638 = vadd.f32 %v636, %v637
      %v639 = vsel %vm581, %v506, 0.0
      %v640 = vadd.f32 %v638, %v639
      %v641 = vsel %vm581, %v511, 0.0
      %v642 = vadd.f32 %v640, %v641
      %v643 = vsel %vm581, %v514, 0.0
      %v644 = vadd.f32 %v642, %v643
      %v645 = vsel %vm581, %v519, 0.0
      %v646 = vadd.f32 %v644, %v645
      %v647 = vsel %vm581, %v522, 0.0
      %v648 = vadd.f32 %v646, %v647
      %v649 = vsel %vm581, %v527, 0.0
      %v650 = vadd.f32 %v648, %v649
      %v651 = vsel %vm581, %v530, 0.0
      %v652 = vadd.f32 %v650, %v651
      %v653 = vsel %vm581, %v535, 0.0
      %v654 = vadd.f32 %v652, %v653
      %v655 = vsel %vm581, %v538, 0.0
      %v656 = vadd.f32 %v654, %v655
      %v657 = vsel %vm581, %v543, 0.0
      %v658 = vadd.f32 %v656, %v657
      %v659 = vsel %vm581, %v546, 0.0
      %v660 = vadd.f32 %v658, %v659
      %v661 = vsel %vm581, %v551, 0.0
      %v662 = vadd.f32 %v660, %v661
      %v663 = vsel %vm581, %v554, 0.0
      %v664 = vadd.f32 %v662, %v663
      %v665 = vsel %vm581, %v559, 0.0
      %v666 = vadd.f32 %v664, %v665
      %v667 = vsel %vm581, %v562, 0.0
      %v668 = vadd.f32 %v666, %v667
      %v669 = vsel %vm581, %v567, 0.0
      %v670 = vadd.f32 %v668, %v669
      %v671 = vsel %vm581, %v570, 0.0
      %v672 = vadd.f32 %v670, %v671
      %v673 = vsel %vm581, %v575, 0.0
      %v674 = vadd.f32 %v672, %v673
      %v675 = vsel %vm581, %v578, 0.0
      %v676 = vadd.f32 %v674, %v675
      %v677 = vrot.slane %v676, 4
      %v678 = vadd.f32 %v676, %v677
      %v679 = vrot.slane %v678, 2
      %v680 = vadd.f32 %v678, %v679
      %v681 = vrot.slane %v680, 1
      %v682 = vadd.f32 %v680, %v681
      %vm683 = vcmask 57344
      %684 = vst.msk [vmem:[%s214] sm:$0x1] %vm683, %v682
      %v685 = vmul.f32 %v455, %v455
      %v686 = vmul.f32 %v458, %v458
      %v687 = vmul.f32 %v463, %v463
      %v688 = vmul.f32 %v466, %v466
      %v689 = vmul.f32 %v471, %v471
      %v690 = vmul.f32 %v474, %v474
      %v691 = vmul.f32 %v479, %v479
      %v692 = vmul.f32 %v482, %v482
      %v693 = vmul.f32 %v487, %v487
      %v694 = vmul.f32 %v490, %v490
      %v695 = vmul.f32 %v495, %v495
      %v696 = vmul.f32 %v498, %v498
      %v697 = vmul.f32 %v503, %v503
      %v698 = vmul.f32 %v506, %v506
      %v699 = vmul.f32 %v511, %v511
      %v700 = vmul.f32 %v514, %v514
      %v701 = vmul.f32 %v519, %v519
      %v702 = vmul.f32 %v522, %v522
      %v703 = vmul.f32 %v527, %v527
      %v704 = vmul.f32 %v530, %v530
      %v705 = vmul.f32 %v535, %v535
      %v706 = vmul.f32 %v538, %v538
      %v707 = vmul.f32 %v543, %v543
      %v708 = vmul.f32 %v546, %v546
      %v709 = vmul.f32 %v551, %v551
      %v710 = vmul.f32 %v554, %v554
      %v711 = vmul.f32 %v559, %v559
      %v712 = vmul.f32 %v562, %v562
      %v713 = vmul.f32 %v567, %v567
      %v714 = vmul.f32 %v570, %v570
      %v715 = vmul.f32 %v575, %v575
      %v716 = vmul.f32 %v578, %v578
      %v717 = vsel %vm581, %v685, 0.0
      %v718 = vsel %vm581, %v686, 0.0
      %v719 = vadd.f32 %v717, %v718
      %v720 = vsel %vm581, %v687, 0.0
      %v721 = vadd.f32 %v719, %v720
      %v722 = vsel %vm581, %v688, 0.0
      %v723 = vadd.f32 %v721, %v722
      %v724 = vsel %vm581, %v689, 0.0
      %v725 = vadd.f32 %v723, %v724
      %v726 = vsel %vm581, %v690, 0.0
      %v727 = vadd.f32 %v725, %v726
      %v728 = vsel %vm581, %v691, 0.0
      %v729 = vadd.f32 %v727, %v728
      %v730 = vsel %vm581, %v692, 0.0
      %v731 = vadd.f32 %v729, %v730
      %v732 = vsel %vm581, %v693, 0.0
      %v733 = vadd.f32 %v731, %v732
      %v734 = vsel %vm581, %v694, 0.0
      %v735 = vadd.f32 %v733, %v734
      %v736 = vsel %vm581, %v695, 0.0
      %v737 = vadd.f32 %v735, %v736
      %v738 = vsel %vm581, %v696, 0.0
      %v739 = vadd.f32 %v737, %v738
      %v740 = vsel %vm581, %v697, 0.0
      %v741 = vadd.f32 %v739, %v740
      %v742 = vsel %vm581, %v698, 0.0
      %v743 = vadd.f32 %v741, %v742
      %v744 = vsel %vm581, %v699, 0.0
      %v745 = vadd.f32 %v743, %v744
      %v746 = vsel %vm581, %v700, 0.0
      %v747 = vadd.f32 %v745, %v746
      %v748 = vsel %vm581, %v701, 0.0
      %v749 = vadd.f32 %v747, %v748
      %v750 = vsel %vm581, %v702, 0.0
      %v751 = vadd.f32 %v749, %v750
      %v752 = vsel %vm581, %v703, 0.0
      %v753 = vadd.f32 %v751, %v752
      %v754 = vsel %vm581, %v704, 0.0
      %v755 = vadd.f32 %v753, %v754
      %v756 = vsel %vm581, %v705, 0.0
      %v757 = vadd.f32 %v755, %v756
      %v758 = vsel %vm581, %v706, 0.0
      %v759 = vadd.f32 %v757, %v758
      %v760 = vsel %vm581, %v707, 0.0
      %v761 = vadd.f32 %v759, %v760
      %v762 = vsel %vm581, %v708, 0.0
      %v763 = vadd.f32 %v761, %v762
      %v764 = vsel %vm581, %v709, 0.0
      %v765 = vadd.f32 %v763, %v764
      %v766 = vsel %vm581, %v710, 0.0
      %v767 = vadd.f32 %v765, %v766
      %v768 = vsel %vm581, %v711, 0.0
      %v769 = vadd.f32 %v767, %v768
      %v770 = vsel %vm581, %v712, 0.0
      %v771 = vadd.f32 %v769, %v770
      %v772 = vsel %vm581, %v713, 0.0
      %v773 = vadd.f32 %v771, %v772
      %v774 = vsel %vm581, %v714, 0.0
      %v775 = vadd.f32 %v773, %v774
      %v776 = vsel %vm581, %v715, 0.0
      %v777 = vadd.f32 %v775, %v776
      %v778 = vsel %vm581, %v716, 0.0
      %v779 = vadd.f32 %v777, %v778
      %v780 = vrot.slane %v779, 4
      %v781 = vadd.f32 %v779, %v780
      %v782 = vrot.slane %v781, 2
      %v783 = vadd.f32 %v781, %v782
      %v784 = vrot.slane %v783, 1
      %v785 = vadd.f32 %v783, %v784
      %786 = vst.msk [vmem:[%s217] sm:$0x1] %vm683, %v785
      %s787 = smul.u32 32, %s16
      %p788 = scmp.lt.s32.totalorder %s787, 63
      %s789 = scalar_select %p788, %s787, 63
      %s790 = smul.addr %s789, 8
      %s791 = scalar_lea.vmem %s2, %s790
      %p792 = scmp.lt.s32.totalorder %s16, 1
      %s793 = scalar_select %p792, %s16, 1
      %s794 = scalar_lea.vmem %s3, %s793
      %p795 = scmp.lt.s32.totalorder %s16, 1
      %s796 = scalar_select %p795, %s16, 1
      %s797 = scalar_lea.vmem %s4, %s796
      // Predicated region
      $region29: #{resnet_forward.32} parent=27 // pred_check
        %p798 = pneg %p81
      $region30: #{resnet_forward.32} parent=27 // pred_check_branch
        %800 = sbr.rel (%p798) target = $region32
      $region31: #{resnet_forward.32} parent=27 // pred_region
        %s801 = smul.u32 32, %s16
      $region32: #{resnet_forward.32} parent=27 // pred_fallthru
        _
      // Predicated region
      $region33: #{resnet_forward.32} parent=27 // pred_check
        %p802 = pneg %p107
      $region34: #{resnet_forward.32} parent=27 // pred_check_branch
        %804 = sbr.rel (%p802) target = $region36
      $region35: #{resnet_forward.32} parent=27 // pred_region
        _
      $region36: #{resnet_forward.32} parent=27 // pred_fallthru
        _
      // Predicated region
      $region37: #{resnet_forward.32} parent=27 // pred_check
        %p805 = pneg %p133
      $region38: #{resnet_forward.32} parent=27 // pred_check_branch
        %807 = sbr.rel (%p805) target = $region40
      $region39: #{resnet_forward.32} parent=27 // pred_region
        _
      $region40: #{resnet_forward.32} parent=27 // pred_fallthru
        _
    $region28: #{resnet_forward.32} parent=5 // pred_fallthru
      _
    %p808 = scmp.le.s32.totalorder 2, %s11
    // Predicated region
    $region41: #{resnet_forward.32} parent=5 // pred_check
      %p809 = pneg %p808
    $region42: #{resnet_forward.32} parent=5 // pred_check_branch
      %811 = sbr.rel (%p809) target = $region44
    $region43: #{resnet_forward.32} parent=5 // pred_region
      %s812 = ssub.s32 %s11, 2
      // Predicated region
      $region45: #{resnet_forward.32} parent=43 // pred_check
        %p813 = pneg %p87
      $region46: #{resnet_forward.32} parent=43 // pred_check_branch
        %815 = sbr.rel (%p813) target = $region48
      $region47: #{resnet_forward.32} parent=43 // pred_region
        %s816 = smul.u32 32, %s17
        %p817 = scmp.lt.s32.totalorder %s816, 63
        %s818 = scalar_select %p817, %s816, 63
        %s819 = smul.addr %s818, 8
        %s820 = scalar_lea.vmem %s2, %s819
      $region48: #{resnet_forward.32} parent=43 // pred_fallthru
        _
      // Predicated region
      $region49: #{resnet_forward.32} parent=43 // pred_check
        %p821 = pneg %p113
      $region50: #{resnet_forward.32} parent=43 // pred_check_branch
        %823 = sbr.rel (%p821) target = $region52
      $region51: #{resnet_forward.32} parent=43 // pred_region
        %p824 = scmp.lt.s32.totalorder %s17, 1
        %s825 = scalar_select %p824, %s17, 1
        %s826 = scalar_lea.vmem %s3, %s825
      $region52: #{resnet_forward.32} parent=43 // pred_fallthru
        _
      // Predicated region
      $region53: #{resnet_forward.32} parent=43 // pred_check
        %p827 = pneg %p139
      $region54: #{resnet_forward.32} parent=43 // pred_check_branch
        %829 = sbr.rel (%p827) target = $region56
      $region55: #{resnet_forward.32} parent=43 // pred_region
        %p830 = scmp.lt.s32.totalorder %s17, 1
        %s831 = scalar_select %p830, %s17, 1
        %s832 = scalar_lea.vmem %s4, %s831
      $region56: #{resnet_forward.32} parent=43 // pred_fallthru
        _
    $region44: #{resnet_forward.32} parent=5 // pred_fallthru
      _
  $region6: #{resnet_forward.32} parent=0 // loop_footer
    %s15 = sadd.s32 1, %s11
  $region7: #{resnet_forward.32} parent=0 // loop_footer_branch
    %10 = sbr.rel target = $region3
  $region8: #{resnet_forward.32} parent=0 // loop_exit
    _

// kernel: resnet_forward.35
$region0: #{resnet_forward.35}
  #allocation0 [shape = 'u32[]', space=smem, size = 0x4, offset = 0x4, fixed_abs, tag = 'smem constant byte address 0x4 - core index']
  #allocation1 [shape = 'u32[144,128]{1,0:T(1,128)}', space=vmem, size = 0x12000, scoped, tag = 'internal scratch']
  %s0 = inlined_call_operand.vmem [shape: f32[32,128], index: 0, kind: input, shape index: {}]
  %s1 = inlined_call_operand.vmem [shape: f32[1,128], index: 1, kind: input, shape index: {}]
  %s2 = inlined_call_operand.vmem [shape: f32[1,128], index: 2, kind: input, shape index: {}]
  %s3 = inlined_call_operand.vmem [shape: f32[32,128], index: 3, kind: input, shape index: {}]
  %s4 = inlined_call_operand.vmem [shape: f32[32,128], index: 4, kind: output, shape index: {}]
  %s5 = sld [smem:[#allocation0]]
  $region26: #{resnet_forward.35} parent=0
    _
  %s7 = ssub.s32 1, %s5
  %s8 = scalar_select 0, %s7, %s5
  // Predicated region
  $region2: #{resnet_forward.35} parent=0 // pred_check
    _
  $region3: #{resnet_forward.35} parent=0 // pred_check_branch
    %10 = sbr.rel (0) target = $region5
  $region4: #{resnet_forward.35} parent=0 // pred_region
    _
  $region5: #{resnet_forward.35} parent=0 // pred_fallthru
    _
  // Predicated region
  $region6: #{resnet_forward.35} parent=0 // pred_check
    _
  $region7: #{resnet_forward.35} parent=0 // pred_check_branch
    %12 = sbr.rel (0) target = $region9
  $region8: #{resnet_forward.35} parent=0 // pred_region
    _
  $region9: #{resnet_forward.35} parent=0 // pred_fallthru
    _
  // Predicated region
  $region10: #{resnet_forward.35} parent=0 // pred_check
    _
  $region11: #{resnet_forward.35} parent=0 // pred_check_branch
    %14 = sbr.rel (0) target = $region13
  $region12: #{resnet_forward.35} parent=0 // pred_region
    _
  $region13: #{resnet_forward.35} parent=0 // pred_fallthru
    _
  // Predicated region
  $region14: #{resnet_forward.35} parent=0 // pred_check
    _
  $region15: #{resnet_forward.35} parent=0 // pred_check_branch
    %16 = sbr.rel (0) target = $region17
  $region16: #{resnet_forward.35} parent=0 // pred_region
    _
  $region17: #{resnet_forward.35} parent=0 // pred_fallthru
    _
  %v17 = vld [vmem:[%s0] sm:$0xff]
  %v18 = vld [vmem:[%s0 + $0x8] sm:$0xff]
  %v19 = vld [vmem:[%s0 + $0x10] sm:$0xff]
  %v20 = vld [vmem:[%s0 + $0x18] sm:$0xff]
  %v21 = vld [vmem:[%s1] sm:$0x1]
  %v23 = vlaneseq
  %v24 = vshrl.u32 %v23, 7
  %v25 = vsub.s32 0, %v24
  %v26 = vrot.slane %v21, %v25
  %v28 = vmul.f32 %v17, %v26
  %v29 = vmul.f32 %v18, %v26
  %v30 = vmul.f32 %v19, %v26
  %v31 = vmul.f32 %v20, %v26
  %v32 = vld [vmem:[%s2] sm:$0x1]
  %v34 = vlaneseq
  %v35 = vshrl.u32 %v34, 7
  %v36 = vsub.s32 0, %v35
  %v37 = vrot.slane %v32, %v36
  %v39 = vadd.f32 %v28, %v37
  %v40 = vadd.f32 %v29, %v37
  %v41 = vadd.f32 %v30, %v37
  %v42 = vadd.f32 %v31, %v37
  %v43 = vld [vmem:[%s3] sm:$0xff]
  %v44 = vld [vmem:[%s3 + $0x8] sm:$0xff]
  %v45 = vld [vmem:[%s3 + $0x10] sm:$0xff]
  %v46 = vld [vmem:[%s3 + $0x18] sm:$0xff]
  %v47 = vadd.f32 %v39, %v43
  %v48 = vadd.f32 %v40, %v44
  %v49 = vadd.f32 %v41, %v45
  %v50 = vadd.f32 %v42, %v46
  %v51 = vmax.f32 %v47, 0.0
  %v52 = vmax.f32 %v48, 0.0
  %v53 = vmax.f32 %v49, 0.0
  %v54 = vmax.f32 %v50, 0.0
  %55 = vst [vmem:[%s4] sm:$0xff] %v51
  %56 = vst [vmem:[%s4 + $0x8] sm:$0xff] %v52
  %57 = vst [vmem:[%s4 + $0x10] sm:$0xff] %v53
  %58 = vst [vmem:[%s4 + $0x18] sm:$0xff] %v54
  // Predicated region
  $region18: #{resnet_forward.35} parent=0 // pred_check
    _
  $region19: #{resnet_forward.35} parent=0 // pred_check_branch
    %60 = sbr.rel (0) target = $region21
  $region20: #{resnet_forward.35} parent=0 // pred_region
    _
  $region21: #{resnet_forward.35} parent=0 // pred_fallthru
    _
  // Predicated region
  $region22: #{resnet_forward.35} parent=0 // pred_check
    _
  $region23: #{resnet_forward.35} parent=0 // pred_check_branch
    %62 = sbr.rel (0) target = $region25
  $region24: #{resnet_forward.35} parent=0 // pred_region
    _
  $region25: #{resnet_forward.35} parent=0 // pred_fallthru
    _

// kernel: tile.183
$region0: #{tile.183}
  #allocation0 [shape = 's32[1]{0}', space=sflag, size = 0x4, scoped, tag = 'scoped memory for tile.183']
  %s0 = inlined_call_operand.vmem [shape: f32[16], index: 0, kind: input, shape index: {}]
  %s1 = inlined_call_operand.vmem [shape: f32[8,16], index: 1, kind: output, shape index: {}]
  // Predicated region
  $region2: #{tile.183} parent=0 // pred_check
    _
  $region3: #{tile.183} parent=0 // pred_check_branch
    %3 = sbr.rel (0) target = $region5
  $region4: #{tile.183} parent=0 // pred_region
    _
  $region5: #{tile.183} parent=0 // pred_fallthru
    _
  %v4 = vld [vmem:[%s0] ss:$0 sm:$0xff]
  %5 = vst [vmem:[%s1] sm:$0xff] %v4

// kernel: tile.184
$region0: #{tile.184}
  %s0 = inlined_call_operand.vmem [shape: f32[8,16], index: 0, kind: input, shape index: {}]
  %s1 = inlined_call_operand.vmem [shape: f32[1,128], index: 1, kind: output, shape index: {}]
  $region1: #{tile.184} parent=0
    #allocation0 [shape = 'u8[4096]{0}', space=vmem, size = 0x1000, scoped, tag = 'scoped mem for output reshape']
    %v2 = vld [vmem:[%s0] sm:$0x1]
    %vm3 = vcmask 130048
    %4 = vst.msk [vmem:[#allocation0] sm:$0x1] %vm3, %v2
    %s5 = scalar_lea.vmem %s0, 7
    %v6 = vld [vmem:[%s5] sm:$0x1]
    %7 = vrot.lane.b32.xlu0 %v6, 112
    %v8 = vpop.permute.xlu0 %7
    %vm9 = vcmask 1048448
    %10 = vst.msk [vmem:[#allocation0] sm:$0x1] %vm9, %v8
    %s11 = scalar_lea.vmem %s0, 6
    %v12 = vld [vmem:[%s11] sm:$0x1]
    %13 = vrot.lane.b32.xlu0 %v12, 96
    %v14 = vpop.permute.xlu0 %13
    %vm15 = vcmask 917248
    %16 = vst.msk [vmem:[#allocation0] sm:$0x1] %vm15, %v14
    %s17 = scalar_lea.vmem %s0, 5
    %v18 = vld [vmem:[%s17] sm:$0x1]
    %19 = vrot.lane.b32.xlu0 %v18, 80
    %v20 = vpop.permute.xlu0 %19
    %vm21 = vcmask 786048
    %22 = vst.msk [vmem:[#allocation0] sm:$0x1] %vm21, %v20
    %s23 = scalar_lea.vmem %s0, 4
    %v24 = vld [vmem:[%s23] sm:$0x1]
    %25 = vrot.lane.b32.xlu0 %v24, 64
    %v26 = vpop.permute.xlu0 %25
    %vm27 = vcmask 654848
    %28 = vst.msk [vmem:[#allocation0] sm:$0x1] %vm27, %v26
    %s29 = scalar_lea.vmem %s0, 3
    %v30 = vld [vmem:[%s29] sm:$0x1]
    %31 = vrot.lane.b32.xlu0 %v30, 48
    %v32 = vpop.permute.xlu0 %31
    %vm33 = vcmask 523648
    %34 = vst.msk [vmem:[#allocation0] sm:$0x1] %vm33, %v32
    %s35 = scalar_lea.vmem %s0, 2
    %v36 = vld [vmem:[%s35] sm:$0x1]
    %37 = vrot.lane.b32.xlu0 %v36, 32
    %v38 = vpop.permute.xlu0 %37
    %vm39 = vcmask 392448
    %40 = vst.msk [vmem:[#allocation0] sm:$0x1] %vm39, %v38
    %s41 = scalar_lea.vmem %s0, 1
    %v42 = vld [vmem:[%s41] sm:$0x1]
    %43 = vrot.lane.b32.xlu0 %v42, 16
    %v44 = vpop.permute.xlu0 %43
    %vm45 = vcmask 261248
    %46 = vst.msk [vmem:[#allocation0] sm:$0x1] %vm45, %v44
    %s48 = sshll.u32 1, 1
    %s49 = ssub.s32 %s48, 1
    %v51 = vld [vmem:[#allocation0] sm:%s49]
    %s52 = sshll.u32 1, 1
    %s53 = ssub.s32 %s52, 1
    %54 = vst [vmem:[%s1] sm:%s53] %v51

// kernel: resnet_forward.41
$region0: #{resnet_forward.41}
  #allocation0 [shape = 'u32[]', space=smem, size = 0x4, offset = 0x4, fixed_abs, tag = 'smem constant byte address 0x4 - core index']
  #allocation1 [shape = 'u32[144,128]{1,0:T(1,128)}', space=vmem, size = 0x12000, scoped, tag = 'internal scratch']
  %s0 = inlined_call_operand.vmem [shape: f32[16,128], index: 0, kind: input, shape index: {}]
  %s1 = inlined_call_operand.vmem [shape: f32[1,128], index: 1, kind: input, shape index: {}]
  %s2 = inlined_call_operand.vmem [shape: f32[1,128], index: 2, kind: input, shape index: {}]
  %s3 = inlined_call_operand.vmem [shape: f32[16,128], index: 3, kind: output, shape index: {}]
  %s4 = sld [smem:[#allocation0]]
  $region22: #{resnet_forward.41} parent=0
    _
  %s6 = ssub.s32 1, %s4
  %s7 = scalar_select 0, %s6, %s4
  // Predicated region
  $region2: #{resnet_forward.41} parent=0 // pred_check
    _
  $region3: #{resnet_forward.41} parent=0 // pred_check_branch
    %9 = sbr.rel (0) target = $region5
  $region4: #{resnet_forward.41} parent=0 // pred_region
    _
  $region5: #{resnet_forward.41} parent=0 // pred_fallthru
    _
  // Predicated region
  $region6: #{resnet_forward.41} parent=0 // pred_check
    _
  $region7: #{resnet_forward.41} parent=0 // pred_check_branch
    %11 = sbr.rel (0) target = $region9
  $region8: #{resnet_forward.41} parent=0 // pred_region
    _
  $region9: #{resnet_forward.41} parent=0 // pred_fallthru
    _
  // Predicated region
  $region10: #{resnet_forward.41} parent=0 // pred_check
    _
  $region11: #{resnet_forward.41} parent=0 // pred_check_branch
    %13 = sbr.rel (0) target = $region13
  $region12: #{resnet_forward.41} parent=0 // pred_region
    _
  $region13: #{resnet_forward.41} parent=0 // pred_fallthru
    _
  %v14 = vld [vmem:[%s0] sm:$0xff]
  %v15 = vld [vmem:[%s0 + $0x8] sm:$0xff]
  %v16 = vld [vmem:[%s1] sm:$0x1]
  %v18 = vlaneseq
  %v19 = vshrl.u32 %v18, 7
  %v20 = vsub.s32 0, %v19
  %v21 = vrot.slane %v16, %v20
  %v23 = vmul.f32 %v14, %v21
  %v24 = vmul.f32 %v15, %v21
  %v25 = vld [vmem:[%s2] sm:$0x1]
  %v27 = vlaneseq
  %v28 = vshrl.u32 %v27, 7
  %v29 = vsub.s32 0, %v28
  %v30 = vrot.slane %v25, %v29
  %v32 = vadd.f32 %v23, %v30
  %v33 = vadd.f32 %v24, %v30
  %v34 = vmax.f32 %v32, 0.0
  %v35 = vmax.f32 %v33, 0.0
  %36 = vst [vmem:[%s3] sm:$0xff] %v34
  %37 = vst [vmem:[%s3 + $0x8] sm:$0xff] %v35
  // Predicated region
  $region14: #{resnet_forward.41} parent=0 // pred_check
    _
  $region15: #{resnet_forward.41} parent=0 // pred_check_branch
    %39 = sbr.rel (0) target = $region17
  $region16: #{resnet_forward.41} parent=0 // pred_region
    _
  $region17: #{resnet_forward.41} parent=0 // pred_fallthru
    _
  // Predicated region
  $region18: #{resnet_forward.41} parent=0 // pred_check
    _
  $region19: #{resnet_forward.41} parent=0 // pred_check_branch
    %41 = sbr.rel (0) target = $region21
  $region20: #{resnet_forward.41} parent=0 // pred_region
    _
  $region21: #{resnet_forward.41} parent=0 // pred_fallthru
    _

// kernel: resnet_forward.40
$region0: #{resnet_forward.40}
  #allocation0 [shape = 'u32[]', space=smem, size = 0x4, offset = 0x4, fixed_abs, tag = 'smem constant byte address 0x4 - core index']
  #allocation1 [shape = 'u32[144,128]{1,0:T(1,128)}', space=vmem, size = 0x12000, scoped, tag = 'internal scratch']
  %s0 = inlined_call_operand.vmem [shape: bf16[128,72], index: 0, kind: input, shape index: {}]
  %s1 = inlined_call_operand.vmem [shape: bf16[72,16], index: 1, kind: input, shape index: {}]
  %s2 = inlined_call_operand.vmem [shape: f32[128,16], index: 2, kind: output, shape index: {0}]
  %s3 = inlined_call_operand.vmem [shape: f32[1,1,16], index: 3, kind: output, shape index: {1}]
  %s4 = inlined_call_operand.vmem [shape: f32[1,1,16], index: 4, kind: output, shape index: {2}]
  %5 = xla_tuple %s2, %s3, %s4
  %s6 = sld [smem:[#allocation0]]
  $region34: #{resnet_forward.40} parent=0
    _
  %s8 = ssub.s32 1, %s6
  %s9 = scalar_select 0, %s8, %s6
  // Predicated region
  $region2: #{resnet_forward.40} parent=0 // pred_check
    _
  $region3: #{resnet_forward.40} parent=0 // pred_check_branch
    %11 = sbr.rel (0) target = $region5
  $region4: #{resnet_forward.40} parent=0 // pred_region
    _
  $region5: #{resnet_forward.40} parent=0 // pred_fallthru
    _
  // Predicated region
  $region6: #{resnet_forward.40} parent=0 // pred_check
    _
  $region7: #{resnet_forward.40} parent=0 // pred_check_branch
    %13 = sbr.rel (0) target = $region9
  $region8: #{resnet_forward.40} parent=0 // pred_region
    _
  $region9: #{resnet_forward.40} parent=0 // pred_fallthru
    _
  %v15 = vld [vmem:[%s0] sm:$0xf]
  %v16 = vld [vmem:[%s0 + $0x4] sm:$0xf]
  %v17 = vld [vmem:[%s0 + $0x8] sm:$0xf]
  %v18 = vld [vmem:[%s0 + $0xc] sm:$0xf]
  %v19 = vld [vmem:[%s0 + $0x10] sm:$0xf]
  %v20 = vld [vmem:[%s0 + $0x14] sm:$0xf]
  %v21 = vld [vmem:[%s0 + $0x18] sm:$0xf]
  %v22 = vld [vmem:[%s0 + $0x1c] sm:$0xf]
  %v23 = vld [vmem:[%s0 + $0x20] sm:$0xf]
  %v24 = vld [vmem:[%s0 + $0x24] sm:$0xf]
  %v25 = vld [vmem:[%s0 + $0x28] sm:$0xf]
  %v26 = vld [vmem:[%s0 + $0x2c] sm:$0xf]
  %v27 = vld [vmem:[%s0 + $0x30] sm:$0xf]
  %v28 = vld [vmem:[%s0 + $0x34] sm:$0xf]
  %v29 = vld [vmem:[%s0 + $0x38] sm:$0xf]
  %v30 = vld [vmem:[%s0 + $0x3c] sm:$0xf]
  %v31 = vld [vmem:[%s1] sm:$0xf]
  %v32 = vld [vmem:[%s1 + $0x4] sm:$0xf]
  %v33 = vld [vmem:[%s1 + $0x8] sm:$0xf]
  %v34 = vld [vmem:[%s1 + $0xc] sm:$0xf]
  %v35 = vld [vmem:[%s1 + $0x10] sm:$0xf]
  %v36 = vld [vmem:[%s1 + $0x14] sm:$0xf]
  %v37 = vld [vmem:[%s1 + $0x18] sm:$0xf]
  %v38 = vld [vmem:[%s1 + $0x1c] sm:$0xf]
  %v39 = vld [vmem:[%s1 + $0x20] sm:$0xf]
  %v56 = vunpack.c.l.b16 %v15
  %v57 = vunpack.c.l.b16 %v16
  %v58 = vunpack.c.l.b16 %v17
  %v59 = vunpack.c.l.b16 %v18
  %v60 = vunpack.c.l.b16 %v19
  %v61 = vunpack.c.l.b16 %v20
  %v62 = vunpack.c.l.b16 %v21
  %v63 = vunpack.c.l.b16 %v22
  %v64 = vunpack.c.l.b16 %v23
  %v65 = vunpack.c.l.b16 %v24
  %v66 = vunpack.c.l.b16 %v25
  %v67 = vunpack.c.l.b16 %v26
  %v68 = vunpack.c.l.b16 %v27
  %v69 = vunpack.c.l.b16 %v28
  %v70 = vunpack.c.l.b16 %v29
  %v71 = vunpack.c.l.b16 %v30
  %v72 = vpack.c.b16 %v57, %v56
  %v73 = vpack.c.b16 %v59, %v58
  %v74 = vpack.c.b16 %v61, %v60
  %v75 = vpack.c.b16 %v63, %v62
  %v76 = vpack.c.b16 %v65, %v64
  %v77 = vpack.c.b16 %v67, %v66
  %v78 = vpack.c.b16 %v69, %v68
  %v79 = vpack.c.b16 %v71, %v70
  %v89 = vunpack.c.l.b16 %v31
  %v90 = vunpack.c.l.b16 %v32
  %v91 = vunpack.c.l.b16 %v33
  %v92 = vunpack.c.l.b16 %v34
  %v93 = vunpack.c.l.b16 %v35
  %v94 = vunpack.c.l.b16 %v36
  %v95 = vunpack.c.l.b16 %v37
  %v96 = vunpack.c.l.b16 %v38
  %v97 = vunpack.c.l.b16 %v39
  %v98 = vpack.c.b16 %v90, %v89
  %v99 = vpack.c.b16 %v92, %v91
  %v100 = vpack.c.b16 %v94, %v93
  %v101 = vpack.c.b16 %v96, %v95
  %v102 = vpack.c.b16 %v97, %v97
  %vm107 = vcmask 588800
  %v109 = vsel %vm107, %v72, 0
  %v112 = vsel %vm107, %v73, 0
  %v115 = vsel %vm107, %v74, 0
  %v118 = vsel %vm107, %v75, 0
  %v121 = vsel %vm107, %v76, 0
  %v124 = vsel %vm107, %v77, 0
  %v127 = vsel %vm107, %v78, 0
  %v130 = vsel %vm107, %v79, 0
  %vm132 = vcmask 1043456
  %v134 = vsel %vm132, %v102, 0
  %136 = vmatprep.subr.bf16.mxu0 0
  %137 = vmatpush1.bf16.msra.mxu0 0
  %138 = vmatprep.subr.bf16.mxu0 0
  %139 = vmatpush1.bf16.msra.mxu0 0
  %140 = vmatprep.subr.bf16.mxu0 0
  %141 = vmatpush1.bf16.msra.mxu0 0
  %142 = vmatprep.subr.bf16.mxu0 0
  %143 = vmatpush1.bf16.msra.mxu0 %v134
  %144 = vmatprep.subr.bf16.mxu0 0
  %145 = vmatpush1.bf16.msra.mxu0 %v101
  %146 = vmatprep.subr.bf16.mxu0 0
  %147 = vmatpush1.bf16.msra.mxu0 %v100
  %148 = vmatprep.subr.bf16.mxu0 0
  %149 = vmatpush1.bf16.msra.mxu0 %v99
  %150 = vmatprep.subr.bf16.mxu0 0
  %151 = vmatpush1.bf16.msra.mxu0 %v98
  %152 = vmatprep.subr.bf16.mxu0 0
  %153 = vmatpush2.bf16.msra.mxu0 0
  %154 = vmatprep.subr.bf16.mxu0 0
  %155 = vmatpush2.bf16.msra.mxu0 0
  %156 = vmatprep.subr.bf16.mxu0 0
  %157 = vmatpush2.bf16.msra.mxu0 0
  %158 = vmatprep.subr.bf16.mxu0 0
  %159 = vmatpush2.bf16.msra.mxu0 0
  %160 = vmatprep.subr.bf16.mxu0 0
  %161 = vmatpush2.bf16.msra.mxu0 0
  %162 = vmatprep.subr.bf16.mxu0 0
  %163 = vmatpush2.bf16.msra.mxu0 0
  %164 = vmatprep.subr.bf16.mxu0 0
  %165 = vmatpush2.bf16.msra.mxu0 0
  %166 = vmatprep.subr.bf16.mxu0 0
  %167 = vmatpush2.bf16.msra.mxu0 0
  %168 = vmatprep.mubr.bf16.mxu0 0
  %169 = vmatmul.mubr.bf16.gmra.mxu0 %v109
  %v170 = vpop.f32.mrf.mxu0
  %v171 = vadd.f32 0.0, %v170
  %v172 = vpop.f32.mrf.mxu0
  %v173 = vpop.f32.mrf.mxu0
  %v174 = vadd.f32 0.0, %v173
  %v175 = vpop.f32.mrf.mxu0
  %176 = vmatprep.mubr.bf16.mxu0 0
  %177 = vmatmul.mubr.bf16.gmra.mxu0 %v112
  %v178 = vpop.f32.mrf.mxu0
  %v179 = vadd.f32 0.0, %v178
  %v180 = vpop.f32.mrf.mxu0
  %v181 = vpop.f32.mrf.mxu0
  %v182 = vadd.f32 0.0, %v181
  %v183 = vpop.f32.mrf.mxu0
  %184 = vmatprep.mubr.bf16.mxu0 0
  %185 = vmatmul.mubr.bf16.gmra.mxu0 %v115
  %v186 = vpop.f32.mrf.mxu0
  %v187 = vadd.f32 0.0, %v186
  %v188 = vpop.f32.mrf.mxu0
  %v189 = vpop.f32.mrf.mxu0
  %v190 = vadd.f32 0.0, %v189
  %v191 = vpop.f32.mrf.mxu0
  %192 = vmatprep.mubr.bf16.mxu0 0
  %193 = vmatmul.mubr.bf16.gmra.mxu0 %v118
  %v194 = vpop.f32.mrf.mxu0
  %v195 = vadd.f32 0.0, %v194
  %v196 = vpop.f32.mrf.mxu0
  %v197 = vpop.f32.mrf.mxu0
  %v198 = vadd.f32 0.0, %v197
  %v199 = vpop.f32.mrf.mxu0
  %200 = vmatprep.mubr.bf16.mxu0 0
  %201 = vmatmul.mubr.bf16.gmra.mxu0 %v121
  %v202 = vpop.f32.mrf.mxu0
  %v203 = vadd.f32 0.0, %v202
  %v204 = vpop.f32.mrf.mxu0
  %v205 = vpop.f32.mrf.mxu0
  %v206 = vadd.f32 0.0, %v205
  %v207 = vpop.f32.mrf.mxu0
  %208 = vmatprep.mubr.bf16.mxu0 0
  %209 = vmatmul.mubr.bf16.gmra.mxu0 %v124
  %v210 = vpop.f32.mrf.mxu0
  %v211 = vadd.f32 0.0, %v210
  %v212 = vpop.f32.mrf.mxu0
  %v213 = vpop.f32.mrf.mxu0
  %v214 = vadd.f32 0.0, %v213
  %v215 = vpop.f32.mrf.mxu0
  %216 = vmatprep.mubr.bf16.mxu0 0
  %217 = vmatmul.mubr.bf16.gmra.mxu0 %v127
  %v218 = vpop.f32.mrf.mxu0
  %v219 = vadd.f32 0.0, %v218
  %v220 = vpop.f32.mrf.mxu0
  %v221 = vpop.f32.mrf.mxu0
  %v222 = vadd.f32 0.0, %v221
  %v223 = vpop.f32.mrf.mxu0
  %224 = vmatprep.mubr.bf16.mxu0 0
  %225 = vmatmul.mubr.bf16.gmra.mxu0 %v130
  %v226 = vpop.f32.mrf.mxu0
  %v227 = vadd.f32 0.0, %v226
  %v228 = vpop.f32.mrf.mxu0
  %v229 = vpop.f32.mrf.mxu0
  %v230 = vadd.f32 0.0, %v229
  %v231 = vpop.f32.mrf.mxu0
  %232 = vdwg.mxu0
  %vm233 = vcmask 130048
  %234 = vst.msk [vmem:[%s2] sm:$0xff] %vm233, %v171
  %235 = vst.msk [vmem:[%s2 + $0x8] sm:$0xff] %vm233, %v174
  %236 = vst.msk [vmem:[%s2 + $0x10] sm:$0xff] %vm233, %v179
  %237 = vst.msk [vmem:[%s2 + $0x18] sm:$0xff] %vm233, %v182
  %238 = vst.msk [vmem:[%s2 + $0x20] sm:$0xff] %vm233, %v187
  %239 = vst.msk [vmem:[%s2 + $0x28] sm:$0xff] %vm233, %v190
  %240 = vst.msk [vmem:[%s2 + $0x30] sm:$0xff] %vm233, %v195
  %241 = vst.msk [vmem:[%s2 + $0x38] sm:$0xff] %vm233, %v198
  %242 = vst.msk [vmem:[%s2 + $0x40] sm:$0xff] %vm233, %v203
  %243 = vst.msk [vmem:[%s2 + $0x48] sm:$0xff] %vm233, %v206
  %244 = vst.msk [vmem:[%s2 + $0x50] sm:$0xff] %vm233, %v211
  %245 = vst.msk [vmem:[%s2 + $0x58] sm:$0xff] %vm233, %v214
  %246 = vst.msk [vmem:[%s2 + $0x60] sm:$0xff] %vm233, %v219
  %247 = vst.msk [vmem:[%s2 + $0x68] sm:$0xff] %vm233, %v222
  %248 = vst.msk [vmem:[%s2 + $0x70] sm:$0xff] %vm233, %v227
  %249 = vst.msk [vmem:[%s2 + $0x78] sm:$0xff] %vm233, %v230
  %v250 = vsel %vm233, %v171, 0.0
  %v251 = vsel %vm233, %v174, 0.0
  %v252 = vadd.f32 %v250, %v251
  %v253 = vsel %vm233, %v179, 0.0
  %v254 = vadd.f32 %v252, %v253
  %v255 = vsel %vm233, %v182, 0.0
  %v256 = vadd.f32 %v254, %v255
  %v257 = vsel %vm233, %v187, 0.0
  %v258 = vadd.f32 %v256, %v257
  %v259 = vsel %vm233, %v190, 0.0
  %v260 = vadd.f32 %v258, %v259
  %v261 = vsel %vm233, %v195, 0.0
  %v262 = vadd.f32 %v260, %v261
  %v263 = vsel %vm233, %v198, 0.0
  %v264 = vadd.f32 %v262, %v263
  %v265 = vsel %vm233, %v203, 0.0
  %v266 = vadd.f32 %v264, %v265
  %v267 = vsel %vm233, %v206, 0.0
  %v268 = vadd.f32 %v266, %v267
  %v269 = vsel %vm233, %v211, 0.0
  %v270 = vadd.f32 %v268, %v269
  %v271 = vsel %vm233, %v214, 0.0
  %v272 = vadd.f32 %v270, %v271
  %v273 = vsel %vm233, %v219, 0.0
  %v274 = vadd.f32 %v272, %v273
  %v275 = vsel %vm233, %v222, 0.0
  %v276 = vadd.f32 %v274, %v275
  %v277 = vsel %vm233, %v227, 0.0
  %v278 = vadd.f32 %v276, %v277
  %v279 = vsel %vm233, %v230, 0.0
  %v280 = vadd.f32 %v278, %v279
  %v281 = vrot.slane %v280, 4
  %v282 = vadd.f32 %v280, %v281
  %v283 = vrot.slane %v282, 2
  %v284 = vadd.f32 %v282, %v283
  %v285 = vrot.slane %v284, 1
  %v286 = vadd.f32 %v284, %v285
  %vm287 = vcmask 122880
  %288 = vst.msk [vmem:[%s3] sm:$0x1] %vm287, %v286
  %v289 = vmul.f32 %v171, %v171
  %v290 = vmul.f32 %v174, %v174
  %v291 = vmul.f32 %v179, %v179
  %v292 = vmul.f32 %v182, %v182
  %v293 = vmul.f32 %v187, %v187
  %v294 = vmul.f32 %v190, %v190
  %v295 = vmul.f32 %v195, %v195
  %v296 = vmul.f32 %v198, %v198
  %v297 = vmul.f32 %v203, %v203
  %v298 = vmul.f32 %v206, %v206
  %v299 = vmul.f32 %v211, %v211
  %v300 = vmul.f32 %v214, %v214
  %v301 = vmul.f32 %v219, %v219
  %v302 = vmul.f32 %v222, %v222
  %v303 = vmul.f32 %v227, %v227
  %v304 = vmul.f32 %v230, %v230
  %v305 = vsel %vm233, %v289, 0.0
  %v306 = vsel %vm233, %v290, 0.0
  %v307 = vadd.f32 %v305, %v306
  %v308 = vsel %vm233, %v291, 0.0
  %v309 = vadd.f32 %v307, %v308
  %v310 = vsel %vm233, %v292, 0.0
  %v311 = vadd.f32 %v309, %v310
  %v312 = vsel %vm233, %v293, 0.0
  %v313 = vadd.f32 %v311, %v312
  %v314 = vsel %vm233, %v294, 0.0
  %v315 = vadd.f32 %v313, %v314
  %v316 = vsel %vm233, %v295, 0.0
  %v317 = vadd.f32 %v315, %v316
  %v318 = vsel %vm233, %v296, 0.0
  %v319 = vadd.f32 %v317, %v318
  %v320 = vsel %vm233, %v297, 0.0
  %v321 = vadd.f32 %v319, %v320
  %v322 = vsel %vm233, %v298, 0.0
  %v323 = vadd.f32 %v321, %v322
  %v324 = vsel %vm233, %v299, 0.0
  %v325 = vadd.f32 %v323, %v324
  %v326 = vsel %vm233, %v300, 0.0
  %v327 = vadd.f32 %v325, %v326
  %v328 = vsel %vm233, %v301, 0.0
  %v329 = vadd.f32 %v327, %v328
  %v330 = vsel %vm233, %v302, 0.0
  %v331 = vadd.f32 %v329, %v330
  %v332 = vsel %vm233, %v303, 0.0
  %v333 = vadd.f32 %v331, %v332
  %v334 = vsel %vm233, %v304, 0.0
  %v335 = vadd.f32 %v333, %v334
  %v336 = vrot.slane %v335, 4
  %v337 = vadd.f32 %v335, %v336
  %v338 = vrot.slane %v337, 2
  %v339 = vadd.f32 %v337, %v338
  %v340 = vrot.slane %v339, 1
  %v341 = vadd.f32 %v339, %v340
  %342 = vst.msk [vmem:[%s4] sm:$0x1] %vm287, %v341
  // Predicated region
  $region10: #{resnet_forward.40} parent=0 // pred_check
    _
  $region11: #{resnet_forward.40} parent=0 // pred_check_branch
    %344 = sbr.rel (0) target = $region13
  $region12: #{resnet_forward.40} parent=0 // pred_region
    _
  $region13: #{resnet_forward.40} parent=0 // pred_fallthru
    _
  // Predicated region
  $region14: #{resnet_forward.40} parent=0 // pred_check
    _
  $region15: #{resnet_forward.40} parent=0 // pred_check_branch
    %346 = sbr.rel (0) target = $region17
  $region16: #{resnet_forward.40} parent=0 // pred_region
    _
  $region17: #{resnet_forward.40} parent=0 // pred_fallthru
    _
  // Predicated region
  $region18: #{resnet_forward.40} parent=0 // pred_check
    _
  $region19: #{resnet_forward.40} parent=0 // pred_check_branch
    %348 = sbr.rel (0) target = $region21
  $region20: #{resnet_forward.40} parent=0 // pred_region
    _
  $region21: #{resnet_forward.40} parent=0 // pred_fallthru
    _
  // Predicated region
  $region22: #{resnet_forward.40} parent=0 // pred_check
    _
  $region23: #{resnet_forward.40} parent=0 // pred_check_branch
    %350 = sbr.rel (0) target = $region25
  $region24: #{resnet_forward.40} parent=0 // pred_region
    _
  $region25: #{resnet_forward.40} parent=0 // pred_fallthru
    _
  // Predicated region
  $region26: #{resnet_forward.40} parent=0 // pred_check
    _
  $region27: #{resnet_forward.40} parent=0 // pred_check_branch
    %352 = sbr.rel (0) target = $region29
  $region28: #{resnet_forward.40} parent=0 // pred_region
    _
  $region29: #{resnet_forward.40} parent=0 // pred_fallthru
    _
  // Predicated region
  $region30: #{resnet_forward.40} parent=0 // pred_check
    _
  $region31: #{resnet_forward.40} parent=0 // pred_check_branch
    %354 = sbr.rel (0) target = $region33
  $region32: #{resnet_forward.40} parent=0 // pred_region
    _
  $region33: #{resnet_forward.40} parent=0 // pred_fallthru
    _

// kernel: resnet_forward.43
$region0: #{resnet_forward.43}
  #allocation0 [shape = 'u32[]', space=smem, size = 0x4, offset = 0x4, fixed_abs, tag = 'smem constant byte address 0x4 - core index']
  #allocation1 [shape = 'u32[144,128]{1,0:T(1,128)}', space=vmem, size = 0x12000, scoped, tag = 'internal scratch']
  %s0 = inlined_call_operand.vmem [shape: bf16[128,144], index: 0, kind: input, shape index: {}]
  %s1 = inlined_call_operand.vmem [shape: bf16[144,16], index: 1, kind: input, shape index: {}]
  %s2 = inlined_call_operand.vmem [shape: f32[128,16], index: 2, kind: output, shape index: {0}]
  %s3 = inlined_call_operand.vmem [shape: f32[1,1,16], index: 3, kind: output, shape index: {1}]
  %s4 = inlined_call_operand.vmem [shape: f32[1,1,16], index: 4, kind: output, shape index: {2}]
  %5 = xla_tuple %s2, %s3, %s4
  %s6 = sld [smem:[#allocation0]]
  $region34: #{resnet_forward.43} parent=0
    _
  %s8 = ssub.s32 1, %s6
  %s9 = scalar_select 0, %s8, %s6
  // Predicated region
  $region2: #{resnet_forward.43} parent=0 // pred_check
    _
  $region3: #{resnet_forward.43} parent=0 // pred_check_branch
    %11 = sbr.rel (0) target = $region5
  $region4: #{resnet_forward.43} parent=0 // pred_region
    _
  $region5: #{resnet_forward.43} parent=0 // pred_fallthru
    _
  // Predicated region
  $region6: #{resnet_forward.43} parent=0 // pred_check
    _
  $region7: #{resnet_forward.43} parent=0 // pred_check_branch
    %13 = sbr.rel (0) target = $region9
  $region8: #{resnet_forward.43} parent=0 // pred_region
    _
  $region9: #{resnet_forward.43} parent=0 // pred_fallthru
    _
  %v15 = vld [vmem:[%s0] sm:$0xff]
  %v16 = vld [vmem:[%s0 + $0x8] sm:$0xff]
  %v17 = vld [vmem:[%s0 + $0x10] sm:$0xff]
  %v18 = vld [vmem:[%s0 + $0x18] sm:$0xff]
  %v19 = vld [vmem:[%s0 + $0x20] sm:$0xff]
  %v20 = vld [vmem:[%s0 + $0x28] sm:$0xff]
  %v21 = vld [vmem:[%s0 + $0x30] sm:$0xff]
  %v22 = vld [vmem:[%s0 + $0x38] sm:$0xff]
  %v23 = vld [vmem:[%s0 + $0x40] sm:$0xff]
  %v24 = vld [vmem:[%s0 + $0x48] sm:$0xff]
  %v25 = vld [vmem:[%s0 + $0x50] sm:$0xff]
  %v26 = vld [vmem:[%s0 + $0x58] sm:$0xff]
  %v27 = vld [vmem:[%s0 + $0x60] sm:$0xff]
  %v28 = vld [vmem:[%s0 + $0x68] sm:$0xff]
  %v29 = vld [vmem:[%s0 + $0x70] sm:$0xff]
  %v30 = vld [vmem:[%s0 + $0x78] sm:$0xff]
  %v31 = vld [vmem:[%s1] sm:$0xf]
  %v32 = vld [vmem:[%s1 + $0x4] sm:$0xf]
  %v33 = vld [vmem:[%s1 + $0x8] sm:$0xf]
  %v34 = vld [vmem:[%s1 + $0xc] sm:$0xf]
  %v35 = vld [vmem:[%s1 + $0x10] sm:$0xf]
  %v36 = vld [vmem:[%s1 + $0x14] sm:$0xf]
  %v37 = vld [vmem:[%s1 + $0x18] sm:$0xf]
  %v38 = vld [vmem:[%s1 + $0x1c] sm:$0xf]
  %v39 = vld [vmem:[%s1 + $0x20] sm:$0xf]
  %v40 = vld [vmem:[%s1 + $0x24] sm:$0xf]
  %v41 = vld [vmem:[%s1 + $0x28] sm:$0xf]
  %v42 = vld [vmem:[%s1 + $0x2c] sm:$0xf]
  %v43 = vld [vmem:[%s1 + $0x30] sm:$0xf]
  %v44 = vld [vmem:[%s1 + $0x34] sm:$0xf]
  %v45 = vld [vmem:[%s1 + $0x38] sm:$0xf]
  %v46 = vld [vmem:[%s1 + $0x3c] sm:$0xf]
  %v47 = vld [vmem:[%s1 + $0x40] sm:$0xf]
  %v48 = vld [vmem:[%s1 + $0x44] sm:$0xf]
  %v65 = vunpack.c.l.b16 %v15
  %v66 = vunpack.c.h.b16 %v15
  %v67 = vunpack.c.l.b16 %v16
  %v68 = vunpack.c.h.b16 %v16
  %v69 = vunpack.c.l.b16 %v17
  %v70 = vunpack.c.h.b16 %v17
  %v71 = vunpack.c.l.b16 %v18
  %v72 = vunpack.c.h.b16 %v18
  %v73 = vunpack.c.l.b16 %v19
  %v74 = vunpack.c.h.b16 %v19
  %v75 = vunpack.c.l.b16 %v20
  %v76 = vunpack.c.h.b16 %v20
  %v77 = vunpack.c.l.b16 %v21
  %v78 = vunpack.c.h.b16 %v21
  %v79 = vunpack.c.l.b16 %v22
  %v80 = vunpack.c.h.b16 %v22
  %v81 = vunpack.c.l.b16 %v23
  %v82 = vunpack.c.h.b16 %v23
  %v83 = vunpack.c.l.b16 %v24
  %v84 = vunpack.c.h.b16 %v24
  %v85 = vunpack.c.l.b16 %v25
  %v86 = vunpack.c.h.b16 %v25
  %v87 = vunpack.c.l.b16 %v26
  %v88 = vunpack.c.h.b16 %v26
  %v89 = vunpack.c.l.b16 %v27
  %v90 = vunpack.c.h.b16 %v27
  %v91 = vunpack.c.l.b16 %v28
  %v92 = vunpack.c.h.b16 %v28
  %v93 = vunpack.c.l.b16 %v29
  %v94 = vunpack.c.h.b16 %v29
  %v95 = vunpack.c.l.b16 %v30
  %v96 = vunpack.c.h.b16 %v30
  %v97 = vpack.c.b16 %v67, %v65
  %v98 = vpack.c.b16 %v68, %v66
  %v99 = vpack.c.b16 %v71, %v69
  %v100 = vpack.c.b16 %v72, %v70
  %v101 = vpack.c.b16 %v75, %v73
  %v102 = vpack.c.b16 %v76, %v74
  %v103 = vpack.c.b16 %v79, %v77
  %v104 = vpack.c.b16 %v80, %v78
  %v105 = vpack.c.b16 %v83, %v81
  %v106 = vpack.c.b16 %v84, %v82
  %v107 = vpack.c.b16 %v87, %v85
  %v108 = vpack.c.b16 %v88, %v86
  %v109 = vpack.c.b16 %v91, %v89
  %v110 = vpack.c.b16 %v92, %v90
  %v111 = vpack.c.b16 %v95, %v93
  %v112 = vpack.c.b16 %v96, %v94
  %v139 = vunpack.c.l.b16 %v31
  %v140 = vunpack.c.l.b16 %v32
  %v141 = vunpack.c.l.b16 %v33
  %v142 = vunpack.c.l.b16 %v34
  %v143 = vunpack.c.l.b16 %v35
  %v144 = vunpack.c.l.b16 %v36
  %v145 = vunpack.c.l.b16 %v37
  %v146 = vunpack.c.l.b16 %v38
  %v147 = vunpack.c.l.b16 %v39
  %v148 = vunpack.c.l.b16 %v40
  %v149 = vunpack.c.l.b16 %v41
  %v150 = vunpack.c.l.b16 %v42
  %v151 = vunpack.c.l.b16 %v43
  %v152 = vunpack.c.l.b16 %v44
  %v153 = vunpack.c.l.b16 %v45
  %v154 = vunpack.c.l.b16 %v46
  %v155 = vunpack.c.l.b16 %v47
  %v156 = vunpack.c.l.b16 %v48
  %v157 = vpack.c.b16 %v140, %v139
  %v158 = vpack.c.b16 %v142, %v141
  %v159 = vpack.c.b16 %v144, %v143
  %v160 = vpack.c.b16 %v146, %v145
  %v161 = vpack.c.b16 %v148, %v147
  %v162 = vpack.c.b16 %v150, %v149
  %v163 = vpack.c.b16 %v152, %v151
  %v164 = vpack.c.b16 %v154, %v153
  %v165 = vpack.c.b16 %v156, %v155
  %vm175 = vcmask 130048
  %v177 = vsel %vm175, %v98, 0
  %v180 = vsel %vm175, %v100, 0
  %v183 = vsel %vm175, %v102, 0
  %v186 = vsel %vm175, %v104, 0
  %v189 = vsel %vm175, %v106, 0
  %v192 = vsel %vm175, %v108, 0
  %v195 = vsel %vm175, %v110, 0
  %v198 = vsel %vm175, %v112, 0
  %200 = vmatprep.subr.bf16.mxu0 0
  %201 = vmatpush1.bf16.msra.mxu0 %v164
  %202 = vmatprep.subr.bf16.mxu0 0
  %203 = vmatpush1.bf16.msra.mxu0 %v163
  %204 = vmatprep.subr.bf16.mxu0 0
  %205 = vmatpush1.bf16.msra.mxu0 %v162
  %206 = vmatprep.subr.bf16.mxu0 0
  %207 = vmatpush1.bf16.msra.mxu0 %v161
  %208 = vmatprep.subr.bf16.mxu0 0
  %209 = vmatpush1.bf16.msra.mxu0 %v160
  %210 = vmatprep.subr.bf16.mxu0 0
  %211 = vmatpush1.bf16.msra.mxu0 %v159
  %212 = vmatprep.subr.bf16.mxu0 0
  %213 = vmatpush1.bf16.msra.mxu0 %v158
  %214 = vmatprep.subr.bf16.mxu0 0
  %215 = vmatpush1.bf16.msra.mxu0 %v157
  %216 = vmatprep.subr.bf16.mxu0 0
  %217 = vmatpush2.bf16.msra.mxu0 0
  %218 = vmatprep.subr.bf16.mxu0 0
  %219 = vmatpush2.bf16.msra.mxu0 0
  %220 = vmatprep.subr.bf16.mxu0 0
  %221 = vmatpush2.bf16.msra.mxu0 0
  %222 = vmatprep.subr.bf16.mxu0 0
  %223 = vmatpush2.bf16.msra.mxu0 0
  %224 = vmatprep.subr.bf16.mxu0 0
  %225 = vmatpush2.bf16.msra.mxu0 0
  %226 = vmatprep.subr.bf16.mxu0 0
  %227 = vmatpush2.bf16.msra.mxu0 0
  %228 = vmatprep.subr.bf16.mxu0 0
  %229 = vmatpush2.bf16.msra.mxu0 0
  %230 = vmatprep.subr.bf16.mxu0 0
  %231 = vmatpush2.bf16.msra.mxu0 %v165
  %232 = vmatprep.mubr.bf16.mxu0 %v177
  %233 = vmatmul.mubr.bf16.gmra.mxu0 %v97
  %v234 = vpop.f32.mrf.mxu0
  %v235 = vadd.f32 0.0, %v234
  %v236 = vpop.f32.mrf.mxu0
  %v237 = vpop.f32.mrf.mxu0
  %v238 = vadd.f32 0.0, %v237
  %v239 = vpop.f32.mrf.mxu0
  %240 = vmatprep.mubr.bf16.mxu0 %v180
  %241 = vmatmul.mubr.bf16.gmra.mxu0 %v99
  %v242 = vpop.f32.mrf.mxu0
  %v243 = vadd.f32 0.0, %v242
  %v244 = vpop.f32.mrf.mxu0
  %v245 = vpop.f32.mrf.mxu0
  %v246 = vadd.f32 0.0, %v245
  %v247 = vpop.f32.mrf.mxu0
  %248 = vmatprep.mubr.bf16.mxu0 %v183
  %249 = vmatmul.mubr.bf16.gmra.mxu0 %v101
  %v250 = vpop.f32.mrf.mxu0
  %v251 = vadd.f32 0.0, %v250
  %v252 = vpop.f32.mrf.mxu0
  %v253 = vpop.f32.mrf.mxu0
  %v254 = vadd.f32 0.0, %v253
  %v255 = vpop.f32.mrf.mxu0
  %256 = vmatprep.mubr.bf16.mxu0 %v186
  %257 = vmatmul.mubr.bf16.gmra.mxu0 %v103
  %v258 = vpop.f32.mrf.mxu0
  %v259 = vadd.f32 0.0, %v258
  %v260 = vpop.f32.mrf.mxu0
  %v261 = vpop.f32.mrf.mxu0
  %v262 = vadd.f32 0.0, %v261
  %v263 = vpop.f32.mrf.mxu0
  %264 = vmatprep.mubr.bf16.mxu0 %v189
  %265 = vmatmul.mubr.bf16.gmra.mxu0 %v105
  %v266 = vpop.f32.mrf.mxu0
  %v267 = vadd.f32 0.0, %v266
  %v268 = vpop.f32.mrf.mxu0
  %v269 = vpop.f32.mrf.mxu0
  %v270 = vadd.f32 0.0, %v269
  %v271 = vpop.f32.mrf.mxu0
  %272 = vmatprep.mubr.bf16.mxu0 %v192
  %273 = vmatmul.mubr.bf16.gmra.mxu0 %v107
  %v274 = vpop.f32.mrf.mxu0
  %v275 = vadd.f32 0.0, %v274
  %v276 = vpop.f32.mrf.mxu0
  %v277 = vpop.f32.mrf.mxu0
  %v278 = vadd.f32 0.0, %v277
  %v279 = vpop.f32.mrf.mxu0
  %280 = vmatprep.mubr.bf16.mxu0 %v195
  %281 = vmatmul.mubr.bf16.gmra.mxu0 %v109
  %v282 = vpop.f32.mrf.mxu0
  %v283 = vadd.f32 0.0, %v282
  %v284 = vpop.f32.mrf.mxu0
  %v285 = vpop.f32.mrf.mxu0
  %v286 = vadd.f32 0.0, %v285
  %v287 = vpop.f32.mrf.mxu0
  %288 = vmatprep.mubr.bf16.mxu0 %v198
  %289 = vmatmul.mubr.bf16.gmra.mxu0 %v111
  %v290 = vpop.f32.mrf.mxu0
  %v291 = vadd.f32 0.0, %v290
  %v292 = vpop.f32.mrf.mxu0
  %v293 = vpop.f32.mrf.mxu0
  %v294 = vadd.f32 0.0, %v293
  %v295 = vpop.f32.mrf.mxu0
  %296 = vdwg.mxu0
  %297 = vst.msk [vmem:[%s2] sm:$0xff] %vm175, %v235
  %298 = vst.msk [vmem:[%s2 + $0x8] sm:$0xff] %vm175, %v238
  %299 = vst.msk [vmem:[%s2 + $0x10] sm:$0xff] %vm175, %v243
  %300 = vst.msk [vmem:[%s2 + $0x18] sm:$0xff] %vm175, %v246
  %301 = vst.msk [vmem:[%s2 + $0x20] sm:$0xff] %vm175, %v251
  %302 = vst.msk [vmem:[%s2 + $0x28] sm:$0xff] %vm175, %v254
  %303 = vst.msk [vmem:[%s2 + $0x30] sm:$0xff] %vm175, %v259
  %304 = vst.msk [vmem:[%s2 + $0x38] sm:$0xff] %vm175, %v262
  %305 = vst.msk [vmem:[%s2 + $0x40] sm:$0xff] %vm175, %v267
  %306 = vst.msk [vmem:[%s2 + $0x48] sm:$0xff] %vm175, %v270
  %307 = vst.msk [vmem:[%s2 + $0x50] sm:$0xff] %vm175, %v275
  %308 = vst.msk [vmem:[%s2 + $0x58] sm:$0xff] %vm175, %v278
  %309 = vst.msk [vmem:[%s2 + $0x60] sm:$0xff] %vm175, %v283
  %310 = vst.msk [vmem:[%s2 + $0x68] sm:$0xff] %vm175, %v286
  %311 = vst.msk [vmem:[%s2 + $0x70] sm:$0xff] %vm175, %v291
  %312 = vst.msk [vmem:[%s2 + $0x78] sm:$0xff] %vm175, %v294
  %v313 = vsel %vm175, %v235, 0.0
  %v314 = vsel %vm175, %v238, 0.0
  %v315 = vadd.f32 %v313, %v314
  %v316 = vsel %vm175, %v243, 0.0
  %v317 = vadd.f32 %v315, %v316
  %v318 = vsel %vm175, %v246, 0.0
  %v319 = vadd.f32 %v317, %v318
  %v320 = vsel %vm175, %v251, 0.0
  %v321 = vadd.f32 %v319, %v320
  %v322 = vsel %vm175, %v254, 0.0
  %v323 = vadd.f32 %v321, %v322
  %v324 = vsel %vm175, %v259, 0.0
  %v325 = vadd.f32 %v323, %v324
  %v326 = vsel %vm175, %v262, 0.0
  %v327 = vadd.f32 %v325, %v326
  %v328 = vsel %vm175, %v267, 0.0
  %v329 = vadd.f32 %v327, %v328
  %v330 = vsel %vm175, %v270, 0.0
  %v331 = vadd.f32 %v329, %v330
  %v332 = vsel %vm175, %v275, 0.0
  %v333 = vadd.f32 %v331, %v332
  %v334 = vsel %vm175, %v278, 0.0
  %v335 = vadd.f32 %v333, %v334
  %v336 = vsel %vm175, %v283, 0.0
  %v337 = vadd.f32 %v335, %v336
  %v338 = vsel %vm175, %v286, 0.0
  %v339 = vadd.f32 %v337, %v338
  %v340 = vsel %vm175, %v291, 0.0
  %v341 = vadd.f32 %v339, %v340
  %v342 = vsel %vm175, %v294, 0.0
  %v343 = vadd.f32 %v341, %v342
  %v344 = vrot.slane %v343, 4
  %v345 = vadd.f32 %v343, %v344
  %v346 = vrot.slane %v345, 2
  %v347 = vadd.f32 %v345, %v346
  %v348 = vrot.slane %v347, 1
  %v349 = vadd.f32 %v347, %v348
  %vm350 = vcmask 122880
  %351 = vst.msk [vmem:[%s3] sm:$0x1] %vm350, %v349
  %v352 = vmul.f32 %v235, %v235
  %v353 = vmul.f32 %v238, %v238
  %v354 = vmul.f32 %v243, %v243
  %v355 = vmul.f32 %v246, %v246
  %v356 = vmul.f32 %v251, %v251
  %v357 = vmul.f32 %v254, %v254
  %v358 = vmul.f32 %v259, %v259
  %v359 = vmul.f32 %v262, %v262
  %v360 = vmul.f32 %v267, %v267
  %v361 = vmul.f32 %v270, %v270
  %v362 = vmul.f32 %v275, %v275
  %v363 = vmul.f32 %v278, %v278
  %v364 = vmul.f32 %v283, %v283
  %v365 = vmul.f32 %v286, %v286
  %v366 = vmul.f32 %v291, %v291
  %v367 = vmul.f32 %v294, %v294
  %v368 = vsel %vm175, %v352, 0.0
  %v369 = vsel %vm175, %v353, 0.0
  %v370 = vadd.f32 %v368, %v369
  %v371 = vsel %vm175, %v354, 0.0
  %v372 = vadd.f32 %v370, %v371
  %v373 = vsel %vm175, %v355, 0.0
  %v374 = vadd.f32 %v372, %v373
  %v375 = vsel %vm175, %v356, 0.0
  %v376 = vadd.f32 %v374, %v375
  %v377 = vsel %vm175, %v357, 0.0
  %v378 = vadd.f32 %v376, %v377
  %v379 = vsel %vm175, %v358, 0.0
  %v380 = vadd.f32 %v378, %v379
  %v381 = vsel %vm175, %v359, 0.0
  %v382 = vadd.f32 %v380, %v381
  %v383 = vsel %vm175, %v360, 0.0
  %v384 = vadd.f32 %v382, %v383
  %v385 = vsel %vm175, %v361, 0.0
  %v386 = vadd.f32 %v384, %v385
  %v387 = vsel %vm175, %v362, 0.0
  %v388 = vadd.f32 %v386, %v387
  %v389 = vsel %vm175, %v363, 0.0
  %v390 = vadd.f32 %v388, %v389
  %v391 = vsel %vm175, %v364, 0.0
  %v392 = vadd.f32 %v390, %v391
  %v393 = vsel %vm175, %v365, 0.0
  %v394 = vadd.f32 %v392, %v393
  %v395 = vsel %vm175, %v366, 0.0
  %v396 = vadd.f32 %v394, %v395
  %v397 = vsel %vm175, %v367, 0.0
  %v398 = vadd.f32 %v396, %v397
  %v399 = vrot.slane %v398, 4
  %v400 = vadd.f32 %v398, %v399
  %v401 = vrot.slane %v400, 2
  %v402 = vadd.f32 %v400, %v401
  %v403 = vrot.slane %v402, 1
  %v404 = vadd.f32 %v402, %v403
  %405 = vst.msk [vmem:[%s4] sm:$0x1] %vm350, %v404
  // Predicated region
  $region10: #{resnet_forward.43} parent=0 // pred_check
    _
  $region11: #{resnet_forward.43} parent=0 // pred_check_branch
    %407 = sbr.rel (0) target = $region13
  $region12: #{resnet_forward.43} parent=0 // pred_region
    _
  $region13: #{resnet_forward.43} parent=0 // pred_fallthru
    _
  // Predicated region
  $region14: #{resnet_forward.43} parent=0 // pred_check
    _
  $region15: #{resnet_forward.43} parent=0 // pred_check_branch
    %409 = sbr.rel (0) target = $region17
  $region16: #{resnet_forward.43} parent=0 // pred_region
    _
  $region17: #{resnet_forward.43} parent=0 // pred_fallthru
    _
  // Predicated region
  $region18: #{resnet_forward.43} parent=0 // pred_check
    _
  $region19: #{resnet_forward.43} parent=0 // pred_check_branch
    %411 = sbr.rel (0) target = $region21
  $region20: #{resnet_forward.43} parent=0 // pred_region
    _
  $region21: #{resnet_forward.43} parent=0 // pred_fallthru
    _
  // Predicated region
  $region22: #{resnet_forward.43} parent=0 // pred_check
    _
  $region23: #{resnet_forward.43} parent=0 // pred_check_branch
    %413 = sbr.rel (0) target = $region25
  $region24: #{resnet_forward.43} parent=0 // pred_region
    _
  $region25: #{resnet_forward.43} parent=0 // pred_fallthru
    _
  // Predicated region
  $region26: #{resnet_forward.43} parent=0 // pred_check
    _
  $region27: #{resnet_forward.43} parent=0 // pred_check_branch
    %415 = sbr.rel (0) target = $region29
  $region28: #{resnet_forward.43} parent=0 // pred_region
    _
  $region29: #{resnet_forward.43} parent=0 // pred_fallthru
    _
  // Predicated region
  $region30: #{resnet_forward.43} parent=0 // pred_check
    _
  $region31: #{resnet_forward.43} parent=0 // pred_check_branch
    %417 = sbr.rel (0) target = $region33
  $region32: #{resnet_forward.43} parent=0 // pred_region
    _
  $region33: #{resnet_forward.43} parent=0 // pred_fallthru
    _

// kernel: resnet_forward.42
$region0: #{resnet_forward.42}
  #allocation0 [shape = 'u32[]', space=smem, size = 0x4, offset = 0x4, fixed_abs, tag = 'smem constant byte address 0x4 - core index']
  #allocation1 [shape = 'u32[144,128]{1,0:T(1,128)}', space=vmem, size = 0x12000, scoped, tag = 'internal scratch']
  %s0 = inlined_call_operand.vmem [shape: bf16[128,8], index: 0, kind: input, shape index: {}]
  %s1 = inlined_call_operand.vmem [shape: bf16[8,16], index: 1, kind: input, shape index: {}]
  %s2 = inlined_call_operand.vmem [shape: f32[128,16], index: 2, kind: output, shape index: {}]
  %s3 = sld [smem:[#allocation0]]
  $region18: #{resnet_forward.42} parent=0
    _
  %s5 = ssub.s32 1, %s3
  %s6 = scalar_select 0, %s5, %s3
  // Predicated region
  $region2: #{resnet_forward.42} parent=0 // pred_check
    _
  $region3: #{resnet_forward.42} parent=0 // pred_check_branch
    %8 = sbr.rel (0) target = $region5
  $region4: #{resnet_forward.42} parent=0 // pred_region
    _
  $region5: #{resnet_forward.42} parent=0 // pred_fallthru
    _
  // Predicated region
  $region6: #{resnet_forward.42} parent=0 // pred_check
    _
  $region7: #{resnet_forward.42} parent=0 // pred_check_branch
    %10 = sbr.rel (0) target = $region9
  $region8: #{resnet_forward.42} parent=0 // pred_region
    _
  $region9: #{resnet_forward.42} parent=0 // pred_fallthru
    _
  %v12 = vld [vmem:[%s0] sm:$0xf]
  %v13 = vld [vmem:[%s0 + $0x4] sm:$0xf]
  %v14 = vld [vmem:[%s0 + $0x8] sm:$0xf]
  %v15 = vld [vmem:[%s0 + $0xc] sm:$0xf]
  %v16 = vld [vmem:[%s0 + $0x10] sm:$0xf]
  %v17 = vld [vmem:[%s0 + $0x14] sm:$0xf]
  %v18 = vld [vmem:[%s0 + $0x18] sm:$0xf]
  %v19 = vld [vmem:[%s0 + $0x1c] sm:$0xf]
  %v20 = vld [vmem:[%s0 + $0x20] sm:$0xf]
  %v21 = vld [vmem:[%s0 + $0x24] sm:$0xf]
  %v22 = vld [vmem:[%s0 + $0x28] sm:$0xf]
  %v23 = vld [vmem:[%s0 + $0x2c] sm:$0xf]
  %v24 = vld [vmem:[%s0 + $0x30] sm:$0xf]
  %v25 = vld [vmem:[%s0 + $0x34] sm:$0xf]
  %v26 = vld [vmem:[%s0 + $0x38] sm:$0xf]
  %v27 = vld [vmem:[%s0 + $0x3c] sm:$0xf]
  %v28 = vld [vmem:[%s1] sm:$0xf]
  %v45 = vunpack.c.l.b16 %v12
  %v46 = vunpack.c.l.b16 %v13
  %v47 = vunpack.c.l.b16 %v14
  %v48 = vunpack.c.l.b16 %v15
  %v49 = vunpack.c.l.b16 %v16
  %v50 = vunpack.c.l.b16 %v17
  %v51 = vunpack.c.l.b16 %v18
  %v52 = vunpack.c.l.b16 %v19
  %v53 = vunpack.c.l.b16 %v20
  %v54 = vunpack.c.l.b16 %v21
  %v55 = vunpack.c.l.b16 %v22
  %v56 = vunpack.c.l.b16 %v23
  %v57 = vunpack.c.l.b16 %v24
  %v58 = vunpack.c.l.b16 %v25
  %v59 = vunpack.c.l.b16 %v26
  %v60 = vunpack.c.l.b16 %v27
  %v61 = vpack.c.b16 %v46, %v45
  %v62 = vpack.c.b16 %v48, %v47
  %v63 = vpack.c.b16 %v50, %v49
  %v64 = vpack.c.b16 %v52, %v51
  %v65 = vpack.c.b16 %v54, %v53
  %v66 = vpack.c.b16 %v56, %v55
  %v67 = vpack.c.b16 %v58, %v57
  %v68 = vpack.c.b16 %v60, %v59
  %vm69 = vcmask 64512
  %v71 = vsel %vm69, %v61, 0
  %v74 = vsel %vm69, %v62, 0
  %v77 = vsel %vm69, %v63, 0
  %v80 = vsel %vm69, %v64, 0
  %v83 = vsel %vm69, %v65, 0
  %v86 = vsel %vm69, %v66, 0
  %v89 = vsel %vm69, %v67, 0
  %v92 = vsel %vm69, %v68, 0
  %vm94 = vcmask 1043456
  %v96 = vsel %vm94, %v28, 0
  %98 = vmatprep.subr.bf16.mxu0 0
  %99 = vmatpush1.bf16.msra.mxu0 0
  %100 = vmatprep.subr.bf16.mxu0 0
  %101 = vmatpush1.bf16.msra.mxu0 0
  %102 = vmatprep.subr.bf16.mxu0 0
  %103 = vmatpush1.bf16.msra.mxu0 0
  %104 = vmatprep.subr.bf16.mxu0 0
  %105 = vmatpush1.bf16.msra.mxu0 0
  %106 = vmatprep.subr.bf16.mxu0 0
  %107 = vmatpush1.bf16.msra.mxu0 0
  %108 = vmatprep.subr.bf16.mxu0 0
  %109 = vmatpush1.bf16.msra.mxu0 0
  %110 = vmatprep.subr.bf16.mxu0 0
  %111 = vmatpush1.bf16.msra.mxu0 0
  %112 = vmatprep.subr.bf16.mxu0 0
  %113 = vmatpush1.bf16.msra.mxu0 %v96
  %114 = vmatprep.subr.bf16.mxu0 0
  %115 = vmatpush2.bf16.msra.mxu0 0
  %116 = vmatprep.subr.bf16.mxu0 0
  %117 = vmatpush2.bf16.msra.mxu0 0
  %118 = vmatprep.subr.bf16.mxu0 0
  %119 = vmatpush2.bf16.msra.mxu0 0
  %120 = vmatprep.subr.bf16.mxu0 0
  %121 = vmatpush2.bf16.msra.mxu0 0
  %122 = vmatprep.subr.bf16.mxu0 0
  %123 = vmatpush2.bf16.msra.mxu0 0
  %124 = vmatprep.subr.bf16.mxu0 0
  %125 = vmatpush2.bf16.msra.mxu0 0
  %126 = vmatprep.subr.bf16.mxu0 0
  %127 = vmatpush2.bf16.msra.mxu0 0
  %128 = vmatprep.subr.bf16.mxu0 0
  %129 = vmatpush2.bf16.msra.mxu0 0
  %130 = vmatprep.mubr.bf16.mxu0 0
  %131 = vmatmul.mubr.bf16.gmra.mxu0 %v71
  %v132 = vpop.f32.mrf.mxu0
  %v133 = vadd.f32 0.0, %v132
  %v134 = vpop.f32.mrf.mxu0
  %v135 = vpop.f32.mrf.mxu0
  %v136 = vadd.f32 0.0, %v135
  %v137 = vpop.f32.mrf.mxu0
  %138 = vmatprep.mubr.bf16.mxu0 0
  %139 = vmatmul.mubr.bf16.gmra.mxu0 %v74
  %v140 = vpop.f32.mrf.mxu0
  %v141 = vadd.f32 0.0, %v140
  %v142 = vpop.f32.mrf.mxu0
  %v143 = vpop.f32.mrf.mxu0
  %v144 = vadd.f32 0.0, %v143
  %v145 = vpop.f32.mrf.mxu0
  %146 = vmatprep.mubr.bf16.mxu0 0
  %147 = vmatmul.mubr.bf16.gmra.mxu0 %v77
  %v148 = vpop.f32.mrf.mxu0
  %v149 = vadd.f32 0.0, %v148
  %v150 = vpop.f32.mrf.mxu0
  %v151 = vpop.f32.mrf.mxu0
  %v152 = vadd.f32 0.0, %v151
  %v153 = vpop.f32.mrf.mxu0
  %154 = vmatprep.mubr.bf16.mxu0 0
  %155 = vmatmul.mubr.bf16.gmra.mxu0 %v80
  %v156 = vpop.f32.mrf.mxu0
  %v157 = vadd.f32 0.0, %v156
  %v158 = vpop.f32.mrf.mxu0
  %v159 = vpop.f32.mrf.mxu0
  %v160 = vadd.f32 0.0, %v159
  %v161 = vpop.f32.mrf.mxu0
  %162 = vmatprep.mubr.bf16.mxu0 0
  %163 = vmatmul.mubr.bf16.gmra.mxu0 %v83
  %v164 = vpop.f32.mrf.mxu0
  %v165 = vadd.f32 0.0, %v164
  %v166 = vpop.f32.mrf.mxu0
  %v167 = vpop.f32.mrf.mxu0
  %v168 = vadd.f32 0.0, %v167
  %v169 = vpop.f32.mrf.mxu0
  %170 = vmatprep.mubr.bf16.mxu0 0
  %171 = vmatmul.mubr.bf16.gmra.mxu0 %v86
  %v172 = vpop.f32.mrf.mxu0
  %v173 = vadd.f32 0.0, %v172
  %v174 = vpop.f32.mrf.mxu0
  %v175 = vpop.f32.mrf.mxu0
  %v176 = vadd.f32 0.0, %v175
  %v177 = vpop.f32.mrf.mxu0
  %178 = vmatprep.mubr.bf16.mxu0 0
  %179 = vmatmul.mubr.bf16.gmra.mxu0 %v89
  %v180 = vpop.f32.mrf.mxu0
  %v181 = vadd.f32 0.0, %v180
  %v182 = vpop.f32.mrf.mxu0
  %v183 = vpop.f32.mrf.mxu0
  %v184 = vadd.f32 0.0, %v183
  %v185 = vpop.f32.mrf.mxu0
  %186 = vmatprep.mubr.bf16.mxu0 0
  %187 = vmatmul.mubr.bf16.gmra.mxu0 %v92
  %v188 = vpop.f32.mrf.mxu0
  %v189 = vadd.f32 0.0, %v188
  %v190 = vpop.f32.mrf.mxu0
  %v191 = vpop.f32.mrf.mxu0
  %v192 = vadd.f32 0.0, %v191
  %v193 = vpop.f32.mrf.mxu0
  %194 = vdwg.mxu0
  %vm195 = vcmask 130048
  %196 = vst.msk [vmem:[%s2] sm:$0xff] %vm195, %v133
  %197 = vst.msk [vmem:[%s2 + $0x8] sm:$0xff] %vm195, %v136
  %198 = vst.msk [vmem:[%s2 + $0x10] sm:$0xff] %vm195, %v141
  %199 = vst.msk [vmem:[%s2 + $0x18] sm:$0xff] %vm195, %v144
  %200 = vst.msk [vmem:[%s2 + $0x20] sm:$0xff] %vm195, %v149
  %201 = vst.msk [vmem:[%s2 + $0x28] sm:$0xff] %vm195, %v152
  %202 = vst.msk [vmem:[%s2 + $0x30] sm:$0xff] %vm195, %v157
  %203 = vst.msk [vmem:[%s2 + $0x38] sm:$0xff] %vm195, %v160
  %204 = vst.msk [vmem:[%s2 + $0x40] sm:$0xff] %vm195, %v165
  %205 = vst.msk [vmem:[%s2 + $0x48] sm:$0xff] %vm195, %v168
  %206 = vst.msk [vmem:[%s2 + $0x50] sm:$0xff] %vm195, %v173
  %207 = vst.msk [vmem:[%s2 + $0x58] sm:$0xff] %vm195, %v176
  %208 = vst.msk [vmem:[%s2 + $0x60] sm:$0xff] %vm195, %v181
  %209 = vst.msk [vmem:[%s2 + $0x68] sm:$0xff] %vm195, %v184
  %210 = vst.msk [vmem:[%s2 + $0x70] sm:$0xff] %vm195, %v189
  %211 = vst.msk [vmem:[%s2 + $0x78] sm:$0xff] %vm195, %v192
  // Predicated region
  $region10: #{resnet_forward.42} parent=0 // pred_check
    _
  $region11: #{resnet_forward.42} parent=0 // pred_check_branch
    %213 = sbr.rel (0) target = $region13
  $region12: #{resnet_forward.42} parent=0 // pred_region
    _
  $region13: #{resnet_forward.42} parent=0 // pred_fallthru
    _
  // Predicated region
  $region14: #{resnet_forward.42} parent=0 // pred_check
    _
  $region15: #{resnet_forward.42} parent=0 // pred_check_branch
    %215 = sbr.rel (0) target = $region17
  $region16: #{resnet_forward.42} parent=0 // pred_region
    _
  $region17: #{resnet_forward.42} parent=0 // pred_fallthru
    _

// kernel: resnet_forward.44
$region0: #{resnet_forward.44}
  #allocation0 [shape = 'u32[]', space=smem, size = 0x4, offset = 0x4, fixed_abs, tag = 'smem constant byte address 0x4 - core index']
  #allocation1 [shape = 'u32[144,128]{1,0:T(1,128)}', space=vmem, size = 0x12000, scoped, tag = 'internal scratch']
  %s0 = inlined_call_operand.vmem [shape: f32[16,128], index: 0, kind: input, shape index: {}]
  %s1 = inlined_call_operand.vmem [shape: f32[1,128], index: 1, kind: input, shape index: {}]
  %s2 = inlined_call_operand.vmem [shape: f32[1,128], index: 2, kind: input, shape index: {}]
  %s3 = inlined_call_operand.vmem [shape: f32[16,128], index: 3, kind: input, shape index: {}]
  %s4 = inlined_call_operand.vmem [shape: f32[16,128], index: 4, kind: output, shape index: {}]
  %s5 = sld [smem:[#allocation0]]
  $region26: #{resnet_forward.44} parent=0
    _
  %s7 = ssub.s32 1, %s5
  %s8 = scalar_select 0, %s7, %s5
  // Predicated region
  $region2: #{resnet_forward.44} parent=0 // pred_check
    _
  $region3: #{resnet_forward.44} parent=0 // pred_check_branch
    %10 = sbr.rel (0) target = $region5
  $region4: #{resnet_forward.44} parent=0 // pred_region
    _
  $region5: #{resnet_forward.44} parent=0 // pred_fallthru
    _
  // Predicated region
  $region6: #{resnet_forward.44} parent=0 // pred_check
    _
  $region7: #{resnet_forward.44} parent=0 // pred_check_branch
    %12 = sbr.rel (0) target = $region9
  $region8: #{resnet_forward.44} parent=0 // pred_region
    _
  $region9: #{resnet_forward.44} parent=0 // pred_fallthru
    _
  // Predicated region
  $region10: #{resnet_forward.44} parent=0 // pred_check
    _
  $region11: #{resnet_forward.44} parent=0 // pred_check_branch
    %14 = sbr.rel (0) target = $region13
  $region12: #{resnet_forward.44} parent=0 // pred_region
    _
  $region13: #{resnet_forward.44} parent=0 // pred_fallthru
    _
  // Predicated region
  $region14: #{resnet_forward.44} parent=0 // pred_check
    _
  $region15: #{resnet_forward.44} parent=0 // pred_check_branch
    %16 = sbr.rel (0) target = $region17
  $region16: #{resnet_forward.44} parent=0 // pred_region
    _
  $region17: #{resnet_forward.44} parent=0 // pred_fallthru
    _
  %v17 = vld [vmem:[%s0] sm:$0xff]
  %v18 = vld [vmem:[%s0 + $0x8] sm:$0xff]
  %v19 = vld [vmem:[%s1] sm:$0x1]
  %v21 = vlaneseq
  %v22 = vshrl.u32 %v21, 7
  %v23 = vsub.s32 0, %v22
  %v24 = vrot.slane %v19, %v23
  %v26 = vmul.f32 %v17, %v24
  %v27 = vmul.f32 %v18, %v24
  %v28 = vld [vmem:[%s2] sm:$0x1]
  %v30 = vlaneseq
  %v31 = vshrl.u32 %v30, 7
  %v32 = vsub.s32 0, %v31
  %v33 = vrot.slane %v28, %v32
  %v35 = vadd.f32 %v26, %v33
  %v36 = vadd.f32 %v27, %v33
  %v37 = vld [vmem:[%s3] sm:$0xff]
  %v38 = vld [vmem:[%s3 + $0x8] sm:$0xff]
  %v39 = vadd.f32 %v35, %v37
  %v40 = vadd.f32 %v36, %v38
  %v41 = vmax.f32 %v39, 0.0
  %v42 = vmax.f32 %v40, 0.0
  %43 = vst [vmem:[%s4] sm:$0xff] %v41
  %44 = vst [vmem:[%s4 + $0x8] sm:$0xff] %v42
  // Predicated region
  $region18: #{resnet_forward.44} parent=0 // pred_check
    _
  $region19: #{resnet_forward.44} parent=0 // pred_check_branch
    %46 = sbr.rel (0) target = $region21
  $region20: #{resnet_forward.44} parent=0 // pred_region
    _
  $region21: #{resnet_forward.44} parent=0 // pred_fallthru
    _
  // Predicated region
  $region22: #{resnet_forward.44} parent=0 // pred_check
    _
  $region23: #{resnet_forward.44} parent=0 // pred_check_branch
    %48 = sbr.rel (0) target = $region25
  $region24: #{resnet_forward.44} parent=0 // pred_region
    _
  $region25: #{resnet_forward.44} parent=0 // pred_fallthru
    _

// kernel: tile.223
$region0: #{tile.223}
  #allocation0 [shape = 's32[1]{0}', space=sflag, size = 0x4, scoped, tag = 'scoped memory for tile.223']
  %s0 = inlined_call_operand.vmem [shape: f32[32], index: 0, kind: input, shape index: {}]
  %s1 = inlined_call_operand.vmem [shape: f32[4,32], index: 1, kind: output, shape index: {}]
  // Predicated region
  $region2: #{tile.223} parent=0 // pred_check
    _
  $region3: #{tile.223} parent=0 // pred_check_branch
    %3 = sbr.rel (0) target = $region5
  $region4: #{tile.223} parent=0 // pred_region
    _
  $region5: #{tile.223} parent=0 // pred_fallthru
    _
  %v4 = vld [vmem:[%s0] ss:$0 sm:$0xff]
  %5 = vst [vmem:[%s1] sm:$0xf] %v4

// kernel: tile.224
$region0: #{tile.224}
  %s0 = inlined_call_operand.vmem [shape: f32[4,32], index: 0, kind: input, shape index: {}]
  %s1 = inlined_call_operand.vmem [shape: f32[1,128], index: 1, kind: output, shape index: {}]
  $region1: #{tile.224} parent=0
    #allocation0 [shape = 'u8[4096]{0}', space=vmem, size = 0x1000, scoped, tag = 'scoped mem for output reshape']
    #allocation1 [shape = 'u8[4096]{0}', space=vmem, size = 0x1000, scoped, tag = 'scoped mem for input reshape']
    %s3 = sshll.u32 1, 4
    %s4 = ssub.s32 %s3, 1
    %v5 = vld [vmem:[%s0] sm:%s4]
    %6 = vst [vmem:[#allocation1] sm:%s4] %v5
    %v7 = vld [vmem:[#allocation1] sm:$0x1]
    %vm8 = vcmask 261120
    %9 = vst.msk [vmem:[#allocation0] sm:$0x1] %vm8, %v7
    %s10 = scalar_lea.vmem [#allocation1], 3
    %v11 = vld [vmem:[%s10] sm:$0x1]
    %12 = vrot.lane.b32.xlu0 %v11, 96
    %v13 = vpop.permute.xlu0 %12
    %vm14 = vcmask 1048320
    %15 = vst.msk [vmem:[#allocation0] sm:$0x1] %vm14, %v13
    %s16 = scalar_lea.vmem [#allocation1], 2
    %v17 = vld [vmem:[%s16] sm:$0x1]
    %18 = vrot.lane.b32.xlu0 %v17, 64
    %v19 = vpop.permute.xlu0 %18
    %vm20 = vcmask 785920
    %21 = vst.msk [vmem:[#allocation0] sm:$0x1] %vm20, %v19
    %s22 = scalar_lea.vmem [#allocation1], 1
    %v23 = vld [vmem:[%s22] sm:$0x1]
    %24 = vrot.lane.b32.xlu0 %v23, 32
    %v25 = vpop.permute.xlu0 %24
    %vm26 = vcmask 523520
    %27 = vst.msk [vmem:[#allocation0] sm:$0x1] %vm26, %v25
    %s29 = sshll.u32 1, 1
    %s30 = ssub.s32 %s29, 1
    %v32 = vld [vmem:[#allocation0] sm:%s30]
    %s33 = sshll.u32 1, 1
    %s34 = ssub.s32 %s33, 1
    %35 = vst [vmem:[%s1] sm:%s34] %v32

// kernel: resnet_forward.50
$region0: #{resnet_forward.50}
  #allocation0 [shape = 'u32[]', space=smem, size = 0x4, offset = 0x4, fixed_abs, tag = 'smem constant byte address 0x4 - core index']
  #allocation1 [shape = 'u32[144,128]{1,0:T(1,128)}', space=vmem, size = 0x12000, scoped, tag = 'internal scratch']
  %s0 = inlined_call_operand.vmem [shape: f32[8,128], index: 0, kind: input, shape index: {}]
  %s1 = inlined_call_operand.vmem [shape: f32[1,128], index: 1, kind: input, shape index: {}]
  %s2 = inlined_call_operand.vmem [shape: f32[1,128], index: 2, kind: input, shape index: {}]
  %s3 = inlined_call_operand.vmem [shape: f32[8,128], index: 3, kind: output, shape index: {}]
  %s4 = sld [smem:[#allocation0]]
  $region22: #{resnet_forward.50} parent=0
    _
  %s6 = ssub.s32 1, %s4
  %s7 = scalar_select 0, %s6, %s4
  // Predicated region
  $region2: #{resnet_forward.50} parent=0 // pred_check
    _
  $region3: #{resnet_forward.50} parent=0 // pred_check_branch
    %9 = sbr.rel (0) target = $region5
  $region4: #{resnet_forward.50} parent=0 // pred_region
    _
  $region5: #{resnet_forward.50} parent=0 // pred_fallthru
    _
  // Predicated region
  $region6: #{resnet_forward.50} parent=0 // pred_check
    _
  $region7: #{resnet_forward.50} parent=0 // pred_check_branch
    %11 = sbr.rel (0) target = $region9
  $region8: #{resnet_forward.50} parent=0 // pred_region
    _
  $region9: #{resnet_forward.50} parent=0 // pred_fallthru
    _
  // Predicated region
  $region10: #{resnet_forward.50} parent=0 // pred_check
    _
  $region11: #{resnet_forward.50} parent=0 // pred_check_branch
    %13 = sbr.rel (0) target = $region13
  $region12: #{resnet_forward.50} parent=0 // pred_region
    _
  $region13: #{resnet_forward.50} parent=0 // pred_fallthru
    _
  %v14 = vld [vmem:[%s0] sm:$0xff]
  %v15 = vld [vmem:[%s1] sm:$0x1]
  %v17 = vlaneseq
  %v18 = vshrl.u32 %v17, 7
  %v19 = vsub.s32 0, %v18
  %v20 = vrot.slane %v15, %v19
  %v22 = vmul.f32 %v14, %v20
  %v23 = vld [vmem:[%s2] sm:$0x1]
  %v25 = vlaneseq
  %v26 = vshrl.u32 %v25, 7
  %v27 = vsub.s32 0, %v26
  %v28 = vrot.slane %v23, %v27
  %v30 = vadd.f32 %v22, %v28
  %v31 = vmax.f32 %v30, 0.0
  %32 = vst [vmem:[%s3] sm:$0xff] %v31
  // Predicated region
  $region14: #{resnet_forward.50} parent=0 // pred_check
    _
  $region15: #{resnet_forward.50} parent=0 // pred_check_branch
    %34 = sbr.rel (0) target = $region17
  $region16: #{resnet_forward.50} parent=0 // pred_region
    _
  $region17: #{resnet_forward.50} parent=0 // pred_fallthru
    _
  // Predicated region
  $region18: #{resnet_forward.50} parent=0 // pred_check
    _
  $region19: #{resnet_forward.50} parent=0 // pred_check_branch
    %36 = sbr.rel (0) target = $region21
  $region20: #{resnet_forward.50} parent=0 // pred_region
    _
  $region21: #{resnet_forward.50} parent=0 // pred_fallthru
    _

// kernel: resnet_forward.49
$region0: #{resnet_forward.49}
  #allocation0 [shape = 'u32[]', space=smem, size = 0x4, offset = 0x4, fixed_abs, tag = 'smem constant byte address 0x4 - core index']
  #allocation1 [shape = 'u32[144,128]{1,0:T(1,128)}', space=vmem, size = 0x12000, scoped, tag = 'internal scratch']
  %s0 = inlined_call_operand.vmem [shape: bf16[32,144], index: 0, kind: input, shape index: {}]
  %s1 = inlined_call_operand.vmem [shape: bf16[144,32], index: 1, kind: input, shape index: {}]
  %s2 = inlined_call_operand.vmem [shape: f32[32,32], index: 2, kind: output, shape index: {0}]
  %s3 = inlined_call_operand.vmem [shape: f32[1,1,32], index: 3, kind: output, shape index: {1}]
  %s4 = inlined_call_operand.vmem [shape: f32[1,1,32], index: 4, kind: output, shape index: {2}]
  %5 = xla_tuple %s2, %s3, %s4
  %s6 = sld [smem:[#allocation0]]
  $region34: #{resnet_forward.49} parent=0
    _
  %s8 = ssub.s32 1, %s6
  %s9 = scalar_select 0, %s8, %s6
  // Predicated region
  $region2: #{resnet_forward.49} parent=0 // pred_check
    _
  $region3: #{resnet_forward.49} parent=0 // pred_check_branch
    %11 = sbr.rel (0) target = $region5
  $region4: #{resnet_forward.49} parent=0 // pred_region
    _
  $region5: #{resnet_forward.49} parent=0 // pred_fallthru
    _
  // Predicated region
  $region6: #{resnet_forward.49} parent=0 // pred_check
    _
  $region7: #{resnet_forward.49} parent=0 // pred_check_branch
    %13 = sbr.rel (0) target = $region9
  $region8: #{resnet_forward.49} parent=0 // pred_region
    _
  $region9: #{resnet_forward.49} parent=0 // pred_fallthru
    _
  %v15 = vld [vmem:[%s0] sm:$0xff]
  %v16 = vld [vmem:[%s0 + $0x8] sm:$0xff]
  %v17 = vld [vmem:[%s0 + $0x10] sm:$0xff]
  %v18 = vld [vmem:[%s0 + $0x18] sm:$0xff]
  %v19 = vld [vmem:[%s1] sm:$0xf]
  %v20 = vld [vmem:[%s1 + $0x4] sm:$0xf]
  %v21 = vld [vmem:[%s1 + $0x8] sm:$0xf]
  %v22 = vld [vmem:[%s1 + $0xc] sm:$0xf]
  %v23 = vld [vmem:[%s1 + $0x10] sm:$0xf]
  %v24 = vld [vmem:[%s1 + $0x14] sm:$0xf]
  %v25 = vld [vmem:[%s1 + $0x18] sm:$0xf]
  %v26 = vld [vmem:[%s1 + $0x1c] sm:$0xf]
  %v27 = vld [vmem:[%s1 + $0x20] sm:$0xf]
  %v28 = vld [vmem:[%s1 + $0x24] sm:$0xf]
  %v29 = vld [vmem:[%s1 + $0x28] sm:$0xf]
  %v30 = vld [vmem:[%s1 + $0x2c] sm:$0xf]
  %v31 = vld [vmem:[%s1 + $0x30] sm:$0xf]
  %v32 = vld [vmem:[%s1 + $0x34] sm:$0xf]
  %v33 = vld [vmem:[%s1 + $0x38] sm:$0xf]
  %v34 = vld [vmem:[%s1 + $0x3c] sm:$0xf]
  %v35 = vld [vmem:[%s1 + $0x40] sm:$0xf]
  %v36 = vld [vmem:[%s1 + $0x44] sm:$0xf]
  %v41 = vunpack.c.l.b16 %v15
  %v42 = vunpack.c.h.b16 %v15
  %v43 = vunpack.c.l.b16 %v16
  %v44 = vunpack.c.h.b16 %v16
  %v45 = vunpack.c.l.b16 %v17
  %v46 = vunpack.c.h.b16 %v17
  %v47 = vunpack.c.l.b16 %v18
  %v48 = vunpack.c.h.b16 %v18
  %v49 = vpack.c.b16 %v43, %v41
  %v50 = vpack.c.b16 %v44, %v42
  %v51 = vpack.c.b16 %v47, %v45
  %v52 = vpack.c.b16 %v48, %v46
  %v73 = vunpack.c.l.b16 %v19
  %v74 = vunpack.c.l.b16 %v20
  %v75 = vunpack.c.l.b16 %v21
  %v76 = vunpack.c.l.b16 %v22
  %v77 = vunpack.c.l.b16 %v23
  %v78 = vunpack.c.l.b16 %v24
  %v79 = vunpack.c.l.b16 %v25
  %v80 = vunpack.c.l.b16 %v26
  %v81 = vunpack.c.l.b16 %v27
  %v82 = vunpack.c.l.b16 %v28
  %v83 = vunpack.c.l.b16 %v29
  %v84 = vunpack.c.l.b16 %v30
  %v85 = vunpack.c.l.b16 %v31
  %v86 = vunpack.c.l.b16 %v32
  %v87 = vunpack.c.l.b16 %v33
  %v88 = vunpack.c.l.b16 %v34
  %v89 = vunpack.c.l.b16 %v35
  %v90 = vunpack.c.l.b16 %v36
  %v91 = vpack.c.b16 %v74, %v73
  %v92 = vpack.c.b16 %v76, %v75
  %v93 = vpack.c.b16 %v78, %v77
  %v94 = vpack.c.b16 %v80, %v79
  %v95 = vpack.c.b16 %v82, %v81
  %v96 = vpack.c.b16 %v84, %v83
  %v97 = vpack.c.b16 %v86, %v85
  %v98 = vpack.c.b16 %v88, %v87
  %v99 = vpack.c.b16 %v90, %v89
  %vm109 = vcmask 130048
  %v111 = vsel %vm109, %v50, 0
  %v114 = vsel %vm109, %v52, 0
  %116 = vmatprep.subr.bf16.mxu0 0
  %117 = vmatpush1.bf16.msra.mxu0 %v98
  %118 = vmatprep.subr.bf16.mxu0 0
  %119 = vmatpush1.bf16.msra.mxu0 %v97
  %120 = vmatprep.subr.bf16.mxu0 0
  %121 = vmatpush1.bf16.msra.mxu0 %v96
  %122 = vmatprep.subr.bf16.mxu0 0
  %123 = vmatpush1.bf16.msra.mxu0 %v95
  %124 = vmatprep.subr.bf16.mxu0 0
  %125 = vmatpush1.bf16.msra.mxu0 %v94
  %126 = vmatprep.subr.bf16.mxu0 0
  %127 = vmatpush1.bf16.msra.mxu0 %v93
  %128 = vmatprep.subr.bf16.mxu0 0
  %129 = vmatpush1.bf16.msra.mxu0 %v92
  %130 = vmatprep.subr.bf16.mxu0 0
  %131 = vmatpush1.bf16.msra.mxu0 %v91
  %132 = vmatprep.subr.bf16.mxu0 0
  %133 = vmatpush2.bf16.msra.mxu0 0
  %134 = vmatprep.subr.bf16.mxu0 0
  %135 = vmatpush2.bf16.msra.mxu0 0
  %136 = vmatprep.subr.bf16.mxu0 0
  %137 = vmatpush2.bf16.msra.mxu0 0
  %138 = vmatprep.subr.bf16.mxu0 0
  %139 = vmatpush2.bf16.msra.mxu0 0
  %140 = vmatprep.subr.bf16.mxu0 0
  %141 = vmatpush2.bf16.msra.mxu0 0
  %142 = vmatprep.subr.bf16.mxu0 0
  %143 = vmatpush2.bf16.msra.mxu0 0
  %144 = vmatprep.subr.bf16.mxu0 0
  %145 = vmatpush2.bf16.msra.mxu0 0
  %146 = vmatprep.subr.bf16.mxu0 0
  %147 = vmatpush2.bf16.msra.mxu0 %v99
  %148 = vmatprep.mubr.bf16.mxu0 %v111
  %149 = vmatmul.mubr.bf16.gmra.mxu0 %v49
  %v150 = vpop.f32.mrf.mxu0
  %v151 = vadd.f32 0.0, %v150
  %v152 = vpop.f32.mrf.mxu0
  %v153 = vpop.f32.mrf.mxu0
  %v154 = vadd.f32 0.0, %v153
  %v155 = vpop.f32.mrf.mxu0
  %156 = vmatprep.mubr.bf16.mxu0 %v114
  %157 = vmatmul.mubr.bf16.gmra.mxu0 %v51
  %v158 = vpop.f32.mrf.mxu0
  %v159 = vadd.f32 0.0, %v158
  %v160 = vpop.f32.mrf.mxu0
  %v161 = vpop.f32.mrf.mxu0
  %v162 = vadd.f32 0.0, %v161
  %v163 = vpop.f32.mrf.mxu0
  %164 = vdwg.mxu0
  %vm165 = vcmask 261120
  %166 = vst.msk [vmem:[%s2] sm:$0xff] %vm165, %v151
  %167 = vst.msk [vmem:[%s2 + $0x8] sm:$0xff] %vm165, %v154
  %168 = vst.msk [vmem:[%s2 + $0x10] sm:$0xff] %vm165, %v159
  %169 = vst.msk [vmem:[%s2 + $0x18] sm:$0xff] %vm165, %v162
  %v170 = vsel %vm165, %v151, 0.0
  %v171 = vsel %vm165, %v154, 0.0
  %v172 = vadd.f32 %v170, %v171
  %v173 = vsel %vm165, %v159, 0.0
  %v174 = vadd.f32 %v172, %v173
  %v175 = vsel %vm165, %v162, 0.0
  %v176 = vadd.f32 %v174, %v175
  %v177 = vrot.slane %v176, 4
  %v178 = vadd.f32 %v176, %v177
  %v179 = vrot.slane %v178, 2
  %v180 = vadd.f32 %v178, %v179
  %v181 = vrot.slane %v180, 1
  %v182 = vadd.f32 %v180, %v181
  %vm183 = vcmask 253952
  %184 = vst.msk [vmem:[%s3] sm:$0x1] %vm183, %v182
  %v185 = vmul.f32 %v151, %v151
  %v186 = vmul.f32 %v154, %v154
  %v187 = vmul.f32 %v159, %v159
  %v188 = vmul.f32 %v162, %v162
  %v189 = vsel %vm165, %v185, 0.0
  %v190 = vsel %vm165, %v186, 0.0
  %v191 = vadd.f32 %v189, %v190
  %v192 = vsel %vm165, %v187, 0.0
  %v193 = vadd.f32 %v191, %v192
  %v194 = vsel %vm165, %v188, 0.0
  %v195 = vadd.f32 %v193, %v194
  %v196 = vrot.slane %v195, 4
  %v197 = vadd.f32 %v195, %v196
  %v198 = vrot.slane %v197, 2
  %v199 = vadd.f32 %v197, %v198
  %v200 = vrot.slane %v199, 1
  %v201 = vadd.f32 %v199, %v200
  %202 = vst.msk [vmem:[%s4] sm:$0x1] %vm183, %v201
  // Predicated region
  $region10: #{resnet_forward.49} parent=0 // pred_check
    _
  $region11: #{resnet_forward.49} parent=0 // pred_check_branch
    %204 = sbr.rel (0) target = $region13
  $region12: #{resnet_forward.49} parent=0 // pred_region
    _
  $region13: #{resnet_forward.49} parent=0 // pred_fallthru
    _
  // Predicated region
  $region14: #{resnet_forward.49} parent=0 // pred_check
    _
  $region15: #{resnet_forward.49} parent=0 // pred_check_branch
    %206 = sbr.rel (0) target = $region17
  $region16: #{resnet_forward.49} parent=0 // pred_region
    _
  $region17: #{resnet_forward.49} parent=0 // pred_fallthru
    _
  // Predicated region
  $region18: #{resnet_forward.49} parent=0 // pred_check
    _
  $region19: #{resnet_forward.49} parent=0 // pred_check_branch
    %208 = sbr.rel (0) target = $region21
  $region20: #{resnet_forward.49} parent=0 // pred_region
    _
  $region21: #{resnet_forward.49} parent=0 // pred_fallthru
    _
  // Predicated region
  $region22: #{resnet_forward.49} parent=0 // pred_check
    _
  $region23: #{resnet_forward.49} parent=0 // pred_check_branch
    %210 = sbr.rel (0) target = $region25
  $region24: #{resnet_forward.49} parent=0 // pred_region
    _
  $region25: #{resnet_forward.49} parent=0 // pred_fallthru
    _
  // Predicated region
  $region26: #{resnet_forward.49} parent=0 // pred_check
    _
  $region27: #{resnet_forward.49} parent=0 // pred_check_branch
    %212 = sbr.rel (0) target = $region29
  $region28: #{resnet_forward.49} parent=0 // pred_region
    _
  $region29: #{resnet_forward.49} parent=0 // pred_fallthru
    _
  // Predicated region
  $region30: #{resnet_forward.49} parent=0 // pred_check
    _
  $region31: #{resnet_forward.49} parent=0 // pred_check_branch
    %214 = sbr.rel (0) target = $region33
  $region32: #{resnet_forward.49} parent=0 // pred_region
    _
  $region33: #{resnet_forward.49} parent=0 // pred_fallthru
    _

// kernel: resnet_forward.58
$region0: #{resnet_forward.58}
  #allocation0 [shape = 'u32[]', space=smem, size = 0x4, offset = 0x4, fixed_abs, tag = 'smem constant byte address 0x4 - core index']
  #allocation1 [shape = 'u32[144,128]{1,0:T(1,128)}', space=vmem, size = 0x12000, scoped, tag = 'internal scratch']
  %s0 = inlined_call_operand.vmem [shape: f32[2,16,32], index: 0, kind: input, shape index: {}]
  %s1 = inlined_call_operand.vmem [shape: f32[2,32], index: 1, kind: output, shape index: {}]
  %s2 = sld [smem:[#allocation0]]
  $region14: #{resnet_forward.58} parent=0
    _
  %s4 = ssub.s32 1, %s2
  %s5 = scalar_select 0, %s4, %s2
  // Predicated region
  $region2: #{resnet_forward.58} parent=0 // pred_check
    _
  $region3: #{resnet_forward.58} parent=0 // pred_check_branch
    %7 = sbr.rel (0) target = $region5
  $region4: #{resnet_forward.58} parent=0 // pred_region
    _
  $region5: #{resnet_forward.58} parent=0 // pred_fallthru
    _
  %v8 = vld [vmem:[%s0] sm:$0xff]
  %v9 = vld [vmem:[%s0 + $0x8] sm:$0xff]
  %v10 = vld [vmem:[%s0 + $0x10] sm:$0xff]
  %v11 = vld [vmem:[%s0 + $0x18] sm:$0xff]
  %vm12 = vcmask 261120
  %v13 = vsel %vm12, %v8, 0.0
  %v14 = vsel %vm12, %v9, 0.0
  %v15 = vadd.f32 %v13, %v14
  %v16 = vrot.slane %v15, 4
  %v17 = vadd.f32 %v15, %v16
  %v18 = vrot.slane %v17, 2
  %v19 = vadd.f32 %v17, %v18
  %v20 = vrot.slane %v19, 1
  %v21 = vadd.f32 %v19, %v20
  %v22 = vsel %vm12, %v10, 0.0
  %v23 = vsel %vm12, %v11, 0.0
  %v24 = vadd.f32 %v22, %v23
  %v25 = vrot.slane %v24, 4
  %v26 = vadd.f32 %v24, %v25
  %v27 = vrot.slane %v26, 2
  %v28 = vadd.f32 %v26, %v27
  %v29 = vrot.slane %v28, 1
  %v30 = vadd.f32 %v28, %v29
  %v31 = vrcp.pop 16.0
  %v32 = vmul.f32 %v21, %v31
  %v33 = vmul.f32 %v30, %v31
  %vm36 = vcmask 1041409
  %v37 = vsel %vm36, %v33, %v32
  %vm39 = vcmask 254976
  %40 = vst.msk [vmem:[%s1] sm:$0x3] %vm39, %v37
  // Predicated region
  $region6: #{resnet_forward.58} parent=0 // pred_check
    _
  $region7: #{resnet_forward.58} parent=0 // pred_check_branch
    %42 = sbr.rel (0) target = $region9
  $region8: #{resnet_forward.58} parent=0 // pred_region
    _
  $region9: #{resnet_forward.58} parent=0 // pred_fallthru
    _
  // Predicated region
  $region10: #{resnet_forward.58} parent=0 // pred_check
    _
  $region11: #{resnet_forward.58} parent=0 // pred_check_branch
    %44 = sbr.rel (0) target = $region13
  $region12: #{resnet_forward.58} parent=0 // pred_region
    _
  $region13: #{resnet_forward.58} parent=0 // pred_fallthru
    _

// kernel: resnet_forward.53
$region0: #{resnet_forward.53}
  #allocation0 [shape = 'u32[]', space=smem, size = 0x4, offset = 0x4, fixed_abs, tag = 'smem constant byte address 0x4 - core index']
  #allocation1 [shape = 'u32[144,128]{1,0:T(1,128)}', space=vmem, size = 0x12000, scoped, tag = 'internal scratch']
  %s0 = inlined_call_operand.vmem [shape: f32[8,128], index: 0, kind: input, shape index: {}]
  %s1 = inlined_call_operand.vmem [shape: f32[1,128], index: 1, kind: input, shape index: {}]
  %s2 = inlined_call_operand.vmem [shape: f32[1,128], index: 2, kind: input, shape index: {}]
  %s3 = inlined_call_operand.vmem [shape: f32[8,128], index: 3, kind: input, shape index: {}]
  %s4 = inlined_call_operand.vmem [shape: f32[8,128], index: 4, kind: output, shape index: {}]
  %s5 = sld [smem:[#allocation0]]
  $region26: #{resnet_forward.53} parent=0
    _
  %s7 = ssub.s32 1, %s5
  %s8 = scalar_select 0, %s7, %s5
  // Predicated region
  $region2: #{resnet_forward.53} parent=0 // pred_check
    _
  $region3: #{resnet_forward.53} parent=0 // pred_check_branch
    %10 = sbr.rel (0) target = $region5
  $region4: #{resnet_forward.53} parent=0 // pred_region
    _
  $region5: #{resnet_forward.53} parent=0 // pred_fallthru
    _
  // Predicated region
  $region6: #{resnet_forward.53} parent=0 // pred_check
    _
  $region7: #{resnet_forward.53} parent=0 // pred_check_branch
    %12 = sbr.rel (0) target = $region9
  $region8: #{resnet_forward.53} parent=0 // pred_region
    _
  $region9: #{resnet_forward.53} parent=0 // pred_fallthru
    _
  // Predicated region
  $region10: #{resnet_forward.53} parent=0 // pred_check
    _
  $region11: #{resnet_forward.53} parent=0 // pred_check_branch
    %14 = sbr.rel (0) target = $region13
  $region12: #{resnet_forward.53} parent=0 // pred_region
    _
  $region13: #{resnet_forward.53} parent=0 // pred_fallthru
    _
  // Predicated region
  $region14: #{resnet_forward.53} parent=0 // pred_check
    _
  $region15: #{resnet_forward.53} parent=0 // pred_check_branch
    %16 = sbr.rel (0) target = $region17
  $region16: #{resnet_forward.53} parent=0 // pred_region
    _
  $region17: #{resnet_forward.53} parent=0 // pred_fallthru
    _
  %v17 = vld [vmem:[%s0] sm:$0xff]
  %v18 = vld [vmem:[%s1] sm:$0x1]
  %v20 = vlaneseq
  %v21 = vshrl.u32 %v20, 7
  %v22 = vsub.s32 0, %v21
  %v23 = vrot.slane %v18, %v22
  %v25 = vmul.f32 %v17, %v23
  %v26 = vld [vmem:[%s2] sm:$0x1]
  %v28 = vlaneseq
  %v29 = vshrl.u32 %v28, 7
  %v30 = vsub.s32 0, %v29
  %v31 = vrot.slane %v26, %v30
  %v33 = vadd.f32 %v25, %v31
  %v34 = vld [vmem:[%s3] sm:$0xff]
  %v35 = vadd.f32 %v33, %v34
  %v36 = vmax.f32 %v35, 0.0
  %37 = vst [vmem:[%s4] sm:$0xff] %v36
  // Predicated region
  $region18: #{resnet_forward.53} parent=0 // pred_check
    _
  $region19: #{resnet_forward.53} parent=0 // pred_check_branch
    %39 = sbr.rel (0) target = $region21
  $region20: #{resnet_forward.53} parent=0 // pred_region
    _
  $region21: #{resnet_forward.53} parent=0 // pred_fallthru
    _
  // Predicated region
  $region22: #{resnet_forward.53} parent=0 // pred_check
    _
  $region23: #{resnet_forward.53} parent=0 // pred_check_branch
    %41 = sbr.rel (0) target = $region25
  $region24: #{resnet_forward.53} parent=0 // pred_region
    _
  $region25: #{resnet_forward.53} parent=0 // pred_fallthru
    _

// kernel: resnet_forward.51
$region0: #{resnet_forward.51}
  #allocation0 [shape = 'u32[]', space=smem, size = 0x4, offset = 0x4, fixed_abs, tag = 'smem constant byte address 0x4 - core index']
  #allocation1 [shape = 'u32[144,128]{1,0:T(1,128)}', space=vmem, size = 0x12000, scoped, tag = 'internal scratch']
  %s0 = inlined_call_operand.vmem [shape: bf16[32,16], index: 0, kind: input, shape index: {}]
  %s1 = inlined_call_operand.vmem [shape: bf16[16,32], index: 1, kind: input, shape index: {}]
  %s2 = inlined_call_operand.vmem [shape: f32[32,32], index: 2, kind: output, shape index: {}]
  %s3 = sld [smem:[#allocation0]]
  $region18: #{resnet_forward.51} parent=0
    _
  %s5 = ssub.s32 1, %s3
  %s6 = scalar_select 0, %s5, %s3
  // Predicated region
  $region2: #{resnet_forward.51} parent=0 // pred_check
    _
  $region3: #{resnet_forward.51} parent=0 // pred_check_branch
    %8 = sbr.rel (0) target = $region5
  $region4: #{resnet_forward.51} parent=0 // pred_region
    _
  $region5: #{resnet_forward.51} parent=0 // pred_fallthru
    _
  // Predicated region
  $region6: #{resnet_forward.51} parent=0 // pred_check
    _
  $region7: #{resnet_forward.51} parent=0 // pred_check_branch
    %10 = sbr.rel (0) target = $region9
  $region8: #{resnet_forward.51} parent=0 // pred_region
    _
  $region9: #{resnet_forward.51} parent=0 // pred_fallthru
    _
  %v12 = vld [vmem:[%s0] sm:$0xf]
  %v13 = vld [vmem:[%s0 + $0x4] sm:$0xf]
  %v14 = vld [vmem:[%s0 + $0x8] sm:$0xf]
  %v15 = vld [vmem:[%s0 + $0xc] sm:$0xf]
  %v16 = vld [vmem:[%s1] sm:$0xf]
  %v17 = vld [vmem:[%s1 + $0x4] sm:$0xf]
  %v22 = vunpack.c.l.b16 %v12
  %v23 = vunpack.c.l.b16 %v13
  %v24 = vunpack.c.l.b16 %v14
  %v25 = vunpack.c.l.b16 %v15
  %v26 = vpack.c.b16 %v23, %v22
  %v27 = vpack.c.b16 %v25, %v24
  %v30 = vunpack.c.l.b16 %v16
  %v31 = vunpack.c.l.b16 %v17
  %v32 = vpack.c.b16 %v31, %v30
  %vm34 = vcmask 130048
  %v36 = vsel %vm34, %v26, 0
  %v39 = vsel %vm34, %v27, 0
  %41 = vmatprep.subr.bf16.mxu0 0
  %42 = vmatpush1.bf16.msra.mxu0 0
  %43 = vmatprep.subr.bf16.mxu0 0
  %44 = vmatpush1.bf16.msra.mxu0 0
  %45 = vmatprep.subr.bf16.mxu0 0
  %46 = vmatpush1.bf16.msra.mxu0 0
  %47 = vmatprep.subr.bf16.mxu0 0
  %48 = vmatpush1.bf16.msra.mxu0 0
  %49 = vmatprep.subr.bf16.mxu0 0
  %50 = vmatpush1.bf16.msra.mxu0 0
  %51 = vmatprep.subr.bf16.mxu0 0
  %52 = vmatpush1.bf16.msra.mxu0 0
  %53 = vmatprep.subr.bf16.mxu0 0
  %54 = vmatpush1.bf16.msra.mxu0 0
  %55 = vmatprep.subr.bf16.mxu0 0
  %56 = vmatpush1.bf16.msra.mxu0 %v32
  %57 = vmatprep.subr.bf16.mxu0 0
  %58 = vmatpush2.bf16.msra.mxu0 0
  %59 = vmatprep.subr.bf16.mxu0 0
  %60 = vmatpush2.bf16.msra.mxu0 0
  %61 = vmatprep.subr.bf16.mxu0 0
  %62 = vmatpush2.bf16.msra.mxu0 0
  %63 = vmatprep.subr.bf16.mxu0 0
  %64 = vmatpush2.bf16.msra.mxu0 0
  %65 = vmatprep.subr.bf16.mxu0 0
  %66 = vmatpush2.bf16.msra.mxu0 0
  %67 = vmatprep.subr.bf16.mxu0 0
  %68 = vmatpush2.bf16.msra.mxu0 0
  %69 = vmatprep.subr.bf16.mxu0 0
  %70 = vmatpush2.bf16.msra.mxu0 0
  %71 = vmatprep.subr.bf16.mxu0 0
  %72 = vmatpush2.bf16.msra.mxu0 0
  %73 = vmatprep.mubr.bf16.mxu0 0
  %74 = vmatmul.mubr.bf16.gmra.mxu0 %v36
  %v75 = vpop.f32.mrf.mxu0
  %v76 = vadd.f32 0.0, %v75
  %v77 = vpop.f32.mrf.mxu0
  %v78 = vpop.f32.mrf.mxu0
  %v79 = vadd.f32 0.0, %v78
  %v80 = vpop.f32.mrf.mxu0
  %81 = vmatprep.mubr.bf16.mxu0 0
  %82 = vmatmul.mubr.bf16.gmra.mxu0 %v39
  %v83 = vpop.f32.mrf.mxu0
  %v84 = vadd.f32 0.0, %v83
  %v85 = vpop.f32.mrf.mxu0
  %v86 = vpop.f32.mrf.mxu0
  %v87 = vadd.f32 0.0, %v86
  %v88 = vpop.f32.mrf.mxu0
  %89 = vdwg.mxu0
  %vm90 = vcmask 261120
  %91 = vst.msk [vmem:[%s2] sm:$0xff] %vm90, %v76
  %92 = vst.msk [vmem:[%s2 + $0x8] sm:$0xff] %vm90, %v79
  %93 = vst.msk [vmem:[%s2 + $0x10] sm:$0xff] %vm90, %v84
  %94 = vst.msk [vmem:[%s2 + $0x18] sm:$0xff] %vm90, %v87
  // Predicated region
  $region10: #{resnet_forward.51} parent=0 // pred_check
    _
  $region11: #{resnet_forward.51} parent=0 // pred_check_branch
    %96 = sbr.rel (0) target = $region13
  $region12: #{resnet_forward.51} parent=0 // pred_region
    _
  $region13: #{resnet_forward.51} parent=0 // pred_fallthru
    _
  // Predicated region
  $region14: #{resnet_forward.51} parent=0 // pred_check
    _
  $region15: #{resnet_forward.51} parent=0 // pred_check_branch
    %98 = sbr.rel (0) target = $region17
  $region16: #{resnet_forward.51} parent=0 // pred_region
    _
  $region17: #{resnet_forward.51} parent=0 // pred_fallthru
    _

// kernel: resnet_forward.52
$region0: #{resnet_forward.52}
  #allocation0 [shape = 'u32[]', space=smem, size = 0x4, offset = 0x4, fixed_abs, tag = 'smem constant byte address 0x4 - core index']
  #allocation1 [shape = 'u32[144,128]{1,0:T(1,128)}', space=vmem, size = 0x12000, scoped, tag = 'internal scratch']
  %s0 = inlined_call_operand.vmem [shape: bf16[32,288], index: 0, kind: input, shape index: {}]
  %s1 = inlined_call_operand.vmem [shape: bf16[288,32], index: 1, kind: input, shape index: {}]
  %s2 = inlined_call_operand.vmem [shape: f32[32,32], index: 2, kind: output, shape index: {0}]
  %s3 = inlined_call_operand.vmem [shape: f32[1,1,32], index: 3, kind: output, shape index: {1}]
  %s4 = inlined_call_operand.vmem [shape: f32[1,1,32], index: 4, kind: output, shape index: {2}]
  %5 = xla_tuple %s2, %s3, %s4
  %s6 = sld [smem:[#allocation0]]
  $region34: #{resnet_forward.52} parent=0
    _
  %s8 = ssub.s32 1, %s6
  %s9 = scalar_select 0, %s8, %s6
  // Predicated region
  $region2: #{resnet_forward.52} parent=0 // pred_check
    _
  $region3: #{resnet_forward.52} parent=0 // pred_check_branch
    %11 = sbr.rel (0) target = $region5
  $region4: #{resnet_forward.52} parent=0 // pred_region
    _
  $region5: #{resnet_forward.52} parent=0 // pred_fallthru
    _
  // Predicated region
  $region6: #{resnet_forward.52} parent=0 // pred_check
    _
  $region7: #{resnet_forward.52} parent=0 // pred_check_branch
    %13 = sbr.rel (0) target = $region9
  $region8: #{resnet_forward.52} parent=0 // pred_region
    _
  $region9: #{resnet_forward.52} parent=0 // pred_fallthru
    _
  %v15 = vld [vmem:[%s0] sm:$0xff]
  %v16 = vld [vmem:[%s0 + $0x8] sm:$0xf]
  %v17 = vld [vmem:[%s0 + $0xc] sm:$0xff]
  %v18 = vld [vmem:[%s0 + $0x14] sm:$0xf]
  %v19 = vld [vmem:[%s0 + $0x18] sm:$0xff]
  %v20 = vld [vmem:[%s0 + $0x20] sm:$0xf]
  %v21 = vld [vmem:[%s0 + $0x24] sm:$0xff]
  %v22 = vld [vmem:[%s0 + $0x2c] sm:$0xf]
  %v23 = vld [vmem:[%s1] sm:$0xf]
  %v24 = vld [vmem:[%s1 + $0x4] sm:$0xf]
  %v25 = vld [vmem:[%s1 + $0x8] sm:$0xf]
  %v26 = vld [vmem:[%s1 + $0xc] sm:$0xf]
  %v27 = vld [vmem:[%s1 + $0x10] sm:$0xf]
  %v28 = vld [vmem:[%s1 + $0x14] sm:$0xf]
  %v29 = vld [vmem:[%s1 + $0x18] sm:$0xf]
  %v30 = vld [vmem:[%s1 + $0x1c] sm:$0xf]
  %v31 = vld [vmem:[%s1 + $0x20] sm:$0xf]
  %v32 = vld [vmem:[%s1 + $0x24] sm:$0xf]
  %v33 = vld [vmem:[%s1 + $0x28] sm:$0xf]
  %v34 = vld [vmem:[%s1 + $0x2c] sm:$0xf]
  %v35 = vld [vmem:[%s1 + $0x30] sm:$0xf]
  %v36 = vld [vmem:[%s1 + $0x34] sm:$0xf]
  %v37 = vld [vmem:[%s1 + $0x38] sm:$0xf]
  %v38 = vld [vmem:[%s1 + $0x3c] sm:$0xf]
  %v39 = vld [vmem:[%s1 + $0x40] sm:$0xf]
  %v40 = vld [vmem:[%s1 + $0x44] sm:$0xf]
  %v41 = vld [vmem:[%s1 + $0x48] sm:$0xf]
  %v42 = vld [vmem:[%s1 + $0x4c] sm:$0xf]
  %v43 = vld [vmem:[%s1 + $0x50] sm:$0xf]
  %v44 = vld [vmem:[%s1 + $0x54] sm:$0xf]
  %v45 = vld [vmem:[%s1 + $0x58] sm:$0xf]
  %v46 = vld [vmem:[%s1 + $0x5c] sm:$0xf]
  %v47 = vld [vmem:[%s1 + $0x60] sm:$0xf]
  %v48 = vld [vmem:[%s1 + $0x64] sm:$0xf]
  %v49 = vld [vmem:[%s1 + $0x68] sm:$0xf]
  %v50 = vld [vmem:[%s1 + $0x6c] sm:$0xf]
  %v51 = vld [vmem:[%s1 + $0x70] sm:$0xf]
  %v52 = vld [vmem:[%s1 + $0x74] sm:$0xf]
  %v53 = vld [vmem:[%s1 + $0x78] sm:$0xf]
  %v54 = vld [vmem:[%s1 + $0x7c] sm:$0xf]
  %v55 = vld [vmem:[%s1 + $0x80] sm:$0xf]
  %v56 = vld [vmem:[%s1 + $0x84] sm:$0xf]
  %v57 = vld [vmem:[%s1 + $0x88] sm:$0xf]
  %v58 = vld [vmem:[%s1 + $0x8c] sm:$0xf]
  %v67 = vunpack.c.l.b16 %v15
  %v68 = vunpack.c.h.b16 %v15
  %v69 = vunpack.c.l.b16 %v16
  %v70 = vunpack.c.l.b16 %v17
  %v71 = vunpack.c.h.b16 %v17
  %v72 = vunpack.c.l.b16 %v18
  %v73 = vunpack.c.l.b16 %v19
  %v74 = vunpack.c.h.b16 %v19
  %v75 = vunpack.c.l.b16 %v20
  %v76 = vunpack.c.l.b16 %v21
  %v77 = vunpack.c.h.b16 %v21
  %v78 = vunpack.c.l.b16 %v22
  %v79 = vpack.c.b16 %v70, %v67
  %v80 = vpack.c.b16 %v71, %v68
  %v81 = vpack.c.b16 %v72, %v69
  %v82 = vpack.c.b16 %v76, %v73
  %v83 = vpack.c.b16 %v77, %v74
  %v84 = vpack.c.b16 %v78, %v75
  %v125 = vunpack.c.l.b16 %v23
  %v126 = vunpack.c.l.b16 %v24
  %v127 = vunpack.c.l.b16 %v25
  %v128 = vunpack.c.l.b16 %v26
  %v129 = vunpack.c.l.b16 %v27
  %v130 = vunpack.c.l.b16 %v28
  %v131 = vunpack.c.l.b16 %v29
  %v132 = vunpack.c.l.b16 %v30
  %v133 = vunpack.c.l.b16 %v31
  %v134 = vunpack.c.l.b16 %v32
  %v135 = vunpack.c.l.b16 %v33
  %v136 = vunpack.c.l.b16 %v34
  %v137 = vunpack.c.l.b16 %v35
  %v138 = vunpack.c.l.b16 %v36
  %v139 = vunpack.c.l.b16 %v37
  %v140 = vunpack.c.l.b16 %v38
  %v141 = vunpack.c.l.b16 %v39
  %v142 = vunpack.c.l.b16 %v40
  %v143 = vunpack.c.l.b16 %v41
  %v144 = vunpack.c.l.b16 %v42
  %v145 = vunpack.c.l.b16 %v43
  %v146 = vunpack.c.l.b16 %v44
  %v147 = vunpack.c.l.b16 %v45
  %v148 = vunpack.c.l.b16 %v46
  %v149 = vunpack.c.l.b16 %v47
  %v150 = vunpack.c.l.b16 %v48
  %v151 = vunpack.c.l.b16 %v49
  %v152 = vunpack.c.l.b16 %v50
  %v153 = vunpack.c.l.b16 %v51
  %v154 = vunpack.c.l.b16 %v52
  %v155 = vunpack.c.l.b16 %v53
  %v156 = vunpack.c.l.b16 %v54
  %v157 = vunpack.c.l.b16 %v55
  %v158 = vunpack.c.l.b16 %v56
  %v159 = vunpack.c.l.b16 %v57
  %v160 = vunpack.c.l.b16 %v58
  %v161 = vpack.c.b16 %v126, %v125
  %v162 = vpack.c.b16 %v128, %v127
  %v163 = vpack.c.b16 %v130, %v129
  %v164 = vpack.c.b16 %v132, %v131
  %v165 = vpack.c.b16 %v134, %v133
  %v166 = vpack.c.b16 %v136, %v135
  %v167 = vpack.c.b16 %v138, %v137
  %v168 = vpack.c.b16 %v140, %v139
  %v169 = vpack.c.b16 %v142, %v141
  %v170 = vpack.c.b16 %v144, %v143
  %v171 = vpack.c.b16 %v146, %v145
  %v172 = vpack.c.b16 %v148, %v147
  %v173 = vpack.c.b16 %v150, %v149
  %v174 = vpack.c.b16 %v152, %v151
  %v175 = vpack.c.b16 %v154, %v153
  %v176 = vpack.c.b16 %v156, %v155
  %v177 = vpack.c.b16 %v158, %v157
  %v178 = vpack.c.b16 %v160, %v159
  %vm197 = vcmask 261120
  %v199 = vsel %vm197, %v81, 0
  %v202 = vsel %vm197, %v84, 0
  %204 = vmatprep.subr.bf16.mxu0 0
  %205 = vmatpush1.bf16.msra.mxu0 %v168
  %206 = vmatprep.subr.bf16.mxu0 0
  %207 = vmatpush1.bf16.msra.mxu0 %v167
  %208 = vmatprep.subr.bf16.mxu0 0
  %209 = vmatpush1.bf16.msra.mxu0 %v166
  %210 = vmatprep.subr.bf16.mxu0 0
  %211 = vmatpush1.bf16.msra.mxu0 %v165
  %212 = vmatprep.subr.bf16.mxu0 0
  %213 = vmatpush1.bf16.msra.mxu0 %v164
  %214 = vmatprep.subr.bf16.mxu0 0
  %215 = vmatpush1.bf16.msra.mxu0 %v163
  %216 = vmatprep.subr.bf16.mxu0 0
  %217 = vmatpush1.bf16.msra.mxu0 %v162
  %218 = vmatprep.subr.bf16.mxu0 0
  %219 = vmatpush1.bf16.msra.mxu0 %v161
  %220 = vmatprep.subr.bf16.mxu0 0
  %221 = vmatpush2.bf16.msra.mxu0 %v176
  %222 = vmatprep.subr.bf16.mxu0 0
  %223 = vmatpush2.bf16.msra.mxu0 %v175
  %224 = vmatprep.subr.bf16.mxu0 0
  %225 = vmatpush2.bf16.msra.mxu0 %v174
  %226 = vmatprep.subr.bf16.mxu0 0
  %227 = vmatpush2.bf16.msra.mxu0 %v173
  %228 = vmatprep.subr.bf16.mxu0 0
  %229 = vmatpush2.bf16.msra.mxu0 %v172
  %230 = vmatprep.subr.bf16.mxu0 0
  %231 = vmatpush2.bf16.msra.mxu0 %v171
  %232 = vmatprep.subr.bf16.mxu0 0
  %233 = vmatpush2.bf16.msra.mxu0 %v170
  %234 = vmatprep.subr.bf16.mxu0 0
  %235 = vmatpush2.bf16.msra.mxu0 %v169
  %236 = vmatprep.mubr.bf16.mxu0 %v80
  %237 = vmatmul.mubr.bf16.gmra.mxu0 %v79
  %v238 = vpop.f32.mrf.mxu0
  %v239 = vadd.f32 0.0, %v238
  %v240 = vpop.f32.mrf.mxu0
  %v241 = vpop.f32.mrf.mxu0
  %v242 = vadd.f32 0.0, %v241
  %v243 = vpop.f32.mrf.mxu0
  %244 = vmatprep.mubr.bf16.mxu0 %v83
  %245 = vmatmul.mubr.bf16.gmra.mxu0 %v82
  %v246 = vpop.f32.mrf.mxu0
  %v247 = vadd.f32 0.0, %v246
  %v248 = vpop.f32.mrf.mxu0
  %v249 = vpop.f32.mrf.mxu0
  %v250 = vadd.f32 0.0, %v249
  %v251 = vpop.f32.mrf.mxu0
  %252 = vdwg.mxu0
  %253 = vmatprep.subr.bf16.mxu0 0
  %254 = vmatpush1.bf16.msra.mxu0 0
  %255 = vmatprep.subr.bf16.mxu0 0
  %256 = vmatpush1.bf16.msra.mxu0 0
  %257 = vmatprep.subr.bf16.mxu0 0
  %258 = vmatpush1.bf16.msra.mxu0 0
  %259 = vmatprep.subr.bf16.mxu0 0
  %260 = vmatpush1.bf16.msra.mxu0 0
  %261 = vmatprep.subr.bf16.mxu0 0
  %262 = vmatpush1.bf16.msra.mxu0 0
  %263 = vmatprep.subr.bf16.mxu0 0
  %264 = vmatpush1.bf16.msra.mxu0 0
  %265 = vmatprep.subr.bf16.mxu0 0
  %266 = vmatpush1.bf16.msra.mxu0 %v178
  %267 = vmatprep.subr.bf16.mxu0 0
  %268 = vmatpush1.bf16.msra.mxu0 %v177
  %269 = vmatprep.subr.bf16.mxu0 0
  %270 = vmatpush2.bf16.msra.mxu0 0
  %271 = vmatprep.subr.bf16.mxu0 0
  %272 = vmatpush2.bf16.msra.mxu0 0
  %273 = vmatprep.subr.bf16.mxu0 0
  %274 = vmatpush2.bf16.msra.mxu0 0
  %275 = vmatprep.subr.bf16.mxu0 0
  %276 = vmatpush2.bf16.msra.mxu0 0
  %277 = vmatprep.subr.bf16.mxu0 0
  %278 = vmatpush2.bf16.msra.mxu0 0
  %279 = vmatprep.subr.bf16.mxu0 0
  %280 = vmatpush2.bf16.msra.mxu0 0
  %281 = vmatprep.subr.bf16.mxu0 0
  %282 = vmatpush2.bf16.msra.mxu0 0
  %283 = vmatprep.subr.bf16.mxu0 0
  %284 = vmatpush2.bf16.msra.mxu0 0
  %285 = vmatprep.mubr.bf16.mxu0 0
  %286 = vmatmul.mubr.bf16.gmra.mxu0 %v199
  %v287 = vpop.f32.mrf.mxu0
  %v288 = vadd.f32 %v239, %v287
  %v289 = vpop.f32.mrf.mxu0
  %v290 = vpop.f32.mrf.mxu0
  %v291 = vadd.f32 %v242, %v290
  %v292 = vpop.f32.mrf.mxu0
  %293 = vmatprep.mubr.bf16.mxu0 0
  %294 = vmatmul.mubr.bf16.gmra.mxu0 %v202
  %v295 = vpop.f32.mrf.mxu0
  %v296 = vadd.f32 %v247, %v295
  %v297 = vpop.f32.mrf.mxu0
  %v298 = vpop.f32.mrf.mxu0
  %v299 = vadd.f32 %v250, %v298
  %v300 = vpop.f32.mrf.mxu0
  %301 = vdwg.mxu0
  %302 = vst.msk [vmem:[%s2] sm:$0xff] %vm197, %v288
  %303 = vst.msk [vmem:[%s2 + $0x8] sm:$0xff] %vm197, %v291
  %304 = vst.msk [vmem:[%s2 + $0x10] sm:$0xff] %vm197, %v296
  %305 = vst.msk [vmem:[%s2 + $0x18] sm:$0xff] %vm197, %v299
  %v306 = vsel %vm197, %v288, 0.0
  %v307 = vsel %vm197, %v291, 0.0
  %v308 = vadd.f32 %v306, %v307
  %v309 = vsel %vm197, %v296, 0.0
  %v310 = vadd.f32 %v308, %v309
  %v311 = vsel %vm197, %v299, 0.0
  %v312 = vadd.f32 %v310, %v311
  %v313 = vrot.slane %v312, 4
  %v314 = vadd.f32 %v312, %v313
  %v315 = vrot.slane %v314, 2
  %v316 = vadd.f32 %v314, %v315
  %v317 = vrot.slane %v316, 1
  %v318 = vadd.f32 %v316, %v317
  %vm319 = vcmask 253952
  %320 = vst.msk [vmem:[%s3] sm:$0x1] %vm319, %v318
  %v321 = vmul.f32 %v288, %v288
  %v322 = vmul.f32 %v291, %v291
  %v323 = vmul.f32 %v296, %v296
  %v324 = vmul.f32 %v299, %v299
  %v325 = vsel %vm197, %v321, 0.0
  %v326 = vsel %vm197, %v322, 0.0
  %v327 = vadd.f32 %v325, %v326
  %v328 = vsel %vm197, %v323, 0.0
  %v329 = vadd.f32 %v327, %v328
  %v330 = vsel %vm197, %v324, 0.0
  %v331 = vadd.f32 %v329, %v330
  %v332 = vrot.slane %v331, 4
  %v333 = vadd.f32 %v331, %v332
  %v334 = vrot.slane %v333, 2
  %v335 = vadd.f32 %v333, %v334
  %v336 = vrot.slane %v335, 1
  %v337 = vadd.f32 %v335, %v336
  %338 = vst.msk [vmem:[%s4] sm:$0x1] %vm319, %v337
  // Predicated region
  $region10: #{resnet_forward.52} parent=0 // pred_check
    _
  $region11: #{resnet_forward.52} parent=0 // pred_check_branch
    %340 = sbr.rel (0) target = $region13
  $region12: #{resnet_forward.52} parent=0 // pred_region
    _
  $region13: #{resnet_forward.52} parent=0 // pred_fallthru
    _
  // Predicated region
  $region14: #{resnet_forward.52} parent=0 // pred_check
    _
  $region15: #{resnet_forward.52} parent=0 // pred_check_branch
    %342 = sbr.rel (0) target = $region17
  $region16: #{resnet_forward.52} parent=0 // pred_region
    _
  $region17: #{resnet_forward.52} parent=0 // pred_fallthru
    _
  // Predicated region
  $region18: #{resnet_forward.52} parent=0 // pred_check
    _
  $region19: #{resnet_forward.52} parent=0 // pred_check_branch
    %344 = sbr.rel (0) target = $region21
  $region20: #{resnet_forward.52} parent=0 // pred_region
    _
  $region21: #{resnet_forward.52} parent=0 // pred_fallthru
    _
  // Predicated region
  $region22: #{resnet_forward.52} parent=0 // pred_check
    _
  $region23: #{resnet_forward.52} parent=0 // pred_check_branch
    %346 = sbr.rel (0) target = $region25
  $region24: #{resnet_forward.52} parent=0 // pred_region
    _
  $region25: #{resnet_forward.52} parent=0 // pred_fallthru
    _
  // Predicated region
  $region26: #{resnet_forward.52} parent=0 // pred_check
    _
  $region27: #{resnet_forward.52} parent=0 // pred_check_branch
    %348 = sbr.rel (0) target = $region29
  $region28: #{resnet_forward.52} parent=0 // pred_region
    _
  $region29: #{resnet_forward.52} parent=0 // pred_fallthru
    _
  // Predicated region
  $region30: #{resnet_forward.52} parent=0 // pred_check
    _
  $region31: #{resnet_forward.52} parent=0 // pred_check_branch
    %350 = sbr.rel (0) target = $region33
  $region32: #{resnet_forward.52} parent=0 // pred_region
    _
  $region33: #{resnet_forward.52} parent=0 // pred_fallthru
    _

// kernel: resnet_forward.59
$region0: #{resnet_forward.59}
  #allocation0 [shape = 'u32[]', space=smem, size = 0x4, offset = 0x4, fixed_abs, tag = 'smem constant byte address 0x4 - core index']
  #allocation1 [shape = 'u32[144,128]{1,0:T(1,128)}', space=vmem, size = 0x12000, scoped, tag = 'internal scratch']
  %s0 = inlined_call_operand.vmem [shape: bf16[2,32], index: 0, kind: input, shape index: {}]
  %s1 = inlined_call_operand.vmem [shape: bf16[32,10], index: 1, kind: input, shape index: {}]
  %s2 = inlined_call_operand.vmem [shape: f32[2,10], index: 2, kind: output, shape index: {}]
  %s3 = sld [smem:[#allocation0]]
  $region18: #{resnet_forward.59} parent=0
    _
  %s5 = ssub.s32 1, %s3
  %s6 = scalar_select 0, %s5, %s3
  // Predicated region
  $region2: #{resnet_forward.59} parent=0 // pred_check
    _
  $region3: #{resnet_forward.59} parent=0 // pred_check_branch
    %8 = sbr.rel (0) target = $region5
  $region4: #{resnet_forward.59} parent=0 // pred_region
    _
  $region5: #{resnet_forward.59} parent=0 // pred_fallthru
    _
  // Predicated region
  $region6: #{resnet_forward.59} parent=0 // pred_check
    _
  $region7: #{resnet_forward.59} parent=0 // pred_check_branch
    %10 = sbr.rel (0) target = $region9
  $region8: #{resnet_forward.59} parent=0 // pred_region
    _
  $region9: #{resnet_forward.59} parent=0 // pred_fallthru
    _
  %v12 = vld [vmem:[%s0] sm:$0x1]
  %v13 = vld [vmem:[%s1] sm:$0xf]
  %v14 = vld [vmem:[%s1 + $0x4] sm:$0xf]
  %v15 = vld [vmem:[%s1 + $0x8] sm:$0xf]
  %v16 = vld [vmem:[%s1 + $0xc] sm:$0xf]
  %v21 = vunpack.c.l.b16 %v13
  %v22 = vunpack.c.l.b16 %v14
  %v23 = vunpack.c.l.b16 %v15
  %v24 = vunpack.c.l.b16 %v16
  %v25 = vpack.c.b16 %v22, %v21
  %v26 = vpack.c.b16 %v24, %v23
  %vm29 = vcmask 261120
  %v31 = vsel %vm29, %v12, 0
  %33 = vmatprep.subr.bf16.mxu0 0
  %34 = vmatpush1.bf16.msra.mxu0 0
  %35 = vmatprep.subr.bf16.mxu0 0
  %36 = vmatpush1.bf16.msra.mxu0 0
  %37 = vmatprep.subr.bf16.mxu0 0
  %38 = vmatpush1.bf16.msra.mxu0 0
  %39 = vmatprep.subr.bf16.mxu0 0
  %40 = vmatpush1.bf16.msra.mxu0 0
  %41 = vmatprep.subr.bf16.mxu0 0
  %42 = vmatpush1.bf16.msra.mxu0 0
  %43 = vmatprep.subr.bf16.mxu0 0
  %44 = vmatpush1.bf16.msra.mxu0 0
  %45 = vmatprep.subr.bf16.mxu0 0
  %46 = vmatpush1.bf16.msra.mxu0 %v26
  %47 = vmatprep.subr.bf16.mxu0 0
  %48 = vmatpush1.bf16.msra.mxu0 %v25
  %49 = vmatprep.subr.bf16.mxu0 0
  %50 = vmatpush2.bf16.msra.mxu0 0
  %51 = vmatprep.subr.bf16.mxu0 0
  %52 = vmatpush2.bf16.msra.mxu0 0
  %53 = vmatprep.subr.bf16.mxu0 0
  %54 = vmatpush2.bf16.msra.mxu0 0
  %55 = vmatprep.subr.bf16.mxu0 0
  %56 = vmatpush2.bf16.msra.mxu0 0
  %57 = vmatprep.subr.bf16.mxu0 0
  %58 = vmatpush2.bf16.msra.mxu0 0
  %59 = vmatprep.subr.bf16.mxu0 0
  %60 = vmatpush2.bf16.msra.mxu0 0
  %61 = vmatprep.subr.bf16.mxu0 0
  %62 = vmatpush2.bf16.msra.mxu0 0
  %63 = vmatprep.subr.bf16.mxu0 0
  %64 = vmatpush2.bf16.msra.mxu0 0
  %65 = vmatprep.mubr.bf16.mxu0 0
  %66 = vmatmul.mubr.bf16.gmra.mxu0 %v31
  %v67 = vpop.f32.mrf.mxu0
  %v68 = vadd.f32 0.0, %v67
  %v69 = vpop.f32.mrf.mxu0
  %v70 = vpop.f32.mrf.mxu0
  %v71 = vpop.f32.mrf.mxu0
  %72 = vdwg.mxu0
  %vm73 = vcmask 74752
  %74 = vst.msk [vmem:[%s2] sm:$0x3] %vm73, %v68
  // Predicated region
  $region10: #{resnet_forward.59} parent=0 // pred_check
    _
  $region11: #{resnet_forward.59} parent=0 // pred_check_branch
    %76 = sbr.rel (0) target = $region13
  $region12: #{resnet_forward.59} parent=0 // pred_region
    _
  $region13: #{resnet_forward.59} parent=0 // pred_fallthru
    _
  // Predicated region
  $region14: #{resnet_forward.59} parent=0 // pred_check
    _
  $region15: #{resnet_forward.59} parent=0 // pred_check_branch
    %78 = sbr.rel (0) target = $region17
  $region16: #{resnet_forward.59} parent=0 // pred_region
    _
  $region17: #{resnet_forward.59} parent=0 // pred_fallthru
    _

</llo_original>
